<compile_context>
chip_gen: v7x
topology: tpu7x:2x2x1
jax: 0.10.0
libtpu: 0.0.40
codegen_flags: <defaults>
</compile_context>

<pallas_src>
import jax
import jax.numpy as jnp
import numpy as np
from jax.experimental import pallas as pl
from jax.experimental.pallas import tpu as pltpu


# ----------------------------------------------------------------------------
# Pallas kernel: fused UpProjection for one (batch, H-tile) grid step.
# ----------------------------------------------------------------------------
def _upproj_kernel(xt_ref, xa_ref, xb_ref, w5_ref, b5_ref, w12_ref, b12_ref,
                   o_ref, xs_ref, slab_ref, acc5_ref, y1p_ref):
    # xt_ref  : (8,  W, Cin) f32   8-row block just above this tile (clamped)
    # xa_ref  : (tH, W, Cin) f32   rows owned by this tile
    # xb_ref  : (8,  W, Cin) f32   8-row block just below this tile (clamped)
    # w5_ref  : (5, 5*Cin, 2C) bf16  fused conv1||conv2, per-kh im2col layout
    # b5_ref  : (1, 2C) f32          b1||b2
    # w12_ref : (9*C, C) bf16        conv1_2, im2col layout
    # b12_ref : (1, C) f32
    # o_ref   : (tH, W, C)           output tile
    # xs_ref  : (tH+16, W+32, Cin) bf16  assembled zero-padded input slab
    # slab_ref: (tH+6, W, 5*Cin)   bf16  hoisted kw-im2col slab (K = 5*Cin)
    # acc5_ref: ((tH+2)*W, 2C)     f32   fused 5x5 accumulator
    # y1p_ref : (tH+2, W+2, C)     bf16  relu(conv1), 1-col zero border
    tH, W, Cin = xa_ref.shape
    C = b12_ref.shape[1]
    i = pl.program_id(1)
    nT = pl.num_programs(1)
    M5 = (tH + 2) * W
    COL0 = 16                      # column offset of image data inside xs_ref
    bf = jnp.bfloat16

    # ---- assemble the zero-padded bf16 input slab in VMEM -------------------
    # xs row r corresponds to global input row i*tH - 8 + r.
    # Zero border columns (only cols COL0-2..COL0-1 / COL0+W..COL0+W+1 are read).
    xs_ref[:, 0:COL0, :] = jnp.zeros((tH + 16, COL0, Cin), bf)
    xs_ref[:, COL0 + W:COL0 + W + 16, :] = jnp.zeros((tH + 16, 16, Cin), bf)

    @pl.when(i == 0)
    def _():                       # image top: halo rows are zero padding
        xs_ref[0:8, COL0:COL0 + W, :] = jnp.zeros((8, W, Cin), bf)

    @pl.when(i > 0)
    def _():
        xs_ref[0:8, COL0:COL0 + W, :] = xt_ref[...].astype(bf)

    xs_ref[8:8 + tH, COL0:COL0 + W, :] = xa_ref[...].astype(bf)

    @pl.when(i == nT - 1)
    def _():                       # image bottom: halo rows are zero padding
        xs_ref[8 + tH:16 + tH, COL0:COL0 + W, :] = jnp.zeros((8, W, Cin), bf)

    @pl.when(i < nT - 1)
    def _():
        xs_ref[8 + tH:16 + tH, COL0:COL0 + W, :] = xb_ref[...].astype(bf)

    # ---- hoisted kw-im2col slab (built once, reused by all 5 kh matmuls) ----
    # slab row s corresponds to global input row i*tH - 3 + s (xs row 5 + s);
    # slab channel kw*Cin + c is input column w + kw - 2.
    rows = xs_ref[5:5 + tH + 6]                           # (tH+6, W+32, Cin)
    slab_ref[...] = jnp.concatenate(
        [rows[:, COL0 - 2 + kw:COL0 - 2 + kw + W, :] for kw in range(5)],
        axis=-1)

    # ---- fused 5x5 convs (conv1 || conv2): 5 matmuls, K = 5*Cin, N = 2C -----
    # Output covers tH+2 rows (one y1 halo row above/below for the 3x3).
    for kh in range(5):
        contrib = jnp.dot(
            slab_ref[kh:kh + tH + 2].reshape(M5, 5 * Cin), w5_ref[kh],
            preferred_element_type=jnp.float32)
        if kh == 0:
            acc5_ref[...] = contrib
        else:
            acc5_ref[...] = acc5_ref[...] + contrib

    b5 = b5_ref[...]                                      # (1, 2C) f32

    # y1 = relu(conv1(x) + b1), staged bf16 with a one-column zero border.
    y1 = jnp.maximum(acc5_ref[...][:, 0:C] + b5[:, 0:C], 0.0)
    y1p_ref[:, 0:1, :] = jnp.zeros((tH + 2, 1, C), bf)
    y1p_ref[:, W + 1:W + 2, :] = jnp.zeros((tH + 2, 1, C), bf)
    y1p_ref[:, 1:W + 1, :] = y1.reshape(tH + 2, W, C).astype(bf)

    # y1 rows that fall outside the image are the 3x3's zero padding; only the
    # first/last tile has such a row.
    @pl.when(i == 0)
    def _():
        y1p_ref[0:1, :, :] = jnp.zeros((1, W + 2, C), bf)

    @pl.when(i == nT - 1)
    def _():
        y1p_ref[tH + 1:tH + 2, :, :] = jnp.zeros((1, W + 2, C), bf)

    # ---- 3x3 conv folded into one matmul (9 taps along K = 9C) --------------
    wins = []
    for kh2 in range(3):
        r12 = y1p_ref[kh2:kh2 + tH]                       # (tH, W+2, C)
        for kw2 in range(3):
            wins.append(r12[:, kw2:kw2 + W, :])
    slab12 = jnp.concatenate(wins, axis=-1).reshape(tH * W, 9 * C)
    bran1 = jnp.dot(slab12, w12_ref[...],
                    preferred_element_type=jnp.float32) + b12_ref[...]

    # branch 2 = conv2(x) + b2 on the rows this tile owns.
    bran2 = acc5_ref[W:(tH + 1) * W, :][:, C:2 * C] + b5[:, C:2 * C]

    out = jnp.maximum(bran1 + bran2, 0.0)                 # (tH*W, C) f32
    o_ref[...] = out.reshape(tH, W, C).astype(o_ref.dtype)


def _pick_tile_h(H):
    # Largest multiple-of-8 divisor of H that is <= 24 (VMEM budget on v7x).
    for t in (24, 16, 8):
        if H % t == 0:
            return t
    return None


def _vmem_limit_bytes(tile_h, W, Cin, C, in_bytes):
    bfb, f4, db = 2, 4, 2
    est = 0
    est += db * tile_h * W * Cin * in_bytes               # xa (double-buffered)
    est += db * 2 * 8 * W * Cin * in_bytes                # xt + xb halo blocks
    est += db * 5 * 5 * Cin * 2 * C * bfb                 # w5
    est += db * (9 * C * C * bfb + 3 * C * f4)            # w12 + biases
    est += db * tile_h * W * max(C, 128) * f4             # output block (lane pad)
    est += (tile_h + 16) * (W + 32) * Cin * bfb           # xs scratch
    est += 2 * (tile_h + 6) * W * 5 * Cin * bfb           # kw slab (+concat temp)
    est += (tile_h + 2) * W * 2 * C * f4                  # 5x5 accumulator
    est += (tile_h + 2) * (W + 2) * C * bfb               # y1p scratch
    est += tile_h * W * 9 * C * bfb                       # 3x3 im2col temp
    est += 4 * tile_h * W * C * f4                        # bran1/bran2/out temps
    return int(min(128 * 2**20, max(32 * 2**20, 1.25 * est)))


def _upproj_pallas(x_nhwc, params, *, tile_h=None):
    """Fused UpProjection on NHWC input (already at target size)."""
    B, H, W, Cin = x_nhwc.shape
    C = params["b1"].shape[-1]
    if tile_h is None:
        tile_h = _pick_tile_h(H)
    assert tile_h is not None and tile_h % 8 == 0 and H % tile_h == 0, (H, tile_h)
    assert W % 8 == 0, W
    nT = H // tile_h
    m = tile_h // 8            # halo block-index multiplier (8-row blocks)
    nblk8 = H // 8

    # Fuse the two 5x5 branches along the output-channel axis; lay the weights
    # out for the per-kh im2col matmul (K runs kw-major, then Cin).
    w5 = jnp.concatenate([params["w1"], params["w2"]], axis=-1)       # (5,5,Cin,2C)
    w5 = w5.reshape(5, 5 * Cin, 2 * C).astype(jnp.bfloat16)
    b5 = jnp.concatenate([params["b1"], params["b2"]], axis=-1).astype(jnp.float32)
    w12 = params["w12"].reshape(9 * C, C).astype(jnp.bfloat16)        # (9C, C)
    b12 = params["b12"].astype(jnp.float32)

    grid_spec = pltpu.PrefetchScalarGridSpec(
        num_scalar_prefetch=0,
        grid=(B, nT),
        in_specs=[
            # 8-row block above this tile (clamped at the top edge; the kernel
            # zero-fills the halo there anyway).
            pl.BlockSpec((None, 8, W, Cin),
                         lambda b, i: (b, jnp.maximum(i * m - 1, 0), 0, 0)),
            # rows owned by this tile
            pl.BlockSpec((None, tile_h, W, Cin), lambda b, i: (b, i, 0, 0)),
            # 8-row block below this tile (clamped at the bottom edge)
            pl.BlockSpec((None, 8, W, Cin),
                         lambda b, i: (b, jnp.minimum((i + 1) * m, nblk8 - 1), 0, 0)),
            pl.BlockSpec((5, 5 * Cin, 2 * C), lambda b, i: (0, 0, 0)),   # w5
            pl.BlockSpec((1, 2 * C), lambda b, i: (0, 0)),               # b5
            pl.BlockSpec((9 * C, C), lambda b, i: (0, 0)),               # w12
            pl.BlockSpec((1, C), lambda b, i: (0, 0)),                   # b12
        ],
        out_specs=pl.BlockSpec((None, tile_h, W, C), lambda b, i: (b, i, 0, 0)),
        scratch_shapes=[
            pltpu.VMEM((tile_h + 16, W + 32, Cin), jnp.bfloat16),  # padded input
            pltpu.VMEM((tile_h + 6, W, 5 * Cin), jnp.bfloat16),    # kw-im2col slab
            pltpu.VMEM(((tile_h + 2) * W, 2 * C), jnp.float32),    # 5x5 accumulator
            pltpu.VMEM((tile_h + 2, W + 2, C), jnp.bfloat16),      # y1 (padded W)
        ],
    )
    return pl.pallas_call(
        _upproj_kernel,
        out_shape=jax.ShapeDtypeStruct((B, H, W, C), x_nhwc.dtype),
        grid_spec=grid_spec,
        compiler_params=pltpu.CompilerParams(
            dimension_semantics=("parallel", "parallel"),
            vmem_limit_bytes=_vmem_limit_bytes(tile_h, W, Cin, C,
                                               x_nhwc.dtype.itemsize)),
    )(x_nhwc, x_nhwc, x_nhwc, w5, b5, w12, b12)


# ----------------------------------------------------------------------------
# Bilinear resize with align_corners=True (plain-JAX glue, separable matmuls)
# ----------------------------------------------------------------------------
def _interp_matrix(out_size, in_size):
    if in_size == 1:
        return jnp.ones((out_size, 1), jnp.float32)
    if out_size == 1:
        return jnp.zeros((1, in_size), jnp.float32).at[0, 0].set(1.0)
    src = jnp.arange(out_size, dtype=jnp.float32) * (in_size - 1) / (out_size - 1)
    lo = jnp.clip(jnp.floor(src).astype(jnp.int32), 0, in_size - 2)
    frac = src - lo.astype(jnp.float32)
    rows = jnp.arange(out_size)
    mat = jnp.zeros((out_size, in_size), jnp.float32)
    mat = mat.at[rows, lo].set(1.0 - frac)
    mat = mat.at[rows, lo + 1].add(frac)
    return mat


def _bilinear_resize_nhwc(x, size):
    H_out, W_out = size
    _, h_in, w_in, _ = x.shape
    mh = _interp_matrix(H_out, h_in)
    mw = _interp_matrix(W_out, w_in)
    y = jnp.einsum("Oh,bhwc->bOwc", mh, x)
    return jnp.einsum("Ow,bhwc->bhOc", mw, y)


# ----------------------------------------------------------------------------
# DepthFeatures forward
# ----------------------------------------------------------------------------
def up_projection(x_nhwc, params, size, *, tile_h=None):
    if tuple(x_nhwc.shape[1:3]) != tuple(size):
        x_nhwc = _bilinear_resize_nhwc(x_nhwc, size)
    return _upproj_pallas(x_nhwc, params, tile_h=tile_h)


def depth_features_forward(features_nhwc, level_params, size, *, tile_h=None):
    outs = [up_projection(x, p, size, tile_h=tile_h)
            for x, p in zip(features_nhwc, level_params)]
    return jnp.concatenate(outs, axis=-1)  # channel concat (NHWC)


# ----------------------------------------------------------------------------
# Pure-JAX reference (same bf16-operand / f32-accumulate numerics)
# ----------------------------------------------------------------------------
def _conv_nhwc(x, w, b, pad):
    y = jax.lax.conv_general_dilated(
        x, w, window_strides=(1, 1), padding=[(pad, pad), (pad, pad)],
        dimension_numbers=("NHWC", "HWIO", "NHWC"),
        preferred_element_type=jnp.float32)
    return y + b[0].astype(jnp.float32)


def _upproj_ref(x, p, size):
    if tuple(x.shape[1:3]) != tuple(size):
        x = _bilinear_resize_nhwc(x, size)
    xb = x.astype(jnp.bfloat16)
    w1 = p["w1"].astype(jnp.bfloat16)
    w12 = p["w12"].astype(jnp.bfloat16)
    w2 = p["w2"].astype(jnp.bfloat16)
    y1 = jnp.maximum(_conv_nhwc(xb, w1, p["b1"], 2), 0.0)
    bran1 = _conv_nhwc(y1.astype(jnp.bfloat16), w12, p["b12"], 1)
    bran2 = _conv_nhwc(xb, w2, p["b2"], 2)
    return jnp.maximum(bran1 + bran2, 0.0).astype(x.dtype)


def _depth_features_ref(features, level_params, size):
    return jnp.concatenate(
        [_upproj_ref(x, p, size) for x, p in zip(features, level_params)],
        axis=-1)


# ----------------------------------------------------------------------------
# Parameter init (deterministic, synthetic — no checkpoint loading)
# ----------------------------------------------------------------------------
def init_depth_features_params(key, num_levels, in_channels, out_channels):
    params = []
    for lvl in range(num_levels):
        ks = jax.random.split(jax.random.fold_in(key, lvl), 6)
        p = {
            "w1": 0.1 * jax.random.normal(ks[0], (5, 5, in_channels, out_channels), jnp.float32),
            "b1": 0.1 * jax.random.normal(ks[1], (1, out_channels), jnp.float32),
            "w12": 0.1 * jax.random.normal(ks[2], (3, 3, out_channels, out_channels), jnp.float32),
            "b12": 0.1 * jax.random.normal(ks[3], (1, out_channels), jnp.float32),
            "w2": 0.1 * jax.random.normal(ks[4], (5, 5, in_channels, out_channels), jnp.float32),
            "b2": 0.1 * jax.random.normal(ks[5], (1, out_channels), jnp.float32),
        }
        params.append(p)
    return params


if __name__ == "__main__":
    # Small shapes consistent with the module (scaled down from size=(120,160),
    # num_levels=4, in_channels=256, out_channels_per_level=32).  tile_h=8 with
    # H=16 gives two H-tiles, exercising both the edge and interior halo paths.
    B = 2
    NUM_LEVELS = 4
    IN_CH = 8
    OUT_CH = 8
    SIZE = (16, 16)
    TILE_H = 8
    FEATURE_SPATIAL = [(16, 16), (8, 8), (8, 8), (4, 4)]  # FPN-like pyramid

    key = jax.random.PRNGKey(0)
    pkey, xkey = jax.random.split(key)
    level_params = init_depth_features_params(pkey, NUM_LEVELS, IN_CH, OUT_CH)

    features = []
    for lvl, (h, w) in enumerate(FEATURE_SPATIAL):
        features.append(jax.random.normal(jax.random.fold_in(xkey, lvl),
                                          (B, h, w, IN_CH), jnp.float32))

    out = depth_features_forward(features, level_params, SIZE, tile_h=TILE_H)
    out = jax.block_until_ready(out)

    assert out.shape == (B, SIZE[0], SIZE[1], OUT_CH * NUM_LEVELS), out.shape

    ref = jax.block_until_ready(_depth_features_ref(features, level_params, SIZE))
    np.testing.assert_allclose(np.asarray(out), np.asarray(ref),
                               rtol=2e-3, atol=2e-3)

    print("KERNEL_OK")
</pallas_src>

<mosaic_0001>
module attributes {stable_mosaic.version = 11 : i64} {
  func.func @_upproj_kernel(%arg0: i32, %arg1: i32, %arg2: memref<1x8x16x8xf32, #tpu.memory_space<vmem>>, %arg3: memref<1x8x16x8xf32, #tpu.memory_space<vmem>>, %arg4: memref<1x8x16x8xf32, #tpu.memory_space<vmem>>, %arg5: memref<5x40x16xbf16, #tpu.memory_space<vmem>>, %arg6: memref<1x16xf32, #tpu.memory_space<vmem>>, %arg7: memref<72x8xbf16, #tpu.memory_space<vmem>>, %arg8: memref<1x8xf32, #tpu.memory_space<vmem>>, %arg9: memref<1x8x16x8xf32, #tpu.memory_space<vmem>>, %arg10: memref<24x48x8xbf16, #tpu.memory_space<vmem>>, %arg11: memref<14x16x40xbf16, #tpu.memory_space<vmem>>, %arg12: memref<160x16xf32, #tpu.memory_space<vmem>>, %arg13: memref<10x18x8xbf16, #tpu.memory_space<vmem>>) attributes {dimension_semantics = [#tpu.dimension_semantics<parallel>, #tpu.dimension_semantics<parallel>], iteration_bounds = array<i64: 2, 2>, scalar_prefetch = 0 : i64, scratch_operands = 4 : i64, tpu.core_type = #tpu.core_type<tc>, window_params = [{transform_indices = @transform_0, window_bounds = array<i64: 1, 8, 16, 8>}, {transform_indices = @transform_1, window_bounds = array<i64: 1, 8, 16, 8>}, {transform_indices = @transform_2, window_bounds = array<i64: 1, 8, 16, 8>}, {pipeline_mode = #tpu.pipeline_mode<synchronous>, transform_indices = @transform_3, window_bounds = array<i64: 5, 40, 16>}, {pipeline_mode = #tpu.pipeline_mode<synchronous>, transform_indices = @transform_4, window_bounds = array<i64: 1, 16>}, {pipeline_mode = #tpu.pipeline_mode<synchronous>, transform_indices = @transform_5, window_bounds = array<i64: 72, 8>}, {pipeline_mode = #tpu.pipeline_mode<synchronous>, transform_indices = @transform_6, window_bounds = array<i64: 1, 8>}, {transform_indices = @transform_7, window_bounds = array<i64: 1, 8, 16, 8>}]} {
    %cst = arith.constant 0.000000e+00 : bf16
    %0 = vector.broadcast %cst : bf16 to vector<24x16x8xbf16>
    %c0 = arith.constant 0 : index
    %c0_0 = arith.constant 0 : index
    %c0_1 = arith.constant 0 : index
    %1 = vector.load %arg10[%c0, %c0_0, %c0_1] : memref<24x48x8xbf16, #tpu.memory_space<vmem>>, vector<24x16x8xbf16>
    tpu.vector_store %arg10[%c0, %c0_0, %c0_1], %0 {strides = array<i32>} : memref<24x48x8xbf16, #tpu.memory_space<vmem>>, vector<24x16x8xbf16>,
    %cst_2 = arith.constant 0.000000e+00 : bf16
    %2 = vector.broadcast %cst_2 : bf16 to vector<24x16x8xbf16>
    %c0_3 = arith.constant 0 : index
    %c32 = arith.constant 32 : index
    %c0_4 = arith.constant 0 : index
    %3 = vector.load %arg10[%c0_3, %c32, %c0_4] : memref<24x48x8xbf16, #tpu.memory_space<vmem>>, vector<24x16x8xbf16>
    tpu.vector_store %arg10[%c0_3, %c32, %c0_4], %2 {strides = array<i32>} : memref<24x48x8xbf16, #tpu.memory_space<vmem>>, vector<24x16x8xbf16>,
    %c0_i32 = arith.constant 0 : i32
    %4 = arith.cmpi eq, %arg1, %c0_i32 : i32
    %5 = arith.extui %4 : i1 to i32
    %c0_i32_5 = arith.constant 0 : i32
    %6 = arith.cmpi ne, %5, %c0_i32_5 : i32
    scf.if %6 {
      %cst_110 = arith.constant 0.000000e+00 : bf16
      %118 = vector.broadcast %cst_110 : bf16 to vector<8x16x8xbf16>
      %c0_111 = arith.constant 0 : index
      %c16_112 = arith.constant 16 : index
      %c0_113 = arith.constant 0 : index
      %119 = vector.load %arg10[%c0_111, %c16_112, %c0_113] : memref<24x48x8xbf16, #tpu.memory_space<vmem>>, vector<8x16x8xbf16>
      tpu.vector_store %arg10[%c0_111, %c16_112, %c0_113], %118 {strides = array<i32>} : memref<24x48x8xbf16, #tpu.memory_space<vmem>>, vector<8x16x8xbf16>,
    } else {
    }
    %c0_i32_6 = arith.constant 0 : i32
    %7 = arith.cmpi sgt, %arg1, %c0_i32_6 : i32
    %8 = arith.extui %7 : i1 to i32
    %c0_i32_7 = arith.constant 0 : i32
    %9 = arith.cmpi ne, %8, %c0_i32_7 : i32
    scf.if %9 {
      %c0_110 = arith.constant 0 : index
      %c0_111 = arith.constant 0 : index
      %c0_112 = arith.constant 0 : index
      %c0_113 = arith.constant 0 : index
      %118 = vector.load %arg2[%c0_110, %c0_111, %c0_112, %c0_113] : memref<1x8x16x8xf32, #tpu.memory_space<vmem>>, vector<1x8x16x8xf32>
      %119 = vector.shape_cast %118 : vector<1x8x16x8xf32> to vector<8x16x8xf32>
      %120 = arith.truncf %119 : vector<8x16x8xf32> to vector<8x16x8xbf16>
      %c0_114 = arith.constant 0 : index
      %c16_115 = arith.constant 16 : index
      %c0_116 = arith.constant 0 : index
      %121 = vector.load %arg10[%c0_114, %c16_115, %c0_116] : memref<24x48x8xbf16, #tpu.memory_space<vmem>>, vector<8x16x8xbf16>
      tpu.vector_store %arg10[%c0_114, %c16_115, %c0_116], %120 {strides = array<i32>} : memref<24x48x8xbf16, #tpu.memory_space<vmem>>, vector<8x16x8xbf16>,
    } else {
    }
    %c0_8 = arith.constant 0 : index
    %c0_9 = arith.constant 0 : index
    %c0_10 = arith.constant 0 : index
    %c0_11 = arith.constant 0 : index
    %10 = vector.load %arg3[%c0_8, %c0_9, %c0_10, %c0_11] : memref<1x8x16x8xf32, #tpu.memory_space<vmem>>, vector<1x8x16x8xf32>
    %11 = vector.shape_cast %10 : vector<1x8x16x8xf32> to vector<8x16x8xf32>
    %12 = arith.truncf %11 : vector<8x16x8xf32> to vector<8x16x8xbf16>
    %c8 = arith.constant 8 : index
    %c16 = arith.constant 16 : index
    %c0_12 = arith.constant 0 : index
    %13 = vector.load %arg10[%c8, %c16, %c0_12] : memref<24x48x8xbf16, #tpu.memory_space<vmem>>, vector<8x16x8xbf16>
    tpu.vector_store %arg10[%c8, %c16, %c0_12], %12 {strides = array<i32>} : memref<24x48x8xbf16, #tpu.memory_space<vmem>>, vector<8x16x8xbf16>,
    %c1_i32 = arith.constant 1 : i32
    %14 = arith.cmpi eq, %arg1, %c1_i32 : i32
    %15 = arith.extui %14 : i1 to i32
    %c0_i32_13 = arith.constant 0 : i32
    %16 = arith.cmpi ne, %15, %c0_i32_13 : i32
    scf.if %16 {
      %cst_110 = arith.constant 0.000000e+00 : bf16
      %118 = vector.broadcast %cst_110 : bf16 to vector<8x16x8xbf16>
      %c16_111 = arith.constant 16 : index
      %c16_112 = arith.constant 16 : index
      %c0_113 = arith.constant 0 : index
      %119 = vector.load %arg10[%c16_111, %c16_112, %c0_113] : memref<24x48x8xbf16, #tpu.memory_space<vmem>>, vector<8x16x8xbf16>
      tpu.vector_store %arg10[%c16_111, %c16_112, %c0_113], %118 {strides = array<i32>} : memref<24x48x8xbf16, #tpu.memory_space<vmem>>, vector<8x16x8xbf16>,
    } else {
    }
    %c1_i32_14 = arith.constant 1 : i32
    %17 = arith.cmpi slt, %arg1, %c1_i32_14 : i32
    %18 = arith.extui %17 : i1 to i32
    %c0_i32_15 = arith.constant 0 : i32
    %19 = arith.cmpi ne, %18, %c0_i32_15 : i32
    scf.if %19 {
      %c0_110 = arith.constant 0 : index
      %c0_111 = arith.constant 0 : index
      %c0_112 = arith.constant 0 : index
      %c0_113 = arith.constant 0 : index
      %118 = vector.load %arg4[%c0_110, %c0_111, %c0_112, %c0_113] : memref<1x8x16x8xf32, #tpu.memory_space<vmem>>, vector<1x8x16x8xf32>
      %119 = vector.shape_cast %118 : vector<1x8x16x8xf32> to vector<8x16x8xf32>
      %120 = arith.truncf %119 : vector<8x16x8xf32> to vector<8x16x8xbf16>
      %c16_114 = arith.constant 16 : index
      %c16_115 = arith.constant 16 : index
      %c0_116 = arith.constant 0 : index
      %121 = vector.load %arg10[%c16_114, %c16_115, %c0_116] : memref<24x48x8xbf16, #tpu.memory_space<vmem>>, vector<8x16x8xbf16>
      tpu.vector_store %arg10[%c16_114, %c16_115, %c0_116], %120 {strides = array<i32>} : memref<24x48x8xbf16, #tpu.memory_space<vmem>>, vector<8x16x8xbf16>,
    } else {
    }
    %c5 = arith.constant 5 : index
    %c0_16 = arith.constant 0 : index
    %c0_17 = arith.constant 0 : index
    %20 = vector.load %arg10[%c5, %c0_16, %c0_17] : memref<24x48x8xbf16, #tpu.memory_space<vmem>>, vector<14x48x8xbf16>
    %21 = vector.extract_strided_slice %20 {offsets = [0, 14, 0], sizes = [14, 16, 8], strides = [1, 1, 1]} : vector<14x48x8xbf16> to vector<14x16x8xbf16>
    %22 = vector.extract_strided_slice %20 {offsets = [0, 15, 0], sizes = [14, 16, 8], strides = [1, 1, 1]} : vector<14x48x8xbf16> to vector<14x16x8xbf16>
    %23 = vector.extract_strided_slice %20 {offsets = [0, 16, 0], sizes = [14, 16, 8], strides = [1, 1, 1]} : vector<14x48x8xbf16> to vector<14x16x8xbf16>
    %24 = vector.extract_strided_slice %20 {offsets = [0, 17, 0], sizes = [14, 16, 8], strides = [1, 1, 1]} : vector<14x48x8xbf16> to vector<14x16x8xbf16>
    %25 = vector.extract_strided_slice %20 {offsets = [0, 18, 0], sizes = [14, 16, 8], strides = [1, 1, 1]} : vector<14x48x8xbf16> to vector<14x16x8xbf16>
    %26 = tpu.concatenate %21, %22, %23, %24, %25 in 2 : vector<14x16x8xbf16>, vector<14x16x8xbf16>, vector<14x16x8xbf16>, vector<14x16x8xbf16>, vector<14x16x8xbf16> -> vector<14x16x40xbf16>
    %c0_18 = arith.constant 0 : index
    %c0_19 = arith.constant 0 : index
    %c0_20 = arith.constant 0 : index
    %27 = vector.load %arg11[%c0_18, %c0_19, %c0_20] : memref<14x16x40xbf16, #tpu.memory_space<vmem>>, vector<14x16x40xbf16>
    tpu.vector_store %arg11[%c0_18, %c0_19, %c0_20], %26 {strides = array<i32>} : memref<14x16x40xbf16, #tpu.memory_space<vmem>>, vector<14x16x40xbf16>,
    %c0_21 = arith.constant 0 : index
    %c0_22 = arith.constant 0 : index
    %c0_23 = arith.constant 0 : index
    %28 = vector.load %arg11[%c0_21, %c0_22, %c0_23] : memref<14x16x40xbf16, #tpu.memory_space<vmem>>, vector<10x16x40xbf16>
    %29 = vector.shape_cast %28 : vector<10x16x40xbf16> to vector<160x40xbf16>
    %c0_24 = arith.constant 0 : index
    %c0_25 = arith.constant 0 : index
    %c0_26 = arith.constant 0 : index
    %30 = vector.load %arg5[%c0_24, %c0_25, %c0_26] : memref<5x40x16xbf16, #tpu.memory_space<vmem>>, vector<1x40x16xbf16>
    %31 = vector.shape_cast %30 : vector<1x40x16xbf16> to vector<40x16xbf16>
    %cst_27 = arith.constant dense<0.000000e+00> : vector<160x16xf32>
    %32 = tpu.matmul %29, %31, %cst_27 {dimension_numbers = #tpu.dot_dimension_numbers<[1], [0], [0], [1], [0, 0, 1, 1], [], []>} : vector<160x40xbf16>, vector<40x16xbf16>, vector<160x16xf32> -> vector<160x16xf32>
    %c0_28 = arith.constant 0 : index
    %c0_29 = arith.constant 0 : index
    %33 = vector.load %arg12[%c0_28, %c0_29] : memref<160x16xf32, #tpu.memory_space<vmem>>, vector<160x16xf32>
    tpu.vector_store %arg12[%c0_28, %c0_29], %32 {strides = array<i32>} : memref<160x16xf32, #tpu.memory_space<vmem>>, vector<160x16xf32>,
    %c1 = arith.constant 1 : index
    %c0_30 = arith.constant 0 : index
    %c0_31 = arith.constant 0 : index
    %34 = vector.load %arg11[%c1, %c0_30, %c0_31] : memref<14x16x40xbf16, #tpu.memory_space<vmem>>, vector<10x16x40xbf16>
    %35 = vector.shape_cast %34 : vector<10x16x40xbf16> to vector<160x40xbf16>
    %c1_32 = arith.constant 1 : index
    %c0_33 = arith.constant 0 : index
    %c0_34 = arith.constant 0 : index
    %36 = vector.load %arg5[%c1_32, %c0_33, %c0_34] : memref<5x40x16xbf16, #tpu.memory_space<vmem>>, vector<1x40x16xbf16>
    %37 = vector.shape_cast %36 : vector<1x40x16xbf16> to vector<40x16xbf16>
    %cst_35 = arith.constant dense<0.000000e+00> : vector<160x16xf32>
    %38 = tpu.matmul %35, %37, %cst_35 {dimension_numbers = #tpu.dot_dimension_numbers<[1], [0], [0], [1], [0, 0, 1, 1], [], []>} : vector<160x40xbf16>, vector<40x16xbf16>, vector<160x16xf32> -> vector<160x16xf32>
    %c0_36 = arith.constant 0 : index
    %c0_37 = arith.constant 0 : index
    %39 = vector.load %arg12[%c0_36, %c0_37] : memref<160x16xf32, #tpu.memory_space<vmem>>, vector<160x16xf32>
    %40 = arith.addf %39, %38 : vector<160x16xf32>
    %c0_38 = arith.constant 0 : index
    %c0_39 = arith.constant 0 : index
    %41 = vector.load %arg12[%c0_38, %c0_39] : memref<160x16xf32, #tpu.memory_space<vmem>>, vector<160x16xf32>
    tpu.vector_store %arg12[%c0_38, %c0_39], %40 {strides = array<i32>} : memref<160x16xf32, #tpu.memory_space<vmem>>, vector<160x16xf32>,
    %c2 = arith.constant 2 : index
    %c0_40 = arith.constant 0 : index
    %c0_41 = arith.constant 0 : index
    %42 = vector.load %arg11[%c2, %c0_40, %c0_41] : memref<14x16x40xbf16, #tpu.memory_space<vmem>>, vector<10x16x40xbf16>
    %43 = vector.shape_cast %42 : vector<10x16x40xbf16> to vector<160x40xbf16>
    %c2_42 = arith.constant 2 : index
    %c0_43 = arith.constant 0 : index
    %c0_44 = arith.constant 0 : index
    %44 = vector.load %arg5[%c2_42, %c0_43, %c0_44] : memref<5x40x16xbf16, #tpu.memory_space<vmem>>, vector<1x40x16xbf16>
    %45 = vector.shape_cast %44 : vector<1x40x16xbf16> to vector<40x16xbf16>
    %cst_45 = arith.constant dense<0.000000e+00> : vector<160x16xf32>
    %46 = tpu.matmul %43, %45, %cst_45 {dimension_numbers = #tpu.dot_dimension_numbers<[1], [0], [0], [1], [0, 0, 1, 1], [], []>} : vector<160x40xbf16>, vector<40x16xbf16>, vector<160x16xf32> -> vector<160x16xf32>
    %c0_46 = arith.constant 0 : index
    %c0_47 = arith.constant 0 : index
    %47 = vector.load %arg12[%c0_46, %c0_47] : memref<160x16xf32, #tpu.memory_space<vmem>>, vector<160x16xf32>
    %48 = arith.addf %47, %46 : vector<160x16xf32>
    %c0_48 = arith.constant 0 : index
    %c0_49 = arith.constant 0 : index
    %49 = vector.load %arg12[%c0_48, %c0_49] : memref<160x16xf32, #tpu.memory_space<vmem>>, vector<160x16xf32>
    tpu.vector_store %arg12[%c0_48, %c0_49], %48 {strides = array<i32>} : memref<160x16xf32, #tpu.memory_space<vmem>>, vector<160x16xf32>,
    %c3 = arith.constant 3 : index
    %c0_50 = arith.constant 0 : index
    %c0_51 = arith.constant 0 : index
    %50 = vector.load %arg11[%c3, %c0_50, %c0_51] : memref<14x16x40xbf16, #tpu.memory_space<vmem>>, vector<10x16x40xbf16>
    %51 = vector.shape_cast %50 : vector<10x16x40xbf16> to vector<160x40xbf16>
    %c3_52 = arith.constant 3 : index
    %c0_53 = arith.constant 0 : index
    %c0_54 = arith.constant 0 : index
    %52 = vector.load %arg5[%c3_52, %c0_53, %c0_54] : memref<5x40x16xbf16, #tpu.memory_space<vmem>>, vector<1x40x16xbf16>
    %53 = vector.shape_cast %52 : vector<1x40x16xbf16> to vector<40x16xbf16>
    %cst_55 = arith.constant dense<0.000000e+00> : vector<160x16xf32>
    %54 = tpu.matmul %51, %53, %cst_55 {dimension_numbers = #tpu.dot_dimension_numbers<[1], [0], [0], [1], [0, 0, 1, 1], [], []>} : vector<160x40xbf16>, vector<40x16xbf16>, vector<160x16xf32> -> vector<160x16xf32>
    %c0_56 = arith.constant 0 : index
    %c0_57 = arith.constant 0 : index
    %55 = vector.load %arg12[%c0_56, %c0_57] : memref<160x16xf32, #tpu.memory_space<vmem>>, vector<160x16xf32>
    %56 = arith.addf %55, %54 : vector<160x16xf32>
    %c0_58 = arith.constant 0 : index
    %c0_59 = arith.constant 0 : index
    %57 = vector.load %arg12[%c0_58, %c0_59] : memref<160x16xf32, #tpu.memory_space<vmem>>, vector<160x16xf32>
    tpu.vector_store %arg12[%c0_58, %c0_59], %56 {strides = array<i32>} : memref<160x16xf32, #tpu.memory_space<vmem>>, vector<160x16xf32>,
    %c4 = arith.constant 4 : index
    %c0_60 = arith.constant 0 : index
    %c0_61 = arith.constant 0 : index
    %58 = vector.load %arg11[%c4, %c0_60, %c0_61] : memref<14x16x40xbf16, #tpu.memory_space<vmem>>, vector<10x16x40xbf16>
    %59 = vector.shape_cast %58 : vector<10x16x40xbf16> to vector<160x40xbf16>
    %c4_62 = arith.constant 4 : index
    %c0_63 = arith.constant 0 : index
    %c0_64 = arith.constant 0 : index
    %60 = vector.load %arg5[%c4_62, %c0_63, %c0_64] : memref<5x40x16xbf16, #tpu.memory_space<vmem>>, vector<1x40x16xbf16>
    %61 = vector.shape_cast %60 : vector<1x40x16xbf16> to vector<40x16xbf16>
    %cst_65 = arith.constant dense<0.000000e+00> : vector<160x16xf32>
    %62 = tpu.matmul %59, %61, %cst_65 {dimension_numbers = #tpu.dot_dimension_numbers<[1], [0], [0], [1], [0, 0, 1, 1], [], []>} : vector<160x40xbf16>, vector<40x16xbf16>, vector<160x16xf32> -> vector<160x16xf32>
    %c0_66 = arith.constant 0 : index
    %c0_67 = arith.constant 0 : index
    %63 = vector.load %arg12[%c0_66, %c0_67] : memref<160x16xf32, #tpu.memory_space<vmem>>, vector<160x16xf32>
    %64 = arith.addf %63, %62 : vector<160x16xf32>
    %c0_68 = arith.constant 0 : index
    %c0_69 = arith.constant 0 : index
    %65 = vector.load %arg12[%c0_68, %c0_69] : memref<160x16xf32, #tpu.memory_space<vmem>>, vector<160x16xf32>
    tpu.vector_store %arg12[%c0_68, %c0_69], %64 {strides = array<i32>} : memref<160x16xf32, #tpu.memory_space<vmem>>, vector<160x16xf32>,
    %c0_70 = arith.constant 0 : index
    %c0_71 = arith.constant 0 : index
    %66 = vector.load %arg6[%c0_70, %c0_71] : memref<1x16xf32, #tpu.memory_space<vmem>>, vector<1x16xf32>
    %c0_72 = arith.constant 0 : index
    %c0_73 = arith.constant 0 : index
    %67 = vector.load %arg12[%c0_72, %c0_73] : memref<160x16xf32, #tpu.memory_space<vmem>>, vector<160x16xf32>
    %68 = vector.extract_strided_slice %67 {offsets = [0, 0], sizes = [160, 8], strides = [1, 1]} : vector<160x16xf32> to vector<160x8xf32>
    %69 = vector.extract_strided_slice %66 {offsets = [0, 0], sizes = [1, 8], strides = [1, 1]} : vector<1x16xf32> to vector<1x8xf32>
    %70 = vector.broadcast %69 : vector<1x8xf32> to vector<160x8xf32>
    %71 = arith.addf %68, %70 : vector<160x8xf32>
    %cst_74 = arith.constant 0.000000e+00 : f32
    %72 = vector.broadcast %cst_74 : f32 to vector<160x8xf32>
    %73 = arith.maximumf %71, %72 : vector<160x8xf32>
    %cst_75 = arith.constant 0.000000e+00 : bf16
    %74 = vector.broadcast %cst_75 : bf16 to vector<10x1x8xbf16>
    %c0_76 = arith.constant 0 : index
    %c0_77 = arith.constant 0 : index
    %c0_78 = arith.constant 0 : index
    %75 = vector.load %arg13[%c0_76, %c0_77, %c0_78] : memref<10x18x8xbf16, #tpu.memory_space<vmem>>, vector<10x1x8xbf16>
    tpu.vector_store %arg13[%c0_76, %c0_77, %c0_78], %74 {strides = array<i32>} : memref<10x18x8xbf16, #tpu.memory_space<vmem>>, vector<10x1x8xbf16>,
    %cst_79 = arith.constant 0.000000e+00 : bf16
    %76 = vector.broadcast %cst_79 : bf16 to vector<10x1x8xbf16>
    %c0_80 = arith.constant 0 : index
    %c17 = arith.constant 17 : index
    %c0_81 = arith.constant 0 : index
    %77 = vector.load %arg13[%c0_80, %c17, %c0_81] : memref<10x18x8xbf16, #tpu.memory_space<vmem>>, vector<10x1x8xbf16>
    tpu.vector_store %arg13[%c0_80, %c17, %c0_81], %76 {strides = array<i32>} : memref<10x18x8xbf16, #tpu.memory_space<vmem>>, vector<10x1x8xbf16>,
    %78 = vector.shape_cast %73 : vector<160x8xf32> to vector<10x16x8xf32>
    %79 = arith.truncf %78 : vector<10x16x8xf32> to vector<10x16x8xbf16>
    %c0_82 = arith.constant 0 : index
    %c1_83 = arith.constant 1 : index
    %c0_84 = arith.constant 0 : index
    %80 = vector.load %arg13[%c0_82, %c1_83, %c0_84] : memref<10x18x8xbf16, #tpu.memory_space<vmem>>, vector<10x16x8xbf16>
    tpu.vector_store %arg13[%c0_82, %c1_83, %c0_84], %79 {strides = array<i32>} : memref<10x18x8xbf16, #tpu.memory_space<vmem>>, vector<10x16x8xbf16>,
    %c0_i32_85 = arith.constant 0 : i32
    %81 = arith.cmpi eq, %arg1, %c0_i32_85 : i32
    %82 = arith.extui %81 : i1 to i32
    %c0_i32_86 = arith.constant 0 : i32
    %83 = arith.cmpi ne, %82, %c0_i32_86 : i32
    scf.if %83 {
      %cst_110 = arith.constant 0.000000e+00 : bf16
      %118 = vector.broadcast %cst_110 : bf16 to vector<1x18x8xbf16>
      %c0_111 = arith.constant 0 : index
      %c0_112 = arith.constant 0 : index
      %c0_113 = arith.constant 0 : index
      %119 = vector.load %arg13[%c0_111, %c0_112, %c0_113] : memref<10x18x8xbf16, #tpu.memory_space<vmem>>, vector<1x18x8xbf16>
      tpu.vector_store %arg13[%c0_111, %c0_112, %c0_113], %118 {strides = array<i32>} : memref<10x18x8xbf16, #tpu.memory_space<vmem>>, vector<1x18x8xbf16>,
    } else {
    }
    %c1_i32_87 = arith.constant 1 : i32
    %84 = arith.cmpi eq, %arg1, %c1_i32_87 : i32
    %85 = arith.extui %84 : i1 to i32
    %c0_i32_88 = arith.constant 0 : i32
    %86 = arith.cmpi ne, %85, %c0_i32_88 : i32
    scf.if %86 {
      %cst_110 = arith.constant 0.000000e+00 : bf16
      %118 = vector.broadcast %cst_110 : bf16 to vector<1x18x8xbf16>
      %c9 = arith.constant 9 : index
      %c0_111 = arith.constant 0 : index
      %c0_112 = arith.constant 0 : index
      %119 = vector.load %arg13[%c9, %c0_111, %c0_112] : memref<10x18x8xbf16, #tpu.memory_space<vmem>>, vector<1x18x8xbf16>
      tpu.vector_store %arg13[%c9, %c0_111, %c0_112], %118 {strides = array<i32>} : memref<10x18x8xbf16, #tpu.memory_space<vmem>>, vector<1x18x8xbf16>,
    } else {
    }
    %c0_89 = arith.constant 0 : index
    %c0_90 = arith.constant 0 : index
    %c0_91 = arith.constant 0 : index
    %87 = vector.load %arg13[%c0_89, %c0_90, %c0_91] : memref<10x18x8xbf16, #tpu.memory_space<vmem>>, vector<8x18x8xbf16>
    %88 = vector.extract_strided_slice %87 {offsets = [0, 0, 0], sizes = [8, 16, 8], strides = [1, 1, 1]} : vector<8x18x8xbf16> to vector<8x16x8xbf16>
    %89 = vector.extract_strided_slice %87 {offsets = [0, 1, 0], sizes = [8, 16, 8], strides = [1, 1, 1]} : vector<8x18x8xbf16> to vector<8x16x8xbf16>
    %90 = vector.extract_strided_slice %87 {offsets = [0, 2, 0], sizes = [8, 16, 8], strides = [1, 1, 1]} : vector<8x18x8xbf16> to vector<8x16x8xbf16>
    %c1_92 = arith.constant 1 : index
    %c0_93 = arith.constant 0 : index
    %c0_94 = arith.constant 0 : index
    %91 = vector.load %arg13[%c1_92, %c0_93, %c0_94] : memref<10x18x8xbf16, #tpu.memory_space<vmem>>, vector<8x18x8xbf16>
    %92 = vector.extract_strided_slice %91 {offsets = [0, 0, 0], sizes = [8, 16, 8], strides = [1, 1, 1]} : vector<8x18x8xbf16> to vector<8x16x8xbf16>
    %93 = vector.extract_strided_slice %91 {offsets = [0, 1, 0], sizes = [8, 16, 8], strides = [1, 1, 1]} : vector<8x18x8xbf16> to vector<8x16x8xbf16>
    %94 = vector.extract_strided_slice %91 {offsets = [0, 2, 0], sizes = [8, 16, 8], strides = [1, 1, 1]} : vector<8x18x8xbf16> to vector<8x16x8xbf16>
    %c2_95 = arith.constant 2 : index
    %c0_96 = arith.constant 0 : index
    %c0_97 = arith.constant 0 : index
    %95 = vector.load %arg13[%c2_95, %c0_96, %c0_97] : memref<10x18x8xbf16, #tpu.memory_space<vmem>>, vector<8x18x8xbf16>
    %96 = vector.extract_strided_slice %95 {offsets = [0, 0, 0], sizes = [8, 16, 8], strides = [1, 1, 1]} : vector<8x18x8xbf16> to vector<8x16x8xbf16>
    %97 = vector.extract_strided_slice %95 {offsets = [0, 1, 0], sizes = [8, 16, 8], strides = [1, 1, 1]} : vector<8x18x8xbf16> to vector<8x16x8xbf16>
    %98 = vector.extract_strided_slice %95 {offsets = [0, 2, 0], sizes = [8, 16, 8], strides = [1, 1, 1]} : vector<8x18x8xbf16> to vector<8x16x8xbf16>
    %99 = tpu.concatenate %88, %89, %90, %92, %93, %94, %96, %97, %98 in 2 : vector<8x16x8xbf16>, vector<8x16x8xbf16>, vector<8x16x8xbf16>, vector<8x16x8xbf16>, vector<8x16x8xbf16>, vector<8x16x8xbf16>, vector<8x16x8xbf16>, vector<8x16x8xbf16>, vector<8x16x8xbf16> -> vector<8x16x72xbf16>
    %100 = vector.shape_cast %99 : vector<8x16x72xbf16> to vector<128x72xbf16>
    %c0_98 = arith.constant 0 : index
    %c0_99 = arith.constant 0 : index
    %101 = vector.load %arg7[%c0_98, %c0_99] : memref<72x8xbf16, #tpu.memory_space<vmem>>, vector<72x8xbf16>
    %cst_100 = arith.constant dense<0.000000e+00> : vector<128x8xf32>
    %102 = tpu.matmul %100, %101, %cst_100 {dimension_numbers = #tpu.dot_dimension_numbers<[1], [0], [0], [1], [0, 0, 1, 1], [], []>} : vector<128x72xbf16>, vector<72x8xbf16>, vector<128x8xf32> -> vector<128x8xf32>
    %c0_101 = arith.constant 0 : index
    %c0_102 = arith.constant 0 : index
    %103 = vector.load %arg8[%c0_101, %c0_102] : memref<1x8xf32, #tpu.memory_space<vmem>>, vector<1x8xf32>
    %104 = vector.broadcast %103 : vector<1x8xf32> to vector<128x8xf32>
    %105 = arith.addf %102, %104 : vector<128x8xf32>
    %c16_103 = arith.constant 16 : index
    %c0_104 = arith.constant 0 : index
    %106 = vector.load %arg12[%c16_103, %c0_104] : memref<160x16xf32, #tpu.memory_space<vmem>>, vector<128x16xf32>
    %107 = vector.extract_strided_slice %106 {offsets = [0, 8], sizes = [128, 8], strides = [1, 1]} : vector<128x16xf32> to vector<128x8xf32>
    %108 = vector.extract_strided_slice %66 {offsets = [0, 8], sizes = [1, 8], strides = [1, 1]} : vector<1x16xf32> to vector<1x8xf32>
    %109 = vector.broadcast %108 : vector<1x8xf32> to vector<128x8xf32>
    %110 = arith.addf %107, %109 : vector<128x8xf32>
    %111 = arith.addf %105, %110 : vector<128x8xf32>
    %cst_105 = arith.constant 0.000000e+00 : f32
    %112 = vector.broadcast %cst_105 : f32 to vector<128x8xf32>
    %113 = arith.maximumf %111, %112 : vector<128x8xf32>
    %114 = vector.shape_cast %113 : vector<128x8xf32> to vector<8x16x8xf32>
    %c0_106 = arith.constant 0 : index
    %c0_107 = arith.constant 0 : index
    %c0_108 = arith.constant 0 : index
    %c0_109 = arith.constant 0 : index
    %115 = vector.load %arg9[%c0_106, %c0_107, %c0_108, %c0_109] : memref<1x8x16x8xf32, #tpu.memory_space<vmem>>, vector<1x8x16x8xf32>
    %116 = vector.shape_cast %115 : vector<1x8x16x8xf32> to vector<8x16x8xf32>
    %117 = vector.shape_cast %114 : vector<8x16x8xf32> to vector<1x8x16x8xf32>
    tpu.vector_store %arg9[%c0_106, %c0_107, %c0_108, %c0_109], %117 {strides = array<i32>} : memref<1x8x16x8xf32, #tpu.memory_space<vmem>>, vector<1x8x16x8xf32>,
    return
  }
  func.func @transform_0(%arg0: i32, %arg1: i32) -> (i32, i32, i32, i32) {
    %c1_i32 = arith.constant 1 : i32
    %0 = arith.muli %arg1, %c1_i32 : i32
    %c1_i32_0 = arith.constant 1 : i32
    %1 = arith.subi %0, %c1_i32_0 : i32
    %c0_i32 = arith.constant 0 : i32
    %2 = arith.maxsi %1, %c0_i32 : i32
    %c0_i32_1 = arith.constant 0 : i32
    %c0_i32_2 = arith.constant 0 : i32
    %c0_i32_3 = arith.constant 0 : i32
    return %arg0, %2, %c0_i32_1, %c0_i32_2 : i32, i32, i32, i32
  }
  func.func @transform_1(%arg0: i32, %arg1: i32) -> (i32, i32, i32, i32) {
    %c0_i32 = arith.constant 0 : i32
    %c0_i32_0 = arith.constant 0 : i32
    %c0_i32_1 = arith.constant 0 : i32
    return %arg0, %arg1, %c0_i32, %c0_i32_0 : i32, i32, i32, i32
  }
  func.func @transform_2(%arg0: i32, %arg1: i32) -> (i32, i32, i32, i32) {
    %c1_i32 = arith.constant 1 : i32
    %0 = arith.addi %arg1, %c1_i32 : i32
    %c1_i32_0 = arith.constant 1 : i32
    %1 = arith.muli %0, %c1_i32_0 : i32
    %c1_i32_1 = arith.constant 1 : i32
    %2 = arith.minsi %1, %c1_i32_1 : i32
    %c0_i32 = arith.constant 0 : i32
    %c0_i32_2 = arith.constant 0 : i32
    %c0_i32_3 = arith.constant 0 : i32
    return %arg0, %2, %c0_i32, %c0_i32_2 : i32, i32, i32, i32
  }
  func.func @transform_3(%arg0: i32, %arg1: i32) -> (i32, i32, i32) {
    %c0_i32 = arith.constant 0 : i32
    %c0_i32_0 = arith.constant 0 : i32
    %c0_i32_1 = arith.constant 0 : i32
    %c0_i32_2 = arith.constant 0 : i32
    return %c0_i32, %c0_i32_0, %c0_i32_1 : i32, i32, i32
  }
  func.func @transform_4(%arg0: i32, %arg1: i32) -> (i32, i32) {
    %c0_i32 = arith.constant 0 : i32
    %c0_i32_0 = arith.constant 0 : i32
    %c0_i32_1 = arith.constant 0 : i32
    return %c0_i32, %c0_i32_0 : i32, i32
  }
  func.func @transform_5(%arg0: i32, %arg1: i32) -> (i32, i32) {
    %c0_i32 = arith.constant 0 : i32
    %c0_i32_0 = arith.constant 0 : i32
    %c0_i32_1 = arith.constant 0 : i32
    return %c0_i32, %c0_i32_0 : i32, i32
  }
  func.func @transform_6(%arg0: i32, %arg1: i32) -> (i32, i32) {
    %c0_i32 = arith.constant 0 : i32
    %c0_i32_0 = arith.constant 0 : i32
    %c0_i32_1 = arith.constant 0 : i32
    return %c0_i32, %c0_i32_0 : i32, i32
  }
  func.func @transform_7(%arg0: i32, %arg1: i32) -> (i32, i32, i32, i32) {
    %c0_i32 = arith.constant 0 : i32
    %c0_i32_0 = arith.constant 0 : i32
    %c0_i32_1 = arith.constant 0 : i32
    return %arg0, %arg1, %c0_i32, %c0_i32_0 : i32, i32, i32, i32
  }
}

</mosaic_0001>

<llo_original>
// kernel: tpu_custom_call.1
$region0: #{tpu_custom_call.1}
  #allocation0 [shape = 'u32[]', space=smem, size = 0x4, offset = 0x4, fixed_abs, tag = 'smem constant byte address 0x4 - core index']
  #allocation1 [shape = 'u32[144,128]{1,0:T(1,128)}', space=vmem, size = 0x12000, scoped, tag = 'internal scratch']
  #allocation2 [shape = 'bf16[24,48,8]{2,1,0:T(16,128)(2,1)}', space=vmem, size = 0x48000, scoped, tag = 'scratch operand']
  #allocation3 [shape = 'bf16[14,16,40]{2,1,0:T(16,128)(2,1)}', space=vmem, size = 0xe000, scoped, tag = 'scratch operand']
  #allocation4 [shape = 'f32[160,16]{1,0:T(8,128)}', space=vmem, size = 0x14000, scoped, tag = 'scratch operand']
  #allocation5 [shape = 'bf16[10,18,8]{2,1,0:T(8,128)(2,1)}', space=vmem, size = 0xf000, scoped, tag = 'scratch operand']
  %s0 = inlined_call_operand.vmem [shape: f32[2,16,16,8], index: 0, kind: input, shape index: {}]
  %s1 = inlined_call_operand.vmem [shape: f32[2,16,16,8], index: 1, kind: input, shape index: {}]
  %s2 = inlined_call_operand.vmem [shape: f32[2,16,16,8], index: 2, kind: input, shape index: {}]
  %s3 = inlined_call_operand.vmem [shape: bf16[5,40,16], index: 3, kind: input, shape index: {}]
  %s4 = inlined_call_operand.vmem [shape: f32[1,16], index: 4, kind: input, shape index: {}]
  %s5 = inlined_call_operand.vmem [shape: bf16[72,8], index: 5, kind: input, shape index: {}]
  %s6 = inlined_call_operand.vmem [shape: f32[1,8], index: 6, kind: input, shape index: {}]
  %s7 = inlined_call_operand.vmem [shape: f32[2,16,16,8], index: 7, kind: output, shape index: {}]
  %s8 = sld [smem:[#allocation0]]
  $region85: #{tpu_custom_call.1} parent=0
    _
  %s10 = ssub.s32 1, %s8
  %s11 = scalar_select 0, %s10, %s8
  loop: start=0, step=1, limit=6
  $region2: #{tpu_custom_call.1} parent=0 // loop_pre_header
    _
  $region3: #{tpu_custom_call.1} parent=0 // loop_header
    %s13 = sphi 0, %s17
    %p14 = scmp.ge.s32.totalorder %s13, 6
    %s20 = sphi 0, %s32
    %s21 = sphi 0, %s28
    %s22 = sphi 0, %s20
    %s23 = sphi 0, %s21
    %s24 = sphi 0, %s22
    %s25 = sphi 0, %s23
    %s43 = sphi 0, %s45
    %s46 = sphi 0, %s43
    %s47 = sphi 0, %s46
    %s63 = sphi 0, %s47
    %s71 = sphi 0, %s73
    %s74 = sphi 0, %s71
    %s75 = sphi 0, %s74
    %s91 = sphi 0, %s75
    %s105 = sphi 0, %s107
    %s108 = sphi 0, %s105
    %s109 = sphi 0, %s108
    %s125 = sphi 0, %s109
    %s129 = sphi 0, %s129
    %s131 = sphi 0, %s129
    %s132 = sphi 0, %s131
    %s146 = sphi 0, %s132
    %s150 = sphi 0, %s150
    %s152 = sphi 0, %s150
    %s153 = sphi 0, %s152
    %s167 = sphi 0, %s153
    %s171 = sphi 0, %s171
    %s173 = sphi 0, %s171
    %s174 = sphi 0, %s173
    %s188 = sphi 0, %s174
    %s192 = sphi 0, %s192
    %s194 = sphi 0, %s192
    %s195 = sphi 0, %s194
    %s209 = sphi 0, %s195
    %s217 = sphi 0, %s219
    %s220 = sphi 0, %s217
    %s221 = sphi 0, %s220
    %s237 = sphi 0, %s221
  $region4: #{tpu_custom_call.1} parent=0 // loop_header_branch
    %16 = sbr.rel (%p14) target = $region8
  $region5: #{tpu_custom_call.1} parent=0 // loop_body
    %s18 = ssub.s32 %s13, 1
    %s19 = ssub.s32 %s13, 2
    %s26 = sadd.s32 1, %s21
    %p27 = scmp.ge.s32.totalorder %s26, 2
    %s28 = scalar_select %p27, 0, %s26
    %s29 = sadd.s32 1, %s20
    %s30 = scalar_select %p27, %s29, %s20
    %p31 = scmp.ge.s32.totalorder %s30, 2
    %s32 = scalar_select %p31, 0, %s30
    %s33 = ssub.s32 %s21, 1
    %p34 = scmp.gt.s32.totalorder %s33, 0
    %s35 = scalar_select %p34, %s33, 0
    %s36 = ssub.s32 %s28, 1
    %p37 = scmp.gt.s32.totalorder %s36, 0
    %s38 = scalar_select %p37, %s36, 0
    %s39 = ssub.s32 %s20, %s32
    %s40 = ssub.s32 %s35, %s38
    %s41 = sor.u32 %s39, %s40
    %p42 = scmp.eq.s32.totalorder %s41, 0
    %s44 = sadd.s32 %s43, 1
    %s45 = scalar_select %p42, %s43, %s44
    %p48 = pneg %p42
    %p49 = scmp.eq.s32.totalorder %s13, 3
    %p50 = por %p48, %p49
    %p51 = scmp.ne.s32.totalorder %s43, %s46
    %p52 = scmp.eq.s32.totalorder %s13, 0
    %p53 = por %p51, %p52
    %p54 = scmp.ne.s32.totalorder %s43, %s46
    %p55 = scmp.eq.s32.totalorder %s18, 3
    %p56 = por %p54, %p55
    %p57 = scmp.ne.s32.totalorder %s46, %s47
    %p58 = scmp.eq.s32.totalorder %s18, 0
    %p59 = por %p57, %p58
    %p60 = scmp.ne.s32.totalorder %s46, %s47
    %p61 = scmp.eq.s32.totalorder %s19, 3
    %p62 = por %p60, %p61
    %p64 = scmp.ne.s32.totalorder %s47, %s63
    %p65 = scmp.eq.s32.totalorder %s19, 0
    %p66 = por %p64, %p65
    %s67 = ssub.s32 %s20, %s32
    %s68 = ssub.s32 %s21, %s28
    %s69 = sor.u32 %s67, %s68
    %p70 = scmp.eq.s32.totalorder %s69, 0
    %s72 = sadd.s32 %s71, 1
    %s73 = scalar_select %p70, %s71, %s72
    %p76 = pneg %p70
    %p77 = scmp.eq.s32.totalorder %s13, 3
    %p78 = por %p76, %p77
    %p79 = scmp.ne.s32.totalorder %s71, %s74
    %p80 = scmp.eq.s32.totalorder %s13, 0
    %p81 = por %p79, %p80
    %p82 = scmp.ne.s32.totalorder %s71, %s74
    %p83 = scmp.eq.s32.totalorder %s18, 3
    %p84 = por %p82, %p83
    %p85 = scmp.ne.s32.totalorder %s74, %s75
    %p86 = scmp.eq.s32.totalorder %s18, 0
    %p87 = por %p85, %p86
    %p88 = scmp.ne.s32.totalorder %s74, %s75
    %p89 = scmp.eq.s32.totalorder %s19, 3
    %p90 = por %p88, %p89
    %p92 = scmp.ne.s32.totalorder %s75, %s91
    %p93 = scmp.eq.s32.totalorder %s19, 0
    %p94 = por %p92, %p93
    %s95 = sadd.s32 %s21, 1
    %p96 = scmp.lt.s32.totalorder %s95, 1
    %s97 = scalar_select %p96, %s95, 1
    %s98 = sadd.s32 %s28, 1
    %p99 = scmp.lt.s32.totalorder %s98, 1
    %s100 = scalar_select %p99, %s98, 1
    %s101 = ssub.s32 %s20, %s32
    %s102 = ssub.s32 %s97, %s100
    %s103 = sor.u32 %s101, %s102
    %p104 = scmp.eq.s32.totalorder %s103, 0
    %s106 = sadd.s32 %s105, 1
    %s107 = scalar_select %p104, %s105, %s106
    %p110 = pneg %p104
    %p111 = scmp.eq.s32.totalorder %s13, 3
    %p112 = por %p110, %p111
    %p113 = scmp.ne.s32.totalorder %s105, %s108
    %p114 = scmp.eq.s32.totalorder %s13, 0
    %p115 = por %p113, %p114
    %p116 = scmp.ne.s32.totalorder %s105, %s108
    %p117 = scmp.eq.s32.totalorder %s18, 3
    %p118 = por %p116, %p117
    %p119 = scmp.ne.s32.totalorder %s108, %s109
    %p120 = scmp.eq.s32.totalorder %s18, 0
    %p121 = por %p119, %p120
    %p122 = scmp.ne.s32.totalorder %s108, %s109
    %p123 = scmp.eq.s32.totalorder %s19, 3
    %p124 = por %p122, %p123
    %p126 = scmp.ne.s32.totalorder %s109, %s125
    %p127 = scmp.eq.s32.totalorder %s19, 0
    %p128 = por %p126, %p127
    %s130 = sadd.s32 %s129, 1
    %p133 = scmp.eq.s32.totalorder %s13, 3
    %p134 = scmp.ne.s32.totalorder %s129, %s131
    %p135 = scmp.eq.s32.totalorder %s13, 0
    %p136 = por %p134, %p135
    %p137 = scmp.ne.s32.totalorder %s129, %s131
    %p138 = scmp.eq.s32.totalorder %s18, 3
    %p139 = por %p137, %p138
    %p140 = scmp.ne.s32.totalorder %s131, %s132
    %p141 = scmp.eq.s32.totalorder %s18, 0
    %p142 = por %p140, %p141
    %p143 = scmp.ne.s32.totalorder %s131, %s132
    %p144 = scmp.eq.s32.totalorder %s19, 3
    %p145 = por %p143, %p144
    %p147 = scmp.ne.s32.totalorder %s132, %s146
    %p148 = scmp.eq.s32.totalorder %s19, 0
    %p149 = por %p147, %p148
    %s151 = sadd.s32 %s150, 1
    %p154 = scmp.eq.s32.totalorder %s13, 3
    %p155 = scmp.ne.s32.totalorder %s150, %s152
    %p156 = scmp.eq.s32.totalorder %s13, 0
    %p157 = por %p155, %p156
    %p158 = scmp.ne.s32.totalorder %s150, %s152
    %p159 = scmp.eq.s32.totalorder %s18, 3
    %p160 = por %p158, %p159
    %p161 = scmp.ne.s32.totalorder %s152, %s153
    %p162 = scmp.eq.s32.totalorder %s18, 0
    %p163 = por %p161, %p162
    %p164 = scmp.ne.s32.totalorder %s152, %s153
    %p165 = scmp.eq.s32.totalorder %s19, 3
    %p166 = por %p164, %p165
    %p168 = scmp.ne.s32.totalorder %s153, %s167
    %p169 = scmp.eq.s32.totalorder %s19, 0
    %p170 = por %p168, %p169
    %s172 = sadd.s32 %s171, 1
    %p175 = scmp.eq.s32.totalorder %s13, 3
    %p176 = scmp.ne.s32.totalorder %s171, %s173
    %p177 = scmp.eq.s32.totalorder %s13, 0
    %p178 = por %p176, %p177
    %p179 = scmp.ne.s32.totalorder %s171, %s173
    %p180 = scmp.eq.s32.totalorder %s18, 3
    %p181 = por %p179, %p180
    %p182 = scmp.ne.s32.totalorder %s173, %s174
    %p183 = scmp.eq.s32.totalorder %s18, 0
    %p184 = por %p182, %p183
    %p185 = scmp.ne.s32.totalorder %s173, %s174
    %p186 = scmp.eq.s32.totalorder %s19, 3
    %p187 = por %p185, %p186
    %p189 = scmp.ne.s32.totalorder %s174, %s188
    %p190 = scmp.eq.s32.totalorder %s19, 0
    %p191 = por %p189, %p190
    %s193 = sadd.s32 %s192, 1
    %p196 = scmp.eq.s32.totalorder %s13, 3
    %p197 = scmp.ne.s32.totalorder %s192, %s194
    %p198 = scmp.eq.s32.totalorder %s13, 0
    %p199 = por %p197, %p198
    %p200 = scmp.ne.s32.totalorder %s192, %s194
    %p201 = scmp.eq.s32.totalorder %s18, 3
    %p202 = por %p200, %p201
    %p203 = scmp.ne.s32.totalorder %s194, %s195
    %p204 = scmp.eq.s32.totalorder %s18, 0
    %p205 = por %p203, %p204
    %p206 = scmp.ne.s32.totalorder %s194, %s195
    %p207 = scmp.eq.s32.totalorder %s19, 3
    %p208 = por %p206, %p207
    %p210 = scmp.ne.s32.totalorder %s195, %s209
    %p211 = scmp.eq.s32.totalorder %s19, 0
    %p212 = por %p210, %p211
    %s213 = ssub.s32 %s20, %s32
    %s214 = ssub.s32 %s21, %s28
    %s215 = sor.u32 %s213, %s214
    %p216 = scmp.eq.s32.totalorder %s215, 0
    %s218 = sadd.s32 %s217, 1
    %s219 = scalar_select %p216, %s217, %s218
    %p222 = pneg %p216
    %p223 = scmp.eq.s32.totalorder %s13, 3
    %p224 = por %p222, %p223
    %p225 = scmp.ne.s32.totalorder %s217, %s220
    %p226 = scmp.eq.s32.totalorder %s13, 0
    %p227 = por %p225, %p226
    %p228 = scmp.ne.s32.totalorder %s217, %s220
    %p229 = scmp.eq.s32.totalorder %s18, 3
    %p230 = por %p228, %p229
    %p231 = scmp.ne.s32.totalorder %s220, %s221
    %p232 = scmp.eq.s32.totalorder %s18, 0
    %p233 = por %p231, %p232
    %p234 = scmp.ne.s32.totalorder %s220, %s221
    %p235 = scmp.eq.s32.totalorder %s19, 3
    %p236 = por %p234, %p235
    %p238 = scmp.ne.s32.totalorder %s221, %s237
    %p239 = scmp.eq.s32.totalorder %s19, 0
    %p240 = por %p238, %p239
    %p241 = scmp.le.s32.totalorder 1, %s13
    %p242 = scmp.lt.s32.totalorder %s13, 5
    %p243 = pnand %p241, %p242
    %p244 = pneg %p243
    // Predicated region
    $region9: #{tpu_custom_call.1} parent=5 // pred_check
      _
    $region10: #{tpu_custom_call.1} parent=5 // pred_check_branch
      %246 = sbr.rel (%p243) target = $region12
    $region11: #{tpu_custom_call.1} parent=5 // pred_region
      %s247 = ssub.s32 %s13, 1
      // Predicated region
      $region13: #{tpu_custom_call.1} parent=11 // pred_check
        %p248 = pneg %p142
      $region14: #{tpu_custom_call.1} parent=11 // pred_check_branch
        %250 = sbr.rel (%p248) target = $region16
      $region15: #{tpu_custom_call.1} parent=11 // pred_region
        _
      $region16: #{tpu_custom_call.1} parent=11 // pred_fallthru
        _
      // Predicated region
      $region17: #{tpu_custom_call.1} parent=11 // pred_check
        %p251 = pneg %p163
      $region18: #{tpu_custom_call.1} parent=11 // pred_check_branch
        %253 = sbr.rel (%p251) target = $region20
      $region19: #{tpu_custom_call.1} parent=11 // pred_region
        _
      $region20: #{tpu_custom_call.1} parent=11 // pred_fallthru
        _
      // Predicated region
      $region21: #{tpu_custom_call.1} parent=11 // pred_check
        %p254 = pneg %p184
      $region22: #{tpu_custom_call.1} parent=11 // pred_check_branch
        %256 = sbr.rel (%p254) target = $region24
      $region23: #{tpu_custom_call.1} parent=11 // pred_region
        _
      $region24: #{tpu_custom_call.1} parent=11 // pred_fallthru
        _
      // Predicated region
      $region25: #{tpu_custom_call.1} parent=11 // pred_check
        %p257 = pneg %p205
      $region26: #{tpu_custom_call.1} parent=11 // pred_check_branch
        %259 = sbr.rel (%p257) target = $region28
      $region27: #{tpu_custom_call.1} parent=11 // pred_region
        _
      $region28: #{tpu_custom_call.1} parent=11 // pred_fallthru
        _
    $region12: #{tpu_custom_call.1} parent=5 // pred_fallthru
      _
    %p260 = scmp.lt.s32.totalorder %s13, 4
    // Predicated region
    $region29: #{tpu_custom_call.1} parent=5 // pred_check
      %p261 = pneg %p260
    $region30: #{tpu_custom_call.1} parent=5 // pred_check_branch
      %263 = sbr.rel (%p261) target = $region32
    $region31: #{tpu_custom_call.1} parent=5 // pred_region
      // Predicated region
      $region33: #{tpu_custom_call.1} parent=31 // pred_check
        %p264 = pneg %p53
      $region34: #{tpu_custom_call.1} parent=31 // pred_check_branch
        %266 = sbr.rel (%p264) target = $region36
      $region35: #{tpu_custom_call.1} parent=31 // pred_region
        %s267 = ssub.s32 %s21, 1
        %p268 = scmp.gt.s32.totalorder %s267, 0
        %s269 = scalar_select %p268, %s267, 0
        %s270 = smul.u32 8, %s269
        %p271 = scmp.lt.s32.totalorder %s20, 1
        %s272 = scalar_select %p271, %s20, 1
        %p273 = scmp.lt.s32.totalorder %s270, 15
        %s274 = scalar_select %p273, %s270, 15
        %s275 = smul.addr %s274, 2
        %s276 = smul.addr %s272, 32
        %s277 = sadd.s32 %s275, %s276
        %s278 = smul.addr %s277, 8
        %s279 = scalar_lea.vmem %s0, %s278
        %s280 = ssub.s32 %s21, 1
        %p281 = scmp.gt.s32.totalorder %s280, 0
        %s282 = scalar_select %p281, %s280, 0
        %s283 = smul.u32 8, %s282
      $region36: #{tpu_custom_call.1} parent=31 // pred_fallthru
        _
      // Predicated region
      $region37: #{tpu_custom_call.1} parent=31 // pred_check
        %p284 = pneg %p81
      $region38: #{tpu_custom_call.1} parent=31 // pred_check_branch
        %286 = sbr.rel (%p284) target = $region40
      $region39: #{tpu_custom_call.1} parent=31 // pred_region
        %s287 = smul.u32 8, %s21
        %p288 = scmp.lt.s32.totalorder %s20, 1
        %s289 = scalar_select %p288, %s20, 1
        %p290 = scmp.lt.s32.totalorder %s287, 15
        %s291 = scalar_select %p290, %s287, 15
        %s292 = smul.addr %s291, 2
        %s293 = smul.addr %s289, 32
        %s294 = sadd.s32 %s292, %s293
        %s295 = smul.addr %s294, 8
        %s296 = scalar_lea.vmem %s1, %s295
        %s297 = smul.u32 8, %s21
      $region40: #{tpu_custom_call.1} parent=31 // pred_fallthru
        _
      // Predicated region
      $region41: #{tpu_custom_call.1} parent=31 // pred_check
        %p298 = pneg %p115
      $region42: #{tpu_custom_call.1} parent=31 // pred_check_branch
        %300 = sbr.rel (%p298) target = $region44
      $region43: #{tpu_custom_call.1} parent=31 // pred_region
        %s301 = sadd.s32 %s21, 1
        %p302 = scmp.lt.s32.totalorder %s301, 1
        %s303 = scalar_select %p302, %s301, 1
        %s304 = smul.u32 8, %s303
        %p305 = scmp.lt.s32.totalorder %s20, 1
        %s306 = scalar_select %p305, %s20, 1
        %p307 = scmp.lt.s32.totalorder %s304, 15
        %s308 = scalar_select %p307, %s304, 15
        %s309 = smul.addr %s308, 2
        %s310 = smul.addr %s306, 32
        %s311 = sadd.s32 %s309, %s310
        %s312 = smul.addr %s311, 8
        %s313 = scalar_lea.vmem %s2, %s312
        %s314 = sadd.s32 %s21, 1
        %p315 = scmp.lt.s32.totalorder %s314, 1
        %s316 = scalar_select %p315, %s314, 1
        %s317 = smul.u32 8, %s316
      $region44: #{tpu_custom_call.1} parent=31 // pred_fallthru
        _
    $region32: #{tpu_custom_call.1} parent=5 // pred_fallthru
      _
    %p318 = scmp.le.s32.totalorder 1, %s13
    %p319 = scmp.lt.s32.totalorder %s13, 5
    %p320 = pnand %p318, %p319
    %p321 = pneg %p320
    // Predicated region
    $region45: #{tpu_custom_call.1} parent=5 // pred_check
      _
    $region46: #{tpu_custom_call.1} parent=5 // pred_check_branch
      %323 = sbr.rel (%p320) target = $region48
    $region47: #{tpu_custom_call.1} parent=5 // pred_region
      %s324 = ssub.s32 %s13, 1
      %s325 = ssub.s32 %s23, 1
      %p326 = scmp.gt.s32.totalorder %s325, 0
      %s327 = scalar_select %p326, %s325, 0
      %s328 = smul.u32 8, %s327
      %p329 = scmp.lt.s32.totalorder %s22, 1
      %s330 = scalar_select %p329, %s22, 1
      %p331 = scmp.lt.s32.totalorder %s328, 15
      %s332 = scalar_select %p331, %s328, 15
      %s333 = smul.addr %s332, 2
      %s334 = smul.addr %s330, 32
      %s335 = sadd.s32 %s333, %s334
      %s336 = smul.addr %s335, 8
      %s337 = scalar_lea.vmem %s0, %s336
      %p338 = pneg %p59
      %p339 = pneg %p56
      %s340 = smul.u32 8, %s23
      %p341 = scmp.lt.s32.totalorder %s22, 1
      %s342 = scalar_select %p341, %s22, 1
      %p343 = scmp.lt.s32.totalorder %s340, 15
      %s344 = scalar_select %p343, %s340, 15
      %s345 = smul.addr %s344, 2
      %s346 = smul.addr %s342, 32
      %s347 = sadd.s32 %s345, %s346
      %s348 = smul.addr %s347, 8
      %s349 = scalar_lea.vmem %s1, %s348
      %p350 = pneg %p87
      %p351 = pneg %p84
      %s352 = sadd.s32 %s23, 1
      %p353 = scmp.lt.s32.totalorder %s352, 1
      %s354 = scalar_select %p353, %s352, 1
      %s355 = smul.u32 8, %s354
      %p356 = scmp.lt.s32.totalorder %s22, 1
      %s357 = scalar_select %p356, %s22, 1
      %p358 = scmp.lt.s32.totalorder %s355, 15
      %s359 = scalar_select %p358, %s355, 15
      %s360 = smul.addr %s359, 2
      %s361 = smul.addr %s357, 32
      %s362 = sadd.s32 %s360, %s361
      %s363 = smul.addr %s362, 8
      %s364 = scalar_lea.vmem %s2, %s363
      %p365 = pneg %p121
      %p366 = pneg %p118
      %p367 = pneg %p142
      %p368 = pneg %p139
      %p369 = pneg %p163
      %p370 = pneg %p160
      %p371 = pneg %p184
      %p372 = pneg %p181
      %p373 = pneg %p205
      %p374 = pneg %p202
      %p375 = pneg %p233
      %p376 = pneg %p230
      %s377 = smul.u32 8, %s23
      %p378 = scmp.lt.s32.totalorder %s22, 1
      %s379 = scalar_select %p378, %s22, 1
      %p380 = scmp.lt.s32.totalorder %s377, 15
      %s381 = scalar_select %p380, %s377, 15
      %s382 = smul.addr %s381, 2
      %s383 = smul.addr %s379, 32
      %s384 = sadd.s32 %s382, %s383
      %s385 = smul.addr %s384, 8
      %s386 = scalar_lea.vmem %s7, %s385
      %s387 = ssub.s32 %s23, 1
      %p388 = scmp.gt.s32.totalorder %s387, 0
      %s389 = scalar_select %p388, %s387, 0
      %s390 = smul.u32 8, %s389
      %p391 = scmp.lt.s32.totalorder %s22, 1
      %s392 = scalar_select %p391, %s22, 1
      %p393 = scmp.lt.s32.totalorder %s390, 15
      %s394 = scalar_select %p393, %s390, 15
      %s395 = smul.addr %s394, 2
      %s396 = smul.addr %s392, 32
      %s397 = sadd.s32 %s395, %s396
      %s398 = smul.addr %s397, 8
      %s399 = scalar_lea.vmem %s0, %s398
      %s400 = ssub.s32 %s23, 1
      %p401 = scmp.gt.s32.totalorder %s400, 0
      %s402 = scalar_select %p401, %s400, 0
      %s403 = smul.u32 8, %s402
      %s404 = smul.u32 8, %s23
      %p405 = scmp.lt.s32.totalorder %s22, 1
      %s406 = scalar_select %p405, %s22, 1
      %p407 = scmp.lt.s32.totalorder %s404, 15
      %s408 = scalar_select %p407, %s404, 15
      %s409 = smul.addr %s408, 2
      %s410 = smul.addr %s406, 32
      %s411 = sadd.s32 %s409, %s410
      %s412 = smul.addr %s411, 8
      %s413 = scalar_lea.vmem %s1, %s412
      %s414 = smul.u32 8, %s23
      %s415 = sadd.s32 %s23, 1
      %p416 = scmp.lt.s32.totalorder %s415, 1
      %s417 = scalar_select %p416, %s415, 1
      %s418 = smul.u32 8, %s417
      %p419 = scmp.lt.s32.totalorder %s22, 1
      %s420 = scalar_select %p419, %s22, 1
      %p421 = scmp.lt.s32.totalorder %s418, 15
      %s422 = scalar_select %p421, %s418, 15
      %s423 = smul.addr %s422, 2
      %s424 = smul.addr %s420, 32
      %s425 = sadd.s32 %s423, %s424
      %s426 = smul.addr %s425, 8
      %s427 = scalar_lea.vmem %s2, %s426
      %s428 = sadd.s32 %s23, 1
      %p429 = scmp.lt.s32.totalorder %s428, 1
      %s430 = scalar_select %p429, %s428, 1
      %s431 = smul.u32 8, %s430
      %s432 = smul.u32 8, %s23
      %p433 = scmp.lt.s32.totalorder %s22, 1
      %s434 = scalar_select %p433, %s22, 1
      %p435 = scmp.lt.s32.totalorder %s432, 15
      %s436 = scalar_select %p435, %s432, 15
      %s437 = smul.addr %s436, 2
      %s438 = smul.addr %s434, 32
      %s439 = sadd.s32 %s437, %s438
      %s440 = smul.addr %s439, 8
      %s441 = scalar_lea.vmem %s7, %s440
      %s442 = smul.u32 8, %s23
      %vm444 = vcmask 64512
      %445 = vst.msk [vmem:[#allocation2] sm:$0xff] %vm444, 0
      %446 = vst.msk [vmem:[#allocation2 + $0x18] sm:$0xff] %vm444, 0
      %447 = vst.msk [vmem:[#allocation2 + $0x30] sm:$0xff] %vm444, 0
      %448 = vst.msk [vmem:[#allocation2 + $0x48] sm:$0xff] %vm444, 0
      %449 = vst.msk [vmem:[#allocation2 + $0x60] sm:$0xff] %vm444, 0
      %450 = vst.msk [vmem:[#allocation2 + $0x78] sm:$0xff] %vm444, 0
      %451 = vst.msk [vmem:[#allocation2 + $0x90] sm:$0xff] %vm444, 0
      %452 = vst.msk [vmem:[#allocation2 + $0xa8] sm:$0xff] %vm444, 0
      %453 = vst.msk [vmem:[#allocation2 + $0xc0] sm:$0xff] %vm444, 0
      %454 = vst.msk [vmem:[#allocation2 + $0xd8] sm:$0xff] %vm444, 0
      %455 = vst.msk [vmem:[#allocation2 + $0xf0] sm:$0xff] %vm444, 0
      %456 = vst.msk [vmem:[#allocation2 + $0x108] sm:$0xff] %vm444, 0
      %457 = vst.msk [vmem:[#allocation2 + $0x120] sm:$0xff] %vm444, 0
      %458 = vst.msk [vmem:[#allocation2 + $0x138] sm:$0xff] %vm444, 0
      %459 = vst.msk [vmem:[#allocation2 + $0x150] sm:$0xff] %vm444, 0
      %460 = vst.msk [vmem:[#allocation2 + $0x168] sm:$0xff] %vm444, 0
      %461 = vst.msk [vmem:[#allocation2 + $0x180] sm:$0xff] %vm444, 0
      %462 = vst.msk [vmem:[#allocation2 + $0x198] sm:$0xff] %vm444, 0
      %463 = vst.msk [vmem:[#allocation2 + $0x1b0] sm:$0xff] %vm444, 0
      %464 = vst.msk [vmem:[#allocation2 + $0x1c8] sm:$0xff] %vm444, 0
      %465 = vst.msk [vmem:[#allocation2 + $0x1e0] sm:$0xff] %vm444, 0
      %466 = vst.msk [vmem:[#allocation2 + $0x1f8] sm:$0xff] %vm444, 0
      %467 = vst.msk [vmem:[#allocation2 + $0x210] sm:$0xff] %vm444, 0
      %468 = vst.msk [vmem:[#allocation2 + $0x228] sm:$0xff] %vm444, 0
      %469 = vst.msk [vmem:[#allocation2 + $0x10] sm:$0xff] %vm444, 0
      %470 = vst.msk [vmem:[#allocation2 + $0x28] sm:$0xff] %vm444, 0
      %471 = vst.msk [vmem:[#allocation2 + $0x40] sm:$0xff] %vm444, 0
      %472 = vst.msk [vmem:[#allocation2 + $0x58] sm:$0xff] %vm444, 0
      %473 = vst.msk [vmem:[#allocation2 + $0x70] sm:$0xff] %vm444, 0
      %474 = vst.msk [vmem:[#allocation2 + $0x88] sm:$0xff] %vm444, 0
      %475 = vst.msk [vmem:[#allocation2 + $0xa0] sm:$0xff] %vm444, 0
      %476 = vst.msk [vmem:[#allocation2 + $0xb8] sm:$0xff] %vm444, 0
      %477 = vst.msk [vmem:[#allocation2 + $0xd0] sm:$0xff] %vm444, 0
      %478 = vst.msk [vmem:[#allocation2 + $0xe8] sm:$0xff] %vm444, 0
      %479 = vst.msk [vmem:[#allocation2 + $0x100] sm:$0xff] %vm444, 0
      %480 = vst.msk [vmem:[#allocation2 + $0x118] sm:$0xff] %vm444, 0
      %481 = vst.msk [vmem:[#allocation2 + $0x130] sm:$0xff] %vm444, 0
      %482 = vst.msk [vmem:[#allocation2 + $0x148] sm:$0xff] %vm444, 0
      %483 = vst.msk [vmem:[#allocation2 + $0x160] sm:$0xff] %vm444, 0
      %484 = vst.msk [vmem:[#allocation2 + $0x178] sm:$0xff] %vm444, 0
      %485 = vst.msk [vmem:[#allocation2 + $0x190] sm:$0xff] %vm444, 0
      %486 = vst.msk [vmem:[#allocation2 + $0x1a8] sm:$0xff] %vm444, 0
      %487 = vst.msk [vmem:[#allocation2 + $0x1c0] sm:$0xff] %vm444, 0
      %488 = vst.msk [vmem:[#allocation2 + $0x1d8] sm:$0xff] %vm444, 0
      %489 = vst.msk [vmem:[#allocation2 + $0x1f0] sm:$0xff] %vm444, 0
      %490 = vst.msk [vmem:[#allocation2 + $0x208] sm:$0xff] %vm444, 0
      %491 = vst.msk [vmem:[#allocation2 + $0x220] sm:$0xff] %vm444, 0
      %492 = vst.msk [vmem:[#allocation2 + $0x238] sm:$0xff] %vm444, 0
      %p493 = scmp.eq.s32.totalorder %s23, 0
      // Predicated region
      $region49: #{tpu_custom_call.1} parent=47 // pred_check
        %p494 = pneg %p493
      $region50: #{tpu_custom_call.1} parent=47 // pred_check_branch
        %496 = sbr.rel (%p494) target = $region52
      $region51: #{tpu_custom_call.1} parent=47 // pred_region
        %497 = vst.msk [vmem:[#allocation2 + $0x8] sm:$0xff] %vm444, 0
        %498 = vst.msk [vmem:[#allocation2 + $0x20] sm:$0xff] %vm444, 0
        %499 = vst.msk [vmem:[#allocation2 + $0x38] sm:$0xff] %vm444, 0
        %500 = vst.msk [vmem:[#allocation2 + $0x50] sm:$0xff] %vm444, 0
        %501 = vst.msk [vmem:[#allocation2 + $0x68] sm:$0xff] %vm444, 0
        %502 = vst.msk [vmem:[#allocation2 + $0x80] sm:$0xff] %vm444, 0
        %503 = vst.msk [vmem:[#allocation2 + $0x98] sm:$0xff] %vm444, 0
        %504 = vst.msk [vmem:[#allocation2 + $0xb0] sm:$0xff] %vm444, 0
      $region52: #{tpu_custom_call.1} parent=47 // pred_fallthru
        _
      %p505 = scmp.gt.s32.totalorder %s23, 0
      // Predicated region
      $region53: #{tpu_custom_call.1} parent=47 // pred_check
        %p506 = pneg %p505
      $region54: #{tpu_custom_call.1} parent=47 // pred_check_branch
        %508 = sbr.rel (%p506) target = $region56
      $region55: #{tpu_custom_call.1} parent=47 // pred_region
        %v509 = vld [vmem:[%s399] sm:$0xff]
        %v510 = vld [vmem:[%s399 + $0x8] sm:$0xff]
        %v511 = vld [vmem:[%s399 + $0x10] sm:$0xff]
        %v512 = vld [vmem:[%s399 + $0x18] sm:$0xff]
        %v513 = vld [vmem:[%s399 + $0x20] sm:$0xff]
        %v514 = vld [vmem:[%s399 + $0x28] sm:$0xff]
        %v515 = vld [vmem:[%s399 + $0x30] sm:$0xff]
        %v516 = vld [vmem:[%s399 + $0x38] sm:$0xff]
        %v517 = vld [vmem:[%s399 + $0x40] sm:$0xff]
        %v518 = vld [vmem:[%s399 + $0x48] sm:$0xff]
        %v519 = vld [vmem:[%s399 + $0x50] sm:$0xff]
        %v520 = vld [vmem:[%s399 + $0x58] sm:$0xff]
        %v521 = vld [vmem:[%s399 + $0x60] sm:$0xff]
        %v522 = vld [vmem:[%s399 + $0x68] sm:$0xff]
        %v523 = vld [vmem:[%s399 + $0x70] sm:$0xff]
        %v524 = vld [vmem:[%s399 + $0x78] sm:$0xff]
        %v525 = vpack.c.bf16 %v510, %v509
        %v526 = vpack.c.bf16 %v512, %v511
        %v527 = vpack.c.bf16 %v514, %v513
        %v528 = vpack.c.bf16 %v516, %v515
        %v529 = vpack.c.bf16 %v518, %v517
        %v530 = vpack.c.bf16 %v520, %v519
        %v531 = vpack.c.bf16 %v522, %v521
        %v532 = vpack.c.bf16 %v524, %v523
        %533 = vst.msk [vmem:[#allocation2 + $0x8] sm:$0xff] %vm444, %v525
        %534 = vst.msk [vmem:[#allocation2 + $0x20] sm:$0xff] %vm444, %v526
        %535 = vst.msk [vmem:[#allocation2 + $0x38] sm:$0xff] %vm444, %v527
        %536 = vst.msk [vmem:[#allocation2 + $0x50] sm:$0xff] %vm444, %v528
        %537 = vst.msk [vmem:[#allocation2 + $0x68] sm:$0xff] %vm444, %v529
        %538 = vst.msk [vmem:[#allocation2 + $0x80] sm:$0xff] %vm444, %v530
        %539 = vst.msk [vmem:[#allocation2 + $0x98] sm:$0xff] %vm444, %v531
        %540 = vst.msk [vmem:[#allocation2 + $0xb0] sm:$0xff] %vm444, %v532
      $region56: #{tpu_custom_call.1} parent=47 // pred_fallthru
        _
      %v541 = vld [vmem:[%s413] sm:$0xff]
      %v542 = vld [vmem:[%s413 + $0x8] sm:$0xff]
      %v543 = vld [vmem:[%s413 + $0x10] sm:$0xff]
      %v544 = vld [vmem:[%s413 + $0x18] sm:$0xff]
      %v545 = vld [vmem:[%s413 + $0x20] sm:$0xff]
      %v546 = vld [vmem:[%s413 + $0x28] sm:$0xff]
      %v547 = vld [vmem:[%s413 + $0x30] sm:$0xff]
      %v548 = vld [vmem:[%s413 + $0x38] sm:$0xff]
      %v549 = vld [vmem:[%s413 + $0x40] sm:$0xff]
      %v550 = vld [vmem:[%s413 + $0x48] sm:$0xff]
      %v551 = vld [vmem:[%s413 + $0x50] sm:$0xff]
      %v552 = vld [vmem:[%s413 + $0x58] sm:$0xff]
      %v553 = vld [vmem:[%s413 + $0x60] sm:$0xff]
      %v554 = vld [vmem:[%s413 + $0x68] sm:$0xff]
      %v555 = vld [vmem:[%s413 + $0x70] sm:$0xff]
      %v556 = vld [vmem:[%s413 + $0x78] sm:$0xff]
      %v557 = vpack.c.bf16 %v542, %v541
      %v558 = vpack.c.bf16 %v544, %v543
      %v559 = vpack.c.bf16 %v546, %v545
      %v560 = vpack.c.bf16 %v548, %v547
      %v561 = vpack.c.bf16 %v550, %v549
      %v562 = vpack.c.bf16 %v552, %v551
      %v563 = vpack.c.bf16 %v554, %v553
      %v564 = vpack.c.bf16 %v556, %v555
      %s565 = scalar_lea.vmem [#allocation2], 192
      %566 = vst.msk [vmem:[%s565 + $0x8] sm:$0xff] %vm444, %v557
      %567 = vst.msk [vmem:[%s565 + $0x20] sm:$0xff] %vm444, %v558
      %568 = vst.msk [vmem:[%s565 + $0x38] sm:$0xff] %vm444, %v559
      %569 = vst.msk [vmem:[%s565 + $0x50] sm:$0xff] %vm444, %v560
      %570 = vst.msk [vmem:[%s565 + $0x68] sm:$0xff] %vm444, %v561
      %571 = vst.msk [vmem:[%s565 + $0x80] sm:$0xff] %vm444, %v562
      %572 = vst.msk [vmem:[%s565 + $0x98] sm:$0xff] %vm444, %v563
      %573 = vst.msk [vmem:[%s565 + $0xb0] sm:$0xff] %vm444, %v564
      %p574 = scmp.eq.s32.totalorder %s23, 1
      // Predicated region
      $region57: #{tpu_custom_call.1} parent=47 // pred_check
        %p575 = pneg %p574
      $region58: #{tpu_custom_call.1} parent=47 // pred_check_branch
        %577 = sbr.rel (%p575) target = $region60
      $region59: #{tpu_custom_call.1} parent=47 // pred_region
        %s578 = scalar_lea.vmem [#allocation2], 384
        %579 = vst.msk [vmem:[%s578 + $0x8] sm:$0xff] %vm444, 0
        %580 = vst.msk [vmem:[%s578 + $0x20] sm:$0xff] %vm444, 0
        %581 = vst.msk [vmem:[%s578 + $0x38] sm:$0xff] %vm444, 0
        %582 = vst.msk [vmem:[%s578 + $0x50] sm:$0xff] %vm444, 0
        %583 = vst.msk [vmem:[%s578 + $0x68] sm:$0xff] %vm444, 0
        %584 = vst.msk [vmem:[%s578 + $0x80] sm:$0xff] %vm444, 0
        %585 = vst.msk [vmem:[%s578 + $0x98] sm:$0xff] %vm444, 0
        %586 = vst.msk [vmem:[%s578 + $0xb0] sm:$0xff] %vm444, 0
      $region60: #{tpu_custom_call.1} parent=47 // pred_fallthru
        _
      %p587 = scmp.lt.s32.totalorder %s23, 1
      // Predicated region
      $region61: #{tpu_custom_call.1} parent=47 // pred_check
        %p588 = pneg %p587
      $region62: #{tpu_custom_call.1} parent=47 // pred_check_branch
        %590 = sbr.rel (%p588) target = $region64
      $region63: #{tpu_custom_call.1} parent=47 // pred_region
        %v591 = vld [vmem:[%s427] sm:$0xff]
        %v592 = vld [vmem:[%s427 + $0x8] sm:$0xff]
        %v593 = vld [vmem:[%s427 + $0x10] sm:$0xff]
        %v594 = vld [vmem:[%s427 + $0x18] sm:$0xff]
        %v595 = vld [vmem:[%s427 + $0x20] sm:$0xff]
        %v596 = vld [vmem:[%s427 + $0x28] sm:$0xff]
        %v597 = vld [vmem:[%s427 + $0x30] sm:$0xff]
        %v598 = vld [vmem:[%s427 + $0x38] sm:$0xff]
        %v599 = vld [vmem:[%s427 + $0x40] sm:$0xff]
        %v600 = vld [vmem:[%s427 + $0x48] sm:$0xff]
        %v601 = vld [vmem:[%s427 + $0x50] sm:$0xff]
        %v602 = vld [vmem:[%s427 + $0x58] sm:$0xff]
        %v603 = vld [vmem:[%s427 + $0x60] sm:$0xff]
        %v604 = vld [vmem:[%s427 + $0x68] sm:$0xff]
        %v605 = vld [vmem:[%s427 + $0x70] sm:$0xff]
        %v606 = vld [vmem:[%s427 + $0x78] sm:$0xff]
        %v607 = vpack.c.bf16 %v592, %v591
        %v608 = vpack.c.bf16 %v594, %v593
        %v609 = vpack.c.bf16 %v596, %v595
        %v610 = vpack.c.bf16 %v598, %v597
        %v611 = vpack.c.bf16 %v600, %v599
        %v612 = vpack.c.bf16 %v602, %v601
        %v613 = vpack.c.bf16 %v604, %v603
        %v614 = vpack.c.bf16 %v606, %v605
        %s615 = scalar_lea.vmem [#allocation2], 384
        %616 = vst.msk [vmem:[%s615 + $0x8] sm:$0xff] %vm444, %v607
        %617 = vst.msk [vmem:[%s615 + $0x20] sm:$0xff] %vm444, %v608
        %618 = vst.msk [vmem:[%s615 + $0x38] sm:$0xff] %vm444, %v609
        %619 = vst.msk [vmem:[%s615 + $0x50] sm:$0xff] %vm444, %v610
        %620 = vst.msk [vmem:[%s615 + $0x68] sm:$0xff] %vm444, %v611
        %621 = vst.msk [vmem:[%s615 + $0x80] sm:$0xff] %vm444, %v612
        %622 = vst.msk [vmem:[%s615 + $0x98] sm:$0xff] %vm444, %v613
        %623 = vst.msk [vmem:[%s615 + $0xb0] sm:$0xff] %vm444, %v614
      $region64: #{tpu_custom_call.1} parent=47 // pred_fallthru
        _
      %s624 = scalar_lea.vmem [#allocation2], 120
      %v625 = vld [vmem:[%s624] sm:$0xff]
      %v626 = vld [vmem:[%s624 + $0x8] sm:$0xff]
      %v627 = vld [vmem:[%s624 + $0x10] sm:$0xff]
      %v628 = vld [vmem:[%s624 + $0x18] sm:$0xff]
      %v629 = vld [vmem:[%s624 + $0x20] sm:$0xff]
      %v630 = vld [vmem:[%s624 + $0x28] sm:$0xff]
      %v631 = vld [vmem:[%s624 + $0x30] sm:$0xff]
      %v632 = vld [vmem:[%s624 + $0x38] sm:$0xff]
      %v633 = vld [vmem:[%s624 + $0x40] sm:$0xff]
      %v634 = vld [vmem:[%s624 + $0x48] sm:$0xff]
      %v635 = vld [vmem:[%s624 + $0x50] sm:$0xff]
      %v636 = vld [vmem:[%s624 + $0x58] sm:$0xff]
      %v637 = vld [vmem:[%s624 + $0x60] sm:$0xff]
      %v638 = vld [vmem:[%s624 + $0x68] sm:$0xff]
      %v639 = vld [vmem:[%s624 + $0x70] sm:$0xff]
      %v640 = vld [vmem:[%s624 + $0x78] sm:$0xff]
      %v641 = vld [vmem:[%s624 + $0x80] sm:$0xff]
      %v642 = vld [vmem:[%s624 + $0x88] sm:$0xff]
      %v643 = vld [vmem:[%s624 + $0x90] sm:$0xff]
      %v644 = vld [vmem:[%s624 + $0x98] sm:$0xff]
      %v645 = vld [vmem:[%s624 + $0xa0] sm:$0xff]
      %v646 = vld [vmem:[%s624 + $0xa8] sm:$0xff]
      %v647 = vld [vmem:[%s624 + $0xb0] sm:$0xff]
      %v648 = vld [vmem:[%s624 + $0xb8] sm:$0xff]
      %v649 = vld [vmem:[%s624 + $0xc0] sm:$0xff]
      %v650 = vld [vmem:[%s624 + $0xc8] sm:$0xff]
      %v651 = vld [vmem:[%s624 + $0xd0] sm:$0xff]
      %v652 = vld [vmem:[%s624 + $0xd8] sm:$0xff]
      %v653 = vld [vmem:[%s624 + $0xe0] sm:$0xff]
      %v654 = vld [vmem:[%s624 + $0xe8] sm:$0xff]
      %v655 = vld [vmem:[%s624 + $0xf0] sm:$0xff]
      %v656 = vld [vmem:[%s624 + $0xf8] sm:$0xff]
      %v657 = vld [vmem:[%s624 + $0x100] sm:$0xff]
      %v658 = vld [vmem:[%s624 + $0x108] sm:$0xff]
      %v659 = vld [vmem:[%s624 + $0x110] sm:$0xff]
      %v660 = vld [vmem:[%s624 + $0x118] sm:$0xff]
      %v661 = vld [vmem:[%s624 + $0x120] sm:$0xff]
      %v662 = vld [vmem:[%s624 + $0x128] sm:$0xff]
      %v663 = vld [vmem:[%s624 + $0x130] sm:$0xff]
      %v664 = vld [vmem:[%s624 + $0x138] sm:$0xff]
      %v665 = vld [vmem:[%s624 + $0x140] sm:$0xff]
      %v666 = vld [vmem:[%s624 + $0x148] sm:$0xff]
      %vm667 = vsmask.f32 7424
      %v669 = vshrl.u32 %v625, 16
      %v672 = vshll.u32 %v626, 16
      %v674 = vrot.slane %v672, 1
      %v675 = vsel %vm667, %v669, %v674
      %v676 = vshrl.u32 %v626, 16
      %v678 = vor.u32 %v676, %v674
      %v680 = vshrl.u32 %v628, 16
      %v683 = vshll.u32 %v629, 16
      %v685 = vrot.slane %v683, 1
      %v686 = vsel %vm667, %v680, %v685
      %v687 = vshrl.u32 %v629, 16
      %v689 = vor.u32 %v687, %v685
      %v691 = vshrl.u32 %v631, 16
      %v694 = vshll.u32 %v632, 16
      %v696 = vrot.slane %v694, 1
      %v697 = vsel %vm667, %v691, %v696
      %v698 = vshrl.u32 %v632, 16
      %v700 = vor.u32 %v698, %v696
      %v702 = vshrl.u32 %v634, 16
      %v705 = vshll.u32 %v635, 16
      %v707 = vrot.slane %v705, 1
      %v708 = vsel %vm667, %v702, %v707
      %v709 = vshrl.u32 %v635, 16
      %v711 = vor.u32 %v709, %v707
      %v713 = vshrl.u32 %v637, 16
      %v716 = vshll.u32 %v638, 16
      %v718 = vrot.slane %v716, 1
      %v719 = vsel %vm667, %v713, %v718
      %v720 = vshrl.u32 %v638, 16
      %v722 = vor.u32 %v720, %v718
      %v724 = vshrl.u32 %v640, 16
      %v727 = vshll.u32 %v641, 16
      %v729 = vrot.slane %v727, 1
      %v730 = vsel %vm667, %v724, %v729
      %v731 = vshrl.u32 %v641, 16
      %v733 = vor.u32 %v731, %v729
      %v735 = vshrl.u32 %v643, 16
      %v738 = vshll.u32 %v644, 16
      %v740 = vrot.slane %v738, 1
      %v741 = vsel %vm667, %v735, %v740
      %v742 = vshrl.u32 %v644, 16
      %v744 = vor.u32 %v742, %v740
      %v746 = vshrl.u32 %v646, 16
      %v749 = vshll.u32 %v647, 16
      %v751 = vrot.slane %v749, 1
      %v752 = vsel %vm667, %v746, %v751
      %v753 = vshrl.u32 %v647, 16
      %v755 = vor.u32 %v753, %v751
      %v757 = vshrl.u32 %v649, 16
      %v760 = vshll.u32 %v650, 16
      %v762 = vrot.slane %v760, 1
      %v763 = vsel %vm667, %v757, %v762
      %v764 = vshrl.u32 %v650, 16
      %v766 = vor.u32 %v764, %v762
      %v768 = vshrl.u32 %v652, 16
      %v771 = vshll.u32 %v653, 16
      %v773 = vrot.slane %v771, 1
      %v774 = vsel %vm667, %v768, %v773
      %v775 = vshrl.u32 %v653, 16
      %v777 = vor.u32 %v775, %v773
      %v779 = vshrl.u32 %v655, 16
      %v782 = vshll.u32 %v656, 16
      %v784 = vrot.slane %v782, 1
      %v785 = vsel %vm667, %v779, %v784
      %v786 = vshrl.u32 %v656, 16
      %v788 = vor.u32 %v786, %v784
      %v790 = vshrl.u32 %v658, 16
      %v793 = vshll.u32 %v659, 16
      %v795 = vrot.slane %v793, 1
      %v796 = vsel %vm667, %v790, %v795
      %v797 = vshrl.u32 %v659, 16
      %v799 = vor.u32 %v797, %v795
      %v801 = vshrl.u32 %v661, 16
      %v804 = vshll.u32 %v662, 16
      %v806 = vrot.slane %v804, 1
      %v807 = vsel %vm667, %v801, %v806
      %v808 = vshrl.u32 %v662, 16
      %v810 = vor.u32 %v808, %v806
      %v812 = vshrl.u32 %v664, 16
      %v815 = vshll.u32 %v665, 16
      %v817 = vrot.slane %v815, 1
      %v818 = vsel %vm667, %v812, %v817
      %v819 = vshrl.u32 %v665, 16
      %v821 = vor.u32 %v819, %v817
      %822 = vrot.lane.b32.xlu0 %v675, 8
      %v823 = vpop.permute.xlu0 %822
      %824 = vrot.lane.b32.xlu0 %v678, 8
      %v825 = vpop.permute.xlu0 %824
      %826 = vrot.lane.b32.xlu0 %v686, 8
      %v827 = vpop.permute.xlu0 %826
      %828 = vrot.lane.b32.xlu0 %v689, 8
      %v829 = vpop.permute.xlu0 %828
      %830 = vrot.lane.b32.xlu0 %v697, 8
      %v831 = vpop.permute.xlu0 %830
      %832 = vrot.lane.b32.xlu0 %v700, 8
      %v833 = vpop.permute.xlu0 %832
      %834 = vrot.lane.b32.xlu0 %v708, 8
      %v835 = vpop.permute.xlu0 %834
      %836 = vrot.lane.b32.xlu0 %v711, 8
      %v837 = vpop.permute.xlu0 %836
      %838 = vrot.lane.b32.xlu0 %v719, 8
      %v839 = vpop.permute.xlu0 %838
      %840 = vrot.lane.b32.xlu0 %v722, 8
      %v841 = vpop.permute.xlu0 %840
      %842 = vrot.lane.b32.xlu0 %v730, 8
      %v843 = vpop.permute.xlu0 %842
      %844 = vrot.lane.b32.xlu0 %v733, 8
      %v845 = vpop.permute.xlu0 %844
      %846 = vrot.lane.b32.xlu0 %v741, 8
      %v847 = vpop.permute.xlu0 %846
      %848 = vrot.lane.b32.xlu0 %v744, 8
      %v849 = vpop.permute.xlu0 %848
      %850 = vrot.lane.b32.xlu0 %v752, 8
      %v851 = vpop.permute.xlu0 %850
      %852 = vrot.lane.b32.xlu0 %v755, 8
      %v853 = vpop.permute.xlu0 %852
      %854 = vrot.lane.b32.xlu0 %v763, 8
      %v855 = vpop.permute.xlu0 %854
      %856 = vrot.lane.b32.xlu0 %v766, 8
      %v857 = vpop.permute.xlu0 %856
      %858 = vrot.lane.b32.xlu0 %v774, 8
      %v859 = vpop.permute.xlu0 %858
      %860 = vrot.lane.b32.xlu0 %v777, 8
      %v861 = vpop.permute.xlu0 %860
      %862 = vrot.lane.b32.xlu0 %v785, 8
      %v863 = vpop.permute.xlu0 %862
      %864 = vrot.lane.b32.xlu0 %v788, 8
      %v865 = vpop.permute.xlu0 %864
      %866 = vrot.lane.b32.xlu0 %v796, 8
      %v867 = vpop.permute.xlu0 %866
      %868 = vrot.lane.b32.xlu0 %v799, 8
      %v869 = vpop.permute.xlu0 %868
      %870 = vrot.lane.b32.xlu0 %v807, 8
      %v871 = vpop.permute.xlu0 %870
      %872 = vrot.lane.b32.xlu0 %v810, 8
      %v873 = vpop.permute.xlu0 %872
      %874 = vrot.lane.b32.xlu0 %v818, 8
      %v875 = vpop.permute.xlu0 %874
      %876 = vrot.lane.b32.xlu0 %v821, 8
      %v877 = vpop.permute.xlu0 %876
      %v892 = vrot.slane %v626, 1
      %v893 = vrot.slane %v629, 1
      %v894 = vrot.slane %v632, 1
      %v895 = vrot.slane %v635, 1
      %v896 = vrot.slane %v638, 1
      %v897 = vrot.slane %v641, 1
      %v898 = vrot.slane %v644, 1
      %v899 = vrot.slane %v647, 1
      %v900 = vrot.slane %v650, 1
      %v901 = vrot.slane %v653, 1
      %v902 = vrot.slane %v656, 1
      %v903 = vrot.slane %v659, 1
      %v904 = vrot.slane %v662, 1
      %v905 = vrot.slane %v665, 1
      %906 = vrot.lane.b32.xlu0 %v892, 16
      %v907 = vpop.permute.xlu0 %906
      %908 = vrot.lane.b32.xlu0 %v893, 16
      %v909 = vpop.permute.xlu0 %908
      %910 = vrot.lane.b32.xlu0 %v894, 16
      %v911 = vpop.permute.xlu0 %910
      %912 = vrot.lane.b32.xlu0 %v895, 16
      %v913 = vpop.permute.xlu0 %912
      %914 = vrot.lane.b32.xlu0 %v896, 16
      %v915 = vpop.permute.xlu0 %914
      %916 = vrot.lane.b32.xlu0 %v897, 16
      %v917 = vpop.permute.xlu0 %916
      %918 = vrot.lane.b32.xlu0 %v898, 16
      %v919 = vpop.permute.xlu0 %918
      %920 = vrot.lane.b32.xlu0 %v899, 16
      %v921 = vpop.permute.xlu0 %920
      %922 = vrot.lane.b32.xlu0 %v900, 16
      %v923 = vpop.permute.xlu0 %922
      %924 = vrot.lane.b32.xlu0 %v901, 16
      %v925 = vpop.permute.xlu0 %924
      %926 = vrot.lane.b32.xlu0 %v902, 16
      %v927 = vpop.permute.xlu0 %926
      %928 = vrot.lane.b32.xlu0 %v903, 16
      %v929 = vpop.permute.xlu0 %928
      %930 = vrot.lane.b32.xlu0 %v904, 16
      %v931 = vpop.permute.xlu0 %930
      %932 = vrot.lane.b32.xlu0 %v905, 16
      %v933 = vpop.permute.xlu0 %932
      %vm934 = vsmask.f32 6400
      %v935 = vrot.slane %v676, 1
      %v936 = vrot.slane %v672, 2
      %v937 = vor.u32 %v935, %v936
      %v939 = vshll.u32 %v627, 16
      %v941 = vrot.slane %v939, 2
      %v942 = vsel %vm934, %v937, %v941
      %v943 = vrot.slane %v687, 1
      %v944 = vrot.slane %v683, 2
      %v945 = vor.u32 %v943, %v944
      %v947 = vshll.u32 %v630, 16
      %v949 = vrot.slane %v947, 2
      %v950 = vsel %vm934, %v945, %v949
      %v951 = vrot.slane %v698, 1
      %v952 = vrot.slane %v694, 2
      %v953 = vor.u32 %v951, %v952
      %v955 = vshll.u32 %v633, 16
      %v957 = vrot.slane %v955, 2
      %v958 = vsel %vm934, %v953, %v957
      %v959 = vrot.slane %v709, 1
      %v960 = vrot.slane %v705, 2
      %v961 = vor.u32 %v959, %v960
      %v963 = vshll.u32 %v636, 16
      %v965 = vrot.slane %v963, 2
      %v966 = vsel %vm934, %v961, %v965
      %v967 = vrot.slane %v720, 1
      %v968 = vrot.slane %v716, 2
      %v969 = vor.u32 %v967, %v968
      %v971 = vshll.u32 %v639, 16
      %v973 = vrot.slane %v971, 2
      %v974 = vsel %vm934, %v969, %v973
      %v975 = vrot.slane %v731, 1
      %v976 = vrot.slane %v727, 2
      %v977 = vor.u32 %v975, %v976
      %v979 = vshll.u32 %v642, 16
      %v981 = vrot.slane %v979, 2
      %v982 = vsel %vm934, %v977, %v981
      %v983 = vrot.slane %v742, 1
      %v984 = vrot.slane %v738, 2
      %v985 = vor.u32 %v983, %v984
      %v987 = vshll.u32 %v645, 16
      %v989 = vrot.slane %v987, 2
      %v990 = vsel %vm934, %v985, %v989
      %v991 = vrot.slane %v753, 1
      %v992 = vrot.slane %v749, 2
      %v993 = vor.u32 %v991, %v992
      %v995 = vshll.u32 %v648, 16
      %v997 = vrot.slane %v995, 2
      %v998 = vsel %vm934, %v993, %v997
      %v999 = vrot.slane %v764, 1
      %v1000 = vrot.slane %v760, 2
      %v1001 = vor.u32 %v999, %v1000
      %v1003 = vshll.u32 %v651, 16
      %v1005 = vrot.slane %v1003, 2
      %v1006 = vsel %vm934, %v1001, %v1005
      %v1007 = vrot.slane %v775, 1
      %v1008 = vrot.slane %v771, 2
      %v1009 = vor.u32 %v1007, %v1008
      %v1011 = vshll.u32 %v654, 16
      %v1013 = vrot.slane %v1011, 2
      %v1014 = vsel %vm934, %v1009, %v1013
      %v1015 = vrot.slane %v786, 1
      %v1016 = vrot.slane %v782, 2
      %v1017 = vor.u32 %v1015, %v1016
      %v1019 = vshll.u32 %v657, 16
      %v1021 = vrot.slane %v1019, 2
      %v1022 = vsel %vm934, %v1017, %v1021
      %v1023 = vrot.slane %v797, 1
      %v1024 = vrot.slane %v793, 2
      %v1025 = vor.u32 %v1023, %v1024
      %v1027 = vshll.u32 %v660, 16
      %v1029 = vrot.slane %v1027, 2
      %v1030 = vsel %vm934, %v1025, %v1029
      %v1031 = vrot.slane %v808, 1
      %v1032 = vrot.slane %v804, 2
      %v1033 = vor.u32 %v1031, %v1032
      %v1035 = vshll.u32 %v663, 16
      %v1037 = vrot.slane %v1035, 2
      %v1038 = vsel %vm934, %v1033, %v1037
      %v1039 = vrot.slane %v819, 1
      %v1040 = vrot.slane %v815, 2
      %v1041 = vor.u32 %v1039, %v1040
      %v1043 = vshll.u32 %v666, 16
      %v1045 = vrot.slane %v1043, 2
      %v1046 = vsel %vm934, %v1041, %v1045
      %1047 = vrot.lane.b32.xlu0 %v937, 24
      %v1048 = vpop.permute.xlu0 %1047
      %1049 = vrot.lane.b32.xlu0 %v942, 24
      %v1050 = vpop.permute.xlu0 %1049
      %1051 = vrot.lane.b32.xlu0 %v945, 24
      %v1052 = vpop.permute.xlu0 %1051
      %1053 = vrot.lane.b32.xlu0 %v950, 24
      %v1054 = vpop.permute.xlu0 %1053
      %1055 = vrot.lane.b32.xlu0 %v953, 24
      %v1056 = vpop.permute.xlu0 %1055
      %1057 = vrot.lane.b32.xlu0 %v958, 24
      %v1058 = vpop.permute.xlu0 %1057
      %1059 = vrot.lane.b32.xlu0 %v961, 24
      %v1060 = vpop.permute.xlu0 %1059
      %1061 = vrot.lane.b32.xlu0 %v966, 24
      %v1062 = vpop.permute.xlu0 %1061
      %1063 = vrot.lane.b32.xlu0 %v969, 24
      %v1064 = vpop.permute.xlu0 %1063
      %1065 = vrot.lane.b32.xlu0 %v974, 24
      %v1066 = vpop.permute.xlu0 %1065
      %1067 = vrot.lane.b32.xlu0 %v977, 24
      %v1068 = vpop.permute.xlu0 %1067
      %1069 = vrot.lane.b32.xlu0 %v982, 24
      %v1070 = vpop.permute.xlu0 %1069
      %1071 = vrot.lane.b32.xlu0 %v985, 24
      %v1072 = vpop.permute.xlu0 %1071
      %1073 = vrot.lane.b32.xlu0 %v990, 24
      %v1074 = vpop.permute.xlu0 %1073
      %1075 = vrot.lane.b32.xlu0 %v993, 24
      %v1076 = vpop.permute.xlu0 %1075
      %1077 = vrot.lane.b32.xlu0 %v998, 24
      %v1078 = vpop.permute.xlu0 %1077
      %1079 = vrot.lane.b32.xlu0 %v1001, 24
      %v1080 = vpop.permute.xlu0 %1079
      %1081 = vrot.lane.b32.xlu0 %v1006, 24
      %v1082 = vpop.permute.xlu0 %1081
      %1083 = vrot.lane.b32.xlu0 %v1009, 24
      %v1084 = vpop.permute.xlu0 %1083
      %1085 = vrot.lane.b32.xlu0 %v1014, 24
      %v1086 = vpop.permute.xlu0 %1085
      %1087 = vrot.lane.b32.xlu0 %v1017, 24
      %v1088 = vpop.permute.xlu0 %1087
      %1089 = vrot.lane.b32.xlu0 %v1022, 24
      %v1090 = vpop.permute.xlu0 %1089
      %1091 = vrot.lane.b32.xlu0 %v1025, 24
      %v1092 = vpop.permute.xlu0 %1091
      %1093 = vrot.lane.b32.xlu0 %v1030, 24
      %v1094 = vpop.permute.xlu0 %1093
      %1095 = vrot.lane.b32.xlu0 %v1033, 24
      %v1096 = vpop.permute.xlu0 %1095
      %1097 = vrot.lane.b32.xlu0 %v1038, 24
      %v1098 = vpop.permute.xlu0 %1097
      %1099 = vrot.lane.b32.xlu0 %v1041, 24
      %v1100 = vpop.permute.xlu0 %1099
      %1101 = vrot.lane.b32.xlu0 %v1046, 24
      %v1102 = vpop.permute.xlu0 %1101
      %vm1117 = vcmask 1045504
      %v1118 = vrot.slane %v626, 2
      %v1119 = vrot.slane %v627, 2
      %v1120 = vsel %vm1117, %v1118, %v1119
      %v1121 = vrot.slane %v629, 2
      %v1122 = vrot.slane %v630, 2
      %v1123 = vsel %vm1117, %v1121, %v1122
      %v1124 = vrot.slane %v632, 2
      %v1125 = vrot.slane %v633, 2
      %v1126 = vsel %vm1117, %v1124, %v1125
      %v1127 = vrot.slane %v635, 2
      %v1128 = vrot.slane %v636, 2
      %v1129 = vsel %vm1117, %v1127, %v1128
      %v1130 = vrot.slane %v638, 2
      %v1131 = vrot.slane %v639, 2
      %v1132 = vsel %vm1117, %v1130, %v1131
      %v1133 = vrot.slane %v641, 2
      %v1134 = vrot.slane %v642, 2
      %v1135 = vsel %vm1117, %v1133, %v1134
      %v1136 = vrot.slane %v644, 2
      %v1137 = vrot.slane %v645, 2
      %v1138 = vsel %vm1117, %v1136, %v1137
      %v1139 = vrot.slane %v647, 2
      %v1140 = vrot.slane %v648, 2
      %v1141 = vsel %vm1117, %v1139, %v1140
      %v1142 = vrot.slane %v650, 2
      %v1143 = vrot.slane %v651, 2
      %v1144 = vsel %vm1117, %v1142, %v1143
      %v1145 = vrot.slane %v653, 2
      %v1146 = vrot.slane %v654, 2
      %v1147 = vsel %vm1117, %v1145, %v1146
      %v1148 = vrot.slane %v656, 2
      %v1149 = vrot.slane %v657, 2
      %v1150 = vsel %vm1117, %v1148, %v1149
      %v1151 = vrot.slane %v659, 2
      %v1152 = vrot.slane %v660, 2
      %v1153 = vsel %vm1117, %v1151, %v1152
      %v1154 = vrot.slane %v662, 2
      %v1155 = vrot.slane %v663, 2
      %v1156 = vsel %vm1117, %v1154, %v1155
      %v1157 = vrot.slane %v665, 2
      %v1158 = vrot.slane %v666, 2
      %v1159 = vsel %vm1117, %v1157, %v1158
      %1160 = vrot.lane.b32.xlu0 %v1118, 32
      %v1161 = vpop.permute.xlu0 %1160
      %1162 = vrot.lane.b32.xlu0 %v1120, 32
      %v1163 = vpop.permute.xlu0 %1162
      %1164 = vrot.lane.b32.xlu0 %v1121, 32
      %v1165 = vpop.permute.xlu0 %1164
      %1166 = vrot.lane.b32.xlu0 %v1123, 32
      %v1167 = vpop.permute.xlu0 %1166
      %1168 = vrot.lane.b32.xlu0 %v1124, 32
      %v1169 = vpop.permute.xlu0 %1168
      %1170 = vrot.lane.b32.xlu0 %v1126, 32
      %v1171 = vpop.permute.xlu0 %1170
      %1172 = vrot.lane.b32.xlu0 %v1127, 32
      %v1173 = vpop.permute.xlu0 %1172
      %1174 = vrot.lane.b32.xlu0 %v1129, 32
      %v1175 = vpop.permute.xlu0 %1174
      %1176 = vrot.lane.b32.xlu0 %v1130, 32
      %v1177 = vpop.permute.xlu0 %1176
      %1178 = vrot.lane.b32.xlu0 %v1132, 32
      %v1179 = vpop.permute.xlu0 %1178
      %1180 = vrot.lane.b32.xlu0 %v1133, 32
      %v1181 = vpop.permute.xlu0 %1180
      %1182 = vrot.lane.b32.xlu0 %v1135, 32
      %v1183 = vpop.permute.xlu0 %1182
      %1184 = vrot.lane.b32.xlu0 %v1136, 32
      %v1185 = vpop.permute.xlu0 %1184
      %1186 = vrot.lane.b32.xlu0 %v1138, 32
      %v1187 = vpop.permute.xlu0 %1186
      %1188 = vrot.lane.b32.xlu0 %v1139, 32
      %v1189 = vpop.permute.xlu0 %1188
      %1190 = vrot.lane.b32.xlu0 %v1141, 32
      %v1191 = vpop.permute.xlu0 %1190
      %1192 = vrot.lane.b32.xlu0 %v1142, 32
      %v1193 = vpop.permute.xlu0 %1192
      %1194 = vrot.lane.b32.xlu0 %v1144, 32
      %v1195 = vpop.permute.xlu0 %1194
      %1196 = vrot.lane.b32.xlu0 %v1145, 32
      %v1197 = vpop.permute.xlu0 %1196
      %1198 = vrot.lane.b32.xlu0 %v1147, 32
      %v1199 = vpop.permute.xlu0 %1198
      %1200 = vrot.lane.b32.xlu0 %v1148, 32
      %v1201 = vpop.permute.xlu0 %1200
      %1202 = vrot.lane.b32.xlu0 %v1150, 32
      %v1203 = vpop.permute.xlu0 %1202
      %1204 = vrot.lane.b32.xlu0 %v1151, 32
      %v1205 = vpop.permute.xlu0 %1204
      %1206 = vrot.lane.b32.xlu0 %v1153, 32
      %v1207 = vpop.permute.xlu0 %1206
      %1208 = vrot.lane.b32.xlu0 %v1154, 32
      %v1209 = vpop.permute.xlu0 %1208
      %1210 = vrot.lane.b32.xlu0 %v1156, 32
      %v1211 = vpop.permute.xlu0 %1210
      %1212 = vrot.lane.b32.xlu0 %v1157, 32
      %v1213 = vpop.permute.xlu0 %1212
      %1214 = vrot.lane.b32.xlu0 %v1159, 32
      %v1215 = vpop.permute.xlu0 %1214
      %v1217 = vsel %vm444, %v625, %v823
      %v1219 = vsel %vm444, %v626, %v825
      %v1221 = vsel %vm444, %v628, %v827
      %v1223 = vsel %vm444, %v629, %v829
      %v1225 = vsel %vm444, %v631, %v831
      %v1227 = vsel %vm444, %v632, %v833
      %v1229 = vsel %vm444, %v634, %v835
      %v1231 = vsel %vm444, %v635, %v837
      %v1233 = vsel %vm444, %v637, %v839
      %v1235 = vsel %vm444, %v638, %v841
      %v1237 = vsel %vm444, %v640, %v843
      %v1239 = vsel %vm444, %v641, %v845
      %v1241 = vsel %vm444, %v643, %v847
      %v1243 = vsel %vm444, %v644, %v849
      %v1245 = vsel %vm444, %v646, %v851
      %v1247 = vsel %vm444, %v647, %v853
      %v1249 = vsel %vm444, %v649, %v855
      %v1251 = vsel %vm444, %v650, %v857
      %v1253 = vsel %vm444, %v652, %v859
      %v1255 = vsel %vm444, %v653, %v861
      %v1257 = vsel %vm444, %v655, %v863
      %v1259 = vsel %vm444, %v656, %v865
      %v1261 = vsel %vm444, %v658, %v867
      %v1263 = vsel %vm444, %v659, %v869
      %v1265 = vsel %vm444, %v661, %v871
      %v1267 = vsel %vm444, %v662, %v873
      %v1269 = vsel %vm444, %v664, %v875
      %v1271 = vsel %vm444, %v665, %v877
      %vm1272 = vcmask 130048
      %v1274 = vsel %vm1272, %v1217, %v907
      %v1275 = vsel %vm1272, %v1219, %v907
      %v1277 = vsel %vm1272, %v1221, %v909
      %v1278 = vsel %vm1272, %v1223, %v909
      %v1280 = vsel %vm1272, %v1225, %v911
      %v1281 = vsel %vm1272, %v1227, %v911
      %v1283 = vsel %vm1272, %v1229, %v913
      %v1284 = vsel %vm1272, %v1231, %v913
      %v1286 = vsel %vm1272, %v1233, %v915
      %v1287 = vsel %vm1272, %v1235, %v915
      %v1289 = vsel %vm1272, %v1237, %v917
      %v1290 = vsel %vm1272, %v1239, %v917
      %v1292 = vsel %vm1272, %v1241, %v919
      %v1293 = vsel %vm1272, %v1243, %v919
      %v1295 = vsel %vm1272, %v1245, %v921
      %v1296 = vsel %vm1272, %v1247, %v921
      %v1298 = vsel %vm1272, %v1249, %v923
      %v1299 = vsel %vm1272, %v1251, %v923
      %v1301 = vsel %vm1272, %v1253, %v925
      %v1302 = vsel %vm1272, %v1255, %v925
      %v1304 = vsel %vm1272, %v1257, %v927
      %v1305 = vsel %vm1272, %v1259, %v927
      %v1307 = vsel %vm1272, %v1261, %v929
      %v1308 = vsel %vm1272, %v1263, %v929
      %v1310 = vsel %vm1272, %v1265, %v931
      %v1311 = vsel %vm1272, %v1267, %v931
      %v1313 = vsel %vm1272, %v1269, %v933
      %v1314 = vsel %vm1272, %v1271, %v933
      %vm1315 = vcmask 195584
      %v1317 = vsel %vm1315, %v1274, %v1048
      %v1319 = vsel %vm1315, %v1275, %v1050
      %v1321 = vsel %vm1315, %v1277, %v1052
      %v1323 = vsel %vm1315, %v1278, %v1054
      %v1325 = vsel %vm1315, %v1280, %v1056
      %v1327 = vsel %vm1315, %v1281, %v1058
      %v1329 = vsel %vm1315, %v1283, %v1060
      %v1331 = vsel %vm1315, %v1284, %v1062
      %v1333 = vsel %vm1315, %v1286, %v1064
      %v1335 = vsel %vm1315, %v1287, %v1066
      %v1337 = vsel %vm1315, %v1289, %v1068
      %v1339 = vsel %vm1315, %v1290, %v1070
      %v1341 = vsel %vm1315, %v1292, %v1072
      %v1343 = vsel %vm1315, %v1293, %v1074
      %v1345 = vsel %vm1315, %v1295, %v1076
      %v1347 = vsel %vm1315, %v1296, %v1078
      %v1349 = vsel %vm1315, %v1298, %v1080
      %v1351 = vsel %vm1315, %v1299, %v1082
      %v1353 = vsel %vm1315, %v1301, %v1084
      %v1355 = vsel %vm1315, %v1302, %v1086
      %v1357 = vsel %vm1315, %v1304, %v1088
      %v1359 = vsel %vm1315, %v1305, %v1090
      %v1361 = vsel %vm1315, %v1307, %v1092
      %v1363 = vsel %vm1315, %v1308, %v1094
      %v1365 = vsel %vm1315, %v1310, %v1096
      %v1367 = vsel %vm1315, %v1311, %v1098
      %v1369 = vsel %vm1315, %v1313, %v1100
      %v1371 = vsel %vm1315, %v1314, %v1102
      %vm1372 = vcmask 261120
      %v1374 = vsel %vm1372, %v1317, %v1161
      %v1376 = vsel %vm1372, %v1319, %v1163
      %v1378 = vsel %vm1372, %v1321, %v1165
      %v1380 = vsel %vm1372, %v1323, %v1167
      %v1382 = vsel %vm1372, %v1325, %v1169
      %v1384 = vsel %vm1372, %v1327, %v1171
      %v1386 = vsel %vm1372, %v1329, %v1173
      %v1388 = vsel %vm1372, %v1331, %v1175
      %v1390 = vsel %vm1372, %v1333, %v1177
      %v1392 = vsel %vm1372, %v1335, %v1179
      %v1394 = vsel %vm1372, %v1337, %v1181
      %v1396 = vsel %vm1372, %v1339, %v1183
      %v1398 = vsel %vm1372, %v1341, %v1185
      %v1400 = vsel %vm1372, %v1343, %v1187
      %v1402 = vsel %vm1372, %v1345, %v1189
      %v1404 = vsel %vm1372, %v1347, %v1191
      %v1406 = vsel %vm1372, %v1349, %v1193
      %v1408 = vsel %vm1372, %v1351, %v1195
      %v1410 = vsel %vm1372, %v1353, %v1197
      %v1412 = vsel %vm1372, %v1355, %v1199
      %v1414 = vsel %vm1372, %v1357, %v1201
      %v1416 = vsel %vm1372, %v1359, %v1203
      %v1418 = vsel %vm1372, %v1361, %v1205
      %v1420 = vsel %vm1372, %v1363, %v1207
      %v1422 = vsel %vm1372, %v1365, %v1209
      %v1424 = vsel %vm1372, %v1367, %v1211
      %v1426 = vsel %vm1372, %v1369, %v1213
      %v1428 = vsel %vm1372, %v1371, %v1215
      %vm1457 = vcmask 1040384
      %v1458 = vrot.slane %v1374, 7
      %v1459 = vrot.slane %v1376, 7
      %v1460 = vsel %vm1457, %v1458, %v1459
      %v1461 = vrot.slane %v1378, 7
      %v1462 = vrot.slane %v1380, 7
      %v1463 = vsel %vm1457, %v1461, %v1462
      %v1464 = vrot.slane %v1382, 7
      %v1465 = vrot.slane %v1384, 7
      %v1466 = vsel %vm1457, %v1464, %v1465
      %v1467 = vrot.slane %v1386, 7
      %v1468 = vrot.slane %v1388, 7
      %v1469 = vsel %vm1457, %v1467, %v1468
      %v1470 = vrot.slane %v1390, 7
      %v1471 = vrot.slane %v1392, 7
      %v1472 = vsel %vm1457, %v1470, %v1471
      %v1473 = vrot.slane %v1394, 7
      %v1474 = vrot.slane %v1396, 7
      %v1475 = vsel %vm1457, %v1473, %v1474
      %v1476 = vrot.slane %v1398, 7
      %v1477 = vrot.slane %v1400, 7
      %v1478 = vsel %vm1457, %v1476, %v1477
      %v1479 = vrot.slane %v1402, 7
      %v1480 = vrot.slane %v1404, 7
      %v1481 = vsel %vm1457, %v1479, %v1480
      %v1482 = vrot.slane %v1406, 7
      %v1483 = vrot.slane %v1408, 7
      %v1484 = vsel %vm1457, %v1482, %v1483
      %v1485 = vrot.slane %v1410, 7
      %v1486 = vrot.slane %v1412, 7
      %v1487 = vsel %vm1457, %v1485, %v1486
      %v1488 = vrot.slane %v1414, 7
      %v1489 = vrot.slane %v1416, 7
      %v1490 = vsel %vm1457, %v1488, %v1489
      %v1491 = vrot.slane %v1418, 7
      %v1492 = vrot.slane %v1420, 7
      %v1493 = vsel %vm1457, %v1491, %v1492
      %v1494 = vrot.slane %v1422, 7
      %v1495 = vrot.slane %v1424, 7
      %v1496 = vsel %vm1457, %v1494, %v1495
      %v1497 = vrot.slane %v1426, 7
      %v1498 = vrot.slane %v1428, 7
      %v1499 = vsel %vm1457, %v1497, %v1498
      %vm1514 = vcmask 326656
      %1515 = vst.msk [vmem:[#allocation3] sm:$0xff] %vm1514, %v1460
      %1516 = vst.msk [vmem:[#allocation3 + $0x8] sm:$0xff] %vm1514, %v1463
      %1517 = vst.msk [vmem:[#allocation3 + $0x10] sm:$0xff] %vm1514, %v1466
      %1518 = vst.msk [vmem:[#allocation3 + $0x18] sm:$0xff] %vm1514, %v1469
      %1519 = vst.msk [vmem:[#allocation3 + $0x20] sm:$0xff] %vm1514, %v1472
      %1520 = vst.msk [vmem:[#allocation3 + $0x28] sm:$0xff] %vm1514, %v1475
      %1521 = vst.msk [vmem:[#allocation3 + $0x30] sm:$0xff] %vm1514, %v1478
      %1522 = vst.msk [vmem:[#allocation3 + $0x38] sm:$0xff] %vm1514, %v1481
      %1523 = vst.msk [vmem:[#allocation3 + $0x40] sm:$0xff] %vm1514, %v1484
      %1524 = vst.msk [vmem:[#allocation3 + $0x48] sm:$0xff] %vm1514, %v1487
      %1525 = vst.msk [vmem:[#allocation3 + $0x50] sm:$0xff] %vm1514, %v1490
      %1526 = vst.msk [vmem:[#allocation3 + $0x58] sm:$0xff] %vm1514, %v1493
      %1527 = vst.msk [vmem:[#allocation3 + $0x60] sm:$0xff] %vm1514, %v1496
      %1528 = vst.msk [vmem:[#allocation3 + $0x68] sm:$0xff] %vm1514, %v1499
      %v1529 = vld [vmem:[#allocation3] sm:$0xff]
      %v1530 = vld [vmem:[#allocation3 + $0x8] sm:$0xff]
      %v1531 = vld [vmem:[#allocation3 + $0x10] sm:$0xff]
      %v1532 = vld [vmem:[#allocation3 + $0x18] sm:$0xff]
      %v1533 = vld [vmem:[#allocation3 + $0x20] sm:$0xff]
      %v1534 = vld [vmem:[#allocation3 + $0x28] sm:$0xff]
      %v1535 = vld [vmem:[#allocation3 + $0x30] sm:$0xff]
      %v1536 = vld [vmem:[#allocation3 + $0x38] sm:$0xff]
      %v1537 = vld [vmem:[#allocation3 + $0x40] sm:$0xff]
      %v1538 = vld [vmem:[#allocation3 + $0x48] sm:$0xff]
      %v1539 = vld [vmem:[%s3] sm:$0xf]
      %v1540 = vld [vmem:[%s3 + $0x4] sm:$0xf]
      %v1541 = vld [vmem:[%s3 + $0x8] sm:$0xf]
      %v1542 = vld [vmem:[%s3 + $0xc] sm:$0xf]
      %v1543 = vld [vmem:[%s3 + $0x10] sm:$0xf]
      %v1549 = vunpack.c.l.b16 %v1539
      %v1550 = vunpack.c.l.b16 %v1540
      %v1551 = vunpack.c.l.b16 %v1541
      %v1552 = vunpack.c.l.b16 %v1542
      %v1553 = vunpack.c.l.b16 %v1543
      %v1554 = vpack.c.b16 %v1550, %v1549
      %v1555 = vpack.c.b16 %v1552, %v1551
      %v1556 = vpack.c.b16 %v1553, %v1553
      %v1560 = vsel %vm1514, %v1529, 0
      %v1563 = vsel %vm1514, %v1530, 0
      %v1566 = vsel %vm1514, %v1531, 0
      %v1569 = vsel %vm1514, %v1532, 0
      %v1572 = vsel %vm1514, %v1533, 0
      %v1575 = vsel %vm1514, %v1534, 0
      %v1578 = vsel %vm1514, %v1535, 0
      %v1581 = vsel %vm1514, %v1536, 0
      %v1584 = vsel %vm1514, %v1537, 0
      %v1587 = vsel %vm1514, %v1538, 0
      %vm1589 = vcmask 1043456
      %v1591 = vsel %vm1589, %v1556, 0
      %1593 = vmatprep.subr.bf16.mxu0 0
      %1594 = vmatpush1.bf16.msra.mxu0 %v1554
      %1595 = vmatprep.subr.bf16.mxu0 0
      %1596 = vmatpush1.bf16.msra.mxu0 %v1555
      %1597 = vmatprep.subr.bf16.mxu0 0
      %1598 = vmatpush1.bf16.msra.mxu0 %v1591
      %1599 = vmatprep.subr.bf16.mxu0 0
      %1600 = vmatpush1.bf16.msra.mxu0 0
      %1601 = vmatprep.subr.bf16.mxu0 0
      %1602 = vmatpush1.bf16.msra.mxu0 0
      %1603 = vmatprep.subr.bf16.mxu0 0
      %1604 = vmatpush1.bf16.msra.mxu0 0
      %1605 = vmatprep.subr.bf16.mxu0 0
      %1606 = vmatpush1.bf16.msra.mxu0 0
      %1607 = vmatprep.subr.bf16.mxu0 0
      %1608 = vmatpush1.bf16.msra.mxu0 0
      %1609 = vmatprep.subr.bf16.mxu0 0
      %1610 = vmatpush1.bf16.msra.mxu0 0
      %1611 = vmatprep.subr.bf16.mxu0 0
      %1612 = vmatpush1.bf16.msra.mxu0 0
      %1613 = vmatprep.subr.bf16.mxu0 0
      %1614 = vmatpush1.bf16.msra.mxu0 0
      %1615 = vmatprep.subr.bf16.mxu0 0
      %1616 = vmatpush1.bf16.msra.mxu0 0
      %1617 = vmatprep.subr.bf16.mxu0 0
      %1618 = vmatpush1.bf16.msra.mxu0 0
      %1619 = vmatprep.subr.bf16.mxu0 0
      %1620 = vmatpush1.bf16.msra.mxu0 0
      %1621 = vmatprep.subr.bf16.mxu0 0
      %1622 = vmatpush1.bf16.msra.mxu0 0
      %1623 = vmatprep.subr.bf16.mxu0 0
      %1624 = vmatpush1.bf16.msra.mxu0 0
      %1625 = vmatprep.mubr.bf16.mxu0 0
      %1626 = vmatmul.mubr.bf16.gmra.mrb[0].mxu0 %v1560
      %v1627 = vpop.f32.mrb[0].mxu0
      %v1628 = vadd.f32 0.0, %v1627
      %v1629 = vpop.f32.mrb[0].mxu0
      %v1630 = vpop.f32.mrb[0].mxu0
      %v1631 = vadd.f32 0.0, %v1630
      %v1632 = vpop.f32.mrb[0].mxu0
      %1633 = vmatprep.mubr.bf16.mxu0 0
      %1634 = vmatmul.mubr.bf16.gmra.mrb[0].mxu0 %v1563
      %v1635 = vpop.f32.mrb[0].mxu0
      %v1636 = vadd.f32 0.0, %v1635
      %v1637 = vpop.f32.mrb[0].mxu0
      %v1638 = vpop.f32.mrb[0].mxu0
      %v1639 = vadd.f32 0.0, %v1638
      %v1640 = vpop.f32.mrb[0].mxu0
      %1641 = vmatprep.mubr.bf16.mxu0 0
      %1642 = vmatmul.mubr.bf16.gmra.mrb[0].mxu0 %v1566
      %v1643 = vpop.f32.mrb[0].mxu0
      %v1644 = vadd.f32 0.0, %v1643
      %v1645 = vpop.f32.mrb[0].mxu0
      %v1646 = vpop.f32.mrb[0].mxu0
      %v1647 = vadd.f32 0.0, %v1646
      %v1648 = vpop.f32.mrb[0].mxu0
      %1649 = vmatprep.mubr.bf16.mxu0 0
      %1650 = vmatmul.mubr.bf16.gmra.mrb[0].mxu0 %v1569
      %v1651 = vpop.f32.mrb[0].mxu0
      %v1652 = vadd.f32 0.0, %v1651
      %v1653 = vpop.f32.mrb[0].mxu0
      %v1654 = vpop.f32.mrb[0].mxu0
      %v1655 = vadd.f32 0.0, %v1654
      %v1656 = vpop.f32.mrb[0].mxu0
      %1657 = vmatprep.mubr.bf16.mxu0 0
      %1658 = vmatmul.mubr.bf16.gmra.mrb[0].mxu0 %v1572
      %v1659 = vpop.f32.mrb[0].mxu0
      %v1660 = vadd.f32 0.0, %v1659
      %v1661 = vpop.f32.mrb[0].mxu0
      %v1662 = vpop.f32.mrb[0].mxu0
      %v1663 = vadd.f32 0.0, %v1662
      %v1664 = vpop.f32.mrb[0].mxu0
      %1665 = vmatprep.mubr.bf16.mxu0 0
      %1666 = vmatmul.mubr.bf16.gmra.mrb[0].mxu0 %v1575
      %v1667 = vpop.f32.mrb[0].mxu0
      %v1668 = vadd.f32 0.0, %v1667
      %v1669 = vpop.f32.mrb[0].mxu0
      %v1670 = vpop.f32.mrb[0].mxu0
      %v1671 = vadd.f32 0.0, %v1670
      %v1672 = vpop.f32.mrb[0].mxu0
      %1673 = vmatprep.mubr.bf16.mxu0 0
      %1674 = vmatmul.mubr.bf16.gmra.mrb[0].mxu0 %v1578
      %v1675 = vpop.f32.mrb[0].mxu0
      %v1676 = vadd.f32 0.0, %v1675
      %v1677 = vpop.f32.mrb[0].mxu0
      %v1678 = vpop.f32.mrb[0].mxu0
      %v1679 = vadd.f32 0.0, %v1678
      %v1680 = vpop.f32.mrb[0].mxu0
      %1681 = vmatprep.mubr.bf16.mxu0 0
      %1682 = vmatmul.mubr.bf16.gmra.mrb[0].mxu0 %v1581
      %v1683 = vpop.f32.mrb[0].mxu0
      %v1684 = vadd.f32 0.0, %v1683
      %v1685 = vpop.f32.mrb[0].mxu0
      %v1686 = vpop.f32.mrb[0].mxu0
      %v1687 = vadd.f32 0.0, %v1686
      %v1688 = vpop.f32.mrb[0].mxu0
      %1689 = vmatprep.mubr.bf16.mxu0 0
      %1690 = vmatmul.mubr.bf16.gmra.mrb[0].mxu0 %v1584
      %v1691 = vpop.f32.mrb[0].mxu0
      %v1692 = vadd.f32 0.0, %v1691
      %v1693 = vpop.f32.mrb[0].mxu0
      %v1694 = vpop.f32.mrb[0].mxu0
      %v1695 = vadd.f32 0.0, %v1694
      %v1696 = vpop.f32.mrb[0].mxu0
      %1697 = vmatprep.mubr.bf16.mxu0 0
      %1698 = vmatmul.mubr.bf16.gmra.mrb[0].mxu0 %v1587
      %v1699 = vpop.f32.mrb[0].mxu0
      %v1700 = vadd.f32 0.0, %v1699
      %v1701 = vpop.f32.mrb[0].mxu0
      %v1702 = vpop.f32.mrb[0].mxu0
      %v1703 = vadd.f32 0.0, %v1702
      %v1704 = vpop.f32.mrb[0].mxu0
      %1705 = vdwg.mxu0
      %1706 = vst.msk [vmem:[#allocation4] sm:$0xff] %vm1272, %v1628
      %1707 = vst.msk [vmem:[#allocation4 + $0x8] sm:$0xff] %vm1272, %v1631
      %1708 = vst.msk [vmem:[#allocation4 + $0x10] sm:$0xff] %vm1272, %v1636
      %1709 = vst.msk [vmem:[#allocation4 + $0x18] sm:$0xff] %vm1272, %v1639
      %1710 = vst.msk [vmem:[#allocation4 + $0x20] sm:$0xff] %vm1272, %v1644
      %1711 = vst.msk [vmem:[#allocation4 + $0x28] sm:$0xff] %vm1272, %v1647
      %1712 = vst.msk [vmem:[#allocation4 + $0x30] sm:$0xff] %vm1272, %v1652
      %1713 = vst.msk [vmem:[#allocation4 + $0x38] sm:$0xff] %vm1272, %v1655
      %1714 = vst.msk [vmem:[#allocation4 + $0x40] sm:$0xff] %vm1272, %v1660
      %1715 = vst.msk [vmem:[#allocation4 + $0x48] sm:$0xff] %vm1272, %v1663
      %1716 = vst.msk [vmem:[#allocation4 + $0x50] sm:$0xff] %vm1272, %v1668
      %1717 = vst.msk [vmem:[#allocation4 + $0x58] sm:$0xff] %vm1272, %v1671
      %1718 = vst.msk [vmem:[#allocation4 + $0x60] sm:$0xff] %vm1272, %v1676
      %1719 = vst.msk [vmem:[#allocation4 + $0x68] sm:$0xff] %vm1272, %v1679
      %1720 = vst.msk [vmem:[#allocation4 + $0x70] sm:$0xff] %vm1272, %v1684
      %1721 = vst.msk [vmem:[#allocation4 + $0x78] sm:$0xff] %vm1272, %v1687
      %1722 = vst.msk [vmem:[#allocation4 + $0x80] sm:$0xff] %vm1272, %v1692
      %1723 = vst.msk [vmem:[#allocation4 + $0x88] sm:$0xff] %vm1272, %v1695
      %1724 = vst.msk [vmem:[#allocation4 + $0x90] sm:$0xff] %vm1272, %v1700
      %1725 = vst.msk [vmem:[#allocation4 + $0x98] sm:$0xff] %vm1272, %v1703
      %s1726 = scalar_lea.vmem [#allocation3], 8
      %v1727 = vld [vmem:[%s1726] sm:$0xff]
      %v1728 = vld [vmem:[%s1726 + $0x8] sm:$0xff]
      %v1729 = vld [vmem:[%s1726 + $0x10] sm:$0xff]
      %v1730 = vld [vmem:[%s1726 + $0x18] sm:$0xff]
      %v1731 = vld [vmem:[%s1726 + $0x20] sm:$0xff]
      %v1732 = vld [vmem:[%s1726 + $0x28] sm:$0xff]
      %v1733 = vld [vmem:[%s1726 + $0x30] sm:$0xff]
      %v1734 = vld [vmem:[%s1726 + $0x38] sm:$0xff]
      %v1735 = vld [vmem:[%s1726 + $0x40] sm:$0xff]
      %v1736 = vld [vmem:[%s1726 + $0x48] sm:$0xff]
      %s1737 = scalar_lea.vmem %s3, 20
      %v1738 = vld [vmem:[%s1737] sm:$0xf]
      %v1739 = vld [vmem:[%s1737 + $0x4] sm:$0xf]
      %v1740 = vld [vmem:[%s1737 + $0x8] sm:$0xf]
      %v1741 = vld [vmem:[%s1737 + $0xc] sm:$0xf]
      %v1742 = vld [vmem:[%s1737 + $0x10] sm:$0xf]
      %v1748 = vunpack.c.l.b16 %v1738
      %v1749 = vunpack.c.l.b16 %v1739
      %v1750 = vunpack.c.l.b16 %v1740
      %v1751 = vunpack.c.l.b16 %v1741
      %v1752 = vunpack.c.l.b16 %v1742
      %v1753 = vpack.c.b16 %v1749, %v1748
      %v1754 = vpack.c.b16 %v1751, %v1750
      %v1755 = vpack.c.b16 %v1752, %v1752
      %v1759 = vsel %vm1514, %v1727, 0
      %v1762 = vsel %vm1514, %v1728, 0
      %v1765 = vsel %vm1514, %v1729, 0
      %v1768 = vsel %vm1514, %v1730, 0
      %v1771 = vsel %vm1514, %v1731, 0
      %v1774 = vsel %vm1514, %v1732, 0
      %v1777 = vsel %vm1514, %v1733, 0
      %v1780 = vsel %vm1514, %v1734, 0
      %v1783 = vsel %vm1514, %v1735, 0
      %v1786 = vsel %vm1514, %v1736, 0
      %v1789 = vsel %vm1589, %v1755, 0
      %1791 = vmatprep.subr.bf16.mxu0 0
      %1792 = vmatpush1.bf16.msra.mxu0 %v1753
      %1793 = vmatprep.subr.bf16.mxu0 0
      %1794 = vmatpush1.bf16.msra.mxu0 %v1754
      %1795 = vmatprep.subr.bf16.mxu0 0
      %1796 = vmatpush1.bf16.msra.mxu0 %v1789
      %1797 = vmatprep.subr.bf16.mxu0 0
      %1798 = vmatpush1.bf16.msra.mxu0 0
      %1799 = vmatprep.subr.bf16.mxu0 0
      %1800 = vmatpush1.bf16.msra.mxu0 0
      %1801 = vmatprep.subr.bf16.mxu0 0
      %1802 = vmatpush1.bf16.msra.mxu0 0
      %1803 = vmatprep.subr.bf16.mxu0 0
      %1804 = vmatpush1.bf16.msra.mxu0 0
      %1805 = vmatprep.subr.bf16.mxu0 0
      %1806 = vmatpush1.bf16.msra.mxu0 0
      %1807 = vmatprep.subr.bf16.mxu0 0
      %1808 = vmatpush1.bf16.msra.mxu0 0
      %1809 = vmatprep.subr.bf16.mxu0 0
      %1810 = vmatpush1.bf16.msra.mxu0 0
      %1811 = vmatprep.subr.bf16.mxu0 0
      %1812 = vmatpush1.bf16.msra.mxu0 0
      %1813 = vmatprep.subr.bf16.mxu0 0
      %1814 = vmatpush1.bf16.msra.mxu0 0
      %1815 = vmatprep.subr.bf16.mxu0 0
      %1816 = vmatpush1.bf16.msra.mxu0 0
      %1817 = vmatprep.subr.bf16.mxu0 0
      %1818 = vmatpush1.bf16.msra.mxu0 0
      %1819 = vmatprep.subr.bf16.mxu0 0
      %1820 = vmatpush1.bf16.msra.mxu0 0
      %1821 = vmatprep.subr.bf16.mxu0 0
      %1822 = vmatpush1.bf16.msra.mxu0 0
      %1823 = vmatprep.mubr.bf16.mxu0 0
      %1824 = vmatmul.mubr.bf16.gmra.mrb[0].mxu0 %v1759
      %v1825 = vpop.f32.mrb[0].mxu0
      %v1826 = vadd.f32 0.0, %v1825
      %v1827 = vpop.f32.mrb[0].mxu0
      %v1828 = vpop.f32.mrb[0].mxu0
      %v1829 = vadd.f32 0.0, %v1828
      %v1830 = vpop.f32.mrb[0].mxu0
      %1831 = vmatprep.mubr.bf16.mxu0 0
      %1832 = vmatmul.mubr.bf16.gmra.mrb[0].mxu0 %v1762
      %v1833 = vpop.f32.mrb[0].mxu0
      %v1834 = vadd.f32 0.0, %v1833
      %v1835 = vpop.f32.mrb[0].mxu0
      %v1836 = vpop.f32.mrb[0].mxu0
      %v1837 = vadd.f32 0.0, %v1836
      %v1838 = vpop.f32.mrb[0].mxu0
      %1839 = vmatprep.mubr.bf16.mxu0 0
      %1840 = vmatmul.mubr.bf16.gmra.mrb[0].mxu0 %v1765
      %v1841 = vpop.f32.mrb[0].mxu0
      %v1842 = vadd.f32 0.0, %v1841
      %v1843 = vpop.f32.mrb[0].mxu0
      %v1844 = vpop.f32.mrb[0].mxu0
      %v1845 = vadd.f32 0.0, %v1844
      %v1846 = vpop.f32.mrb[0].mxu0
      %1847 = vmatprep.mubr.bf16.mxu0 0
      %1848 = vmatmul.mubr.bf16.gmra.mrb[0].mxu0 %v1768
      %v1849 = vpop.f32.mrb[0].mxu0
      %v1850 = vadd.f32 0.0, %v1849
      %v1851 = vpop.f32.mrb[0].mxu0
      %v1852 = vpop.f32.mrb[0].mxu0
      %v1853 = vadd.f32 0.0, %v1852
      %v1854 = vpop.f32.mrb[0].mxu0
      %1855 = vmatprep.mubr.bf16.mxu0 0
      %1856 = vmatmul.mubr.bf16.gmra.mrb[0].mxu0 %v1771
      %v1857 = vpop.f32.mrb[0].mxu0
      %v1858 = vadd.f32 0.0, %v1857
      %v1859 = vpop.f32.mrb[0].mxu0
      %v1860 = vpop.f32.mrb[0].mxu0
      %v1861 = vadd.f32 0.0, %v1860
      %v1862 = vpop.f32.mrb[0].mxu0
      %1863 = vmatprep.mubr.bf16.mxu0 0
      %1864 = vmatmul.mubr.bf16.gmra.mrb[0].mxu0 %v1774
      %v1865 = vpop.f32.mrb[0].mxu0
      %v1866 = vadd.f32 0.0, %v1865
      %v1867 = vpop.f32.mrb[0].mxu0
      %v1868 = vpop.f32.mrb[0].mxu0
      %v1869 = vadd.f32 0.0, %v1868
      %v1870 = vpop.f32.mrb[0].mxu0
      %1871 = vmatprep.mubr.bf16.mxu0 0
      %1872 = vmatmul.mubr.bf16.gmra.mrb[0].mxu0 %v1777
      %v1873 = vpop.f32.mrb[0].mxu0
      %v1874 = vadd.f32 0.0, %v1873
      %v1875 = vpop.f32.mrb[0].mxu0
      %v1876 = vpop.f32.mrb[0].mxu0
      %v1877 = vadd.f32 0.0, %v1876
      %v1878 = vpop.f32.mrb[0].mxu0
      %1879 = vmatprep.mubr.bf16.mxu0 0
      %1880 = vmatmul.mubr.bf16.gmra.mrb[0].mxu0 %v1780
      %v1881 = vpop.f32.mrb[0].mxu0
      %v1882 = vadd.f32 0.0, %v1881
      %v1883 = vpop.f32.mrb[0].mxu0
      %v1884 = vpop.f32.mrb[0].mxu0
      %v1885 = vadd.f32 0.0, %v1884
      %v1886 = vpop.f32.mrb[0].mxu0
      %1887 = vmatprep.mubr.bf16.mxu0 0
      %1888 = vmatmul.mubr.bf16.gmra.mrb[0].mxu0 %v1783
      %v1889 = vpop.f32.mrb[0].mxu0
      %v1890 = vadd.f32 0.0, %v1889
      %v1891 = vpop.f32.mrb[0].mxu0
      %v1892 = vpop.f32.mrb[0].mxu0
      %v1893 = vadd.f32 0.0, %v1892
      %v1894 = vpop.f32.mrb[0].mxu0
      %1895 = vmatprep.mubr.bf16.mxu0 0
      %1896 = vmatmul.mubr.bf16.gmra.mrb[0].mxu0 %v1786
      %v1897 = vpop.f32.mrb[0].mxu0
      %v1898 = vadd.f32 0.0, %v1897
      %v1899 = vpop.f32.mrb[0].mxu0
      %v1900 = vpop.f32.mrb[0].mxu0
      %v1901 = vadd.f32 0.0, %v1900
      %v1902 = vpop.f32.mrb[0].mxu0
      %1903 = vdwg.mxu0
      %v1904 = vld [vmem:[#allocation4] sm:$0xff]
      %v1905 = vld [vmem:[#allocation4 + $0x8] sm:$0xff]
      %v1906 = vld [vmem:[#allocation4 + $0x10] sm:$0xff]
      %v1907 = vld [vmem:[#allocation4 + $0x18] sm:$0xff]
      %v1908 = vld [vmem:[#allocation4 + $0x20] sm:$0xff]
      %v1909 = vld [vmem:[#allocation4 + $0x28] sm:$0xff]
      %v1910 = vld [vmem:[#allocation4 + $0x30] sm:$0xff]
      %v1911 = vld [vmem:[#allocation4 + $0x38] sm:$0xff]
      %v1912 = vld [vmem:[#allocation4 + $0x40] sm:$0xff]
      %v1913 = vld [vmem:[#allocation4 + $0x48] sm:$0xff]
      %v1914 = vld [vmem:[#allocation4 + $0x50] sm:$0xff]
      %v1915 = vld [vmem:[#allocation4 + $0x58] sm:$0xff]
      %v1916 = vld [vmem:[#allocation4 + $0x60] sm:$0xff]
      %v1917 = vld [vmem:[#allocation4 + $0x68] sm:$0xff]
      %v1918 = vld [vmem:[#allocation4 + $0x70] sm:$0xff]
      %v1919 = vld [vmem:[#allocation4 + $0x78] sm:$0xff]
      %v1920 = vld [vmem:[#allocation4 + $0x80] sm:$0xff]
      %v1921 = vld [vmem:[#allocation4 + $0x88] sm:$0xff]
      %v1922 = vld [vmem:[#allocation4 + $0x90] sm:$0xff]
      %v1923 = vld [vmem:[#allocation4 + $0x98] sm:$0xff]
      %v1924 = vadd.f32 %v1904, %v1826
      %v1925 = vadd.f32 %v1905, %v1829
      %v1926 = vadd.f32 %v1906, %v1834
      %v1927 = vadd.f32 %v1907, %v1837
      %v1928 = vadd.f32 %v1908, %v1842
      %v1929 = vadd.f32 %v1909, %v1845
      %v1930 = vadd.f32 %v1910, %v1850
      %v1931 = vadd.f32 %v1911, %v1853
      %v1932 = vadd.f32 %v1912, %v1858
      %v1933 = vadd.f32 %v1913, %v1861
      %v1934 = vadd.f32 %v1914, %v1866
      %v1935 = vadd.f32 %v1915, %v1869
      %v1936 = vadd.f32 %v1916, %v1874
      %v1937 = vadd.f32 %v1917, %v1877
      %v1938 = vadd.f32 %v1918, %v1882
      %v1939 = vadd.f32 %v1919, %v1885
      %v1940 = vadd.f32 %v1920, %v1890
      %v1941 = vadd.f32 %v1921, %v1893
      %v1942 = vadd.f32 %v1922, %v1898
      %v1943 = vadd.f32 %v1923, %v1901
      %1944 = vst.msk [vmem:[#allocation4] sm:$0xff] %vm1272, %v1924
      %1945 = vst.msk [vmem:[#allocation4 + $0x8] sm:$0xff] %vm1272, %v1925
      %1946 = vst.msk [vmem:[#allocation4 + $0x10] sm:$0xff] %vm1272, %v1926
      %1947 = vst.msk [vmem:[#allocation4 + $0x18] sm:$0xff] %vm1272, %v1927
      %1948 = vst.msk [vmem:[#allocation4 + $0x20] sm:$0xff] %vm1272, %v1928
      %1949 = vst.msk [vmem:[#allocation4 + $0x28] sm:$0xff] %vm1272, %v1929
      %1950 = vst.msk [vmem:[#allocation4 + $0x30] sm:$0xff] %vm1272, %v1930
      %1951 = vst.msk [vmem:[#allocation4 + $0x38] sm:$0xff] %vm1272, %v1931
      %1952 = vst.msk [vmem:[#allocation4 + $0x40] sm:$0xff] %vm1272, %v1932
      %1953 = vst.msk [vmem:[#allocation4 + $0x48] sm:$0xff] %vm1272, %v1933
      %1954 = vst.msk [vmem:[#allocation4 + $0x50] sm:$0xff] %vm1272, %v1934
      %1955 = vst.msk [vmem:[#allocation4 + $0x58] sm:$0xff] %vm1272, %v1935
      %1956 = vst.msk [vmem:[#allocation4 + $0x60] sm:$0xff] %vm1272, %v1936
      %1957 = vst.msk [vmem:[#allocation4 + $0x68] sm:$0xff] %vm1272, %v1937
      %1958 = vst.msk [vmem:[#allocation4 + $0x70] sm:$0xff] %vm1272, %v1938
      %1959 = vst.msk [vmem:[#allocation4 + $0x78] sm:$0xff] %vm1272, %v1939
      %1960 = vst.msk [vmem:[#allocation4 + $0x80] sm:$0xff] %vm1272, %v1940
      %1961 = vst.msk [vmem:[#allocation4 + $0x88] sm:$0xff] %vm1272, %v1941
      %1962 = vst.msk [vmem:[#allocation4 + $0x90] sm:$0xff] %vm1272, %v1942
      %1963 = vst.msk [vmem:[#allocation4 + $0x98] sm:$0xff] %vm1272, %v1943
      %s1964 = scalar_lea.vmem [#allocation3], 16
      %v1965 = vld [vmem:[%s1964] sm:$0xff]
      %v1966 = vld [vmem:[%s1964 + $0x8] sm:$0xff]
      %v1967 = vld [vmem:[%s1964 + $0x10] sm:$0xff]
      %v1968 = vld [vmem:[%s1964 + $0x18] sm:$0xff]
      %v1969 = vld [vmem:[%s1964 + $0x20] sm:$0xff]
      %v1970 = vld [vmem:[%s1964 + $0x28] sm:$0xff]
      %v1971 = vld [vmem:[%s1964 + $0x30] sm:$0xff]
      %v1972 = vld [vmem:[%s1964 + $0x38] sm:$0xff]
      %v1973 = vld [vmem:[%s1964 + $0x40] sm:$0xff]
      %v1974 = vld [vmem:[%s1964 + $0x48] sm:$0xff]
      %s1975 = scalar_lea.vmem %s3, 40
      %v1976 = vld [vmem:[%s1975] sm:$0xf]
      %v1977 = vld [vmem:[%s1975 + $0x4] sm:$0xf]
      %v1978 = vld [vmem:[%s1975 + $0x8] sm:$0xf]
      %v1979 = vld [vmem:[%s1975 + $0xc] sm:$0xf]
      %v1980 = vld [vmem:[%s1975 + $0x10] sm:$0xf]
      %v1986 = vunpack.c.l.b16 %v1976
      %v1987 = vunpack.c.l.b16 %v1977
      %v1988 = vunpack.c.l.b16 %v1978
      %v1989 = vunpack.c.l.b16 %v1979
      %v1990 = vunpack.c.l.b16 %v1980
      %v1991 = vpack.c.b16 %v1987, %v1986
      %v1992 = vpack.c.b16 %v1989, %v1988
      %v1993 = vpack.c.b16 %v1990, %v1990
      %v1997 = vsel %vm1514, %v1965, 0
      %v2000 = vsel %vm1514, %v1966, 0
      %v2003 = vsel %vm1514, %v1967, 0
      %v2006 = vsel %vm1514, %v1968, 0
      %v2009 = vsel %vm1514, %v1969, 0
      %v2012 = vsel %vm1514, %v1970, 0
      %v2015 = vsel %vm1514, %v1971, 0
      %v2018 = vsel %vm1514, %v1972, 0
      %v2021 = vsel %vm1514, %v1973, 0
      %v2024 = vsel %vm1514, %v1974, 0
      %v2027 = vsel %vm1589, %v1993, 0
      %2029 = vmatprep.subr.bf16.mxu0 0
      %2030 = vmatpush1.bf16.msra.mxu0 %v1991
      %2031 = vmatprep.subr.bf16.mxu0 0
      %2032 = vmatpush1.bf16.msra.mxu0 %v1992
      %2033 = vmatprep.subr.bf16.mxu0 0
      %2034 = vmatpush1.bf16.msra.mxu0 %v2027
      %2035 = vmatprep.subr.bf16.mxu0 0
      %2036 = vmatpush1.bf16.msra.mxu0 0
      %2037 = vmatprep.subr.bf16.mxu0 0
      %2038 = vmatpush1.bf16.msra.mxu0 0
      %2039 = vmatprep.subr.bf16.mxu0 0
      %2040 = vmatpush1.bf16.msra.mxu0 0
      %2041 = vmatprep.subr.bf16.mxu0 0
      %2042 = vmatpush1.bf16.msra.mxu0 0
      %2043 = vmatprep.subr.bf16.mxu0 0
      %2044 = vmatpush1.bf16.msra.mxu0 0
      %2045 = vmatprep.subr.bf16.mxu0 0
      %2046 = vmatpush1.bf16.msra.mxu0 0
      %2047 = vmatprep.subr.bf16.mxu0 0
      %2048 = vmatpush1.bf16.msra.mxu0 0
      %2049 = vmatprep.subr.bf16.mxu0 0
      %2050 = vmatpush1.bf16.msra.mxu0 0
      %2051 = vmatprep.subr.bf16.mxu0 0
      %2052 = vmatpush1.bf16.msra.mxu0 0
      %2053 = vmatprep.subr.bf16.mxu0 0
      %2054 = vmatpush1.bf16.msra.mxu0 0
      %2055 = vmatprep.subr.bf16.mxu0 0
      %2056 = vmatpush1.bf16.msra.mxu0 0
      %2057 = vmatprep.subr.bf16.mxu0 0
      %2058 = vmatpush1.bf16.msra.mxu0 0
      %2059 = vmatprep.subr.bf16.mxu0 0
      %2060 = vmatpush1.bf16.msra.mxu0 0
      %2061 = vmatprep.mubr.bf16.mxu0 0
      %2062 = vmatmul.mubr.bf16.gmra.mrb[0].mxu0 %v1997
      %v2063 = vpop.f32.mrb[0].mxu0
      %v2064 = vadd.f32 0.0, %v2063
      %v2065 = vpop.f32.mrb[0].mxu0
      %v2066 = vpop.f32.mrb[0].mxu0
      %v2067 = vadd.f32 0.0, %v2066
      %v2068 = vpop.f32.mrb[0].mxu0
      %2069 = vmatprep.mubr.bf16.mxu0 0
      %2070 = vmatmul.mubr.bf16.gmra.mrb[0].mxu0 %v2000
      %v2071 = vpop.f32.mrb[0].mxu0
      %v2072 = vadd.f32 0.0, %v2071
      %v2073 = vpop.f32.mrb[0].mxu0
      %v2074 = vpop.f32.mrb[0].mxu0
      %v2075 = vadd.f32 0.0, %v2074
      %v2076 = vpop.f32.mrb[0].mxu0
      %2077 = vmatprep.mubr.bf16.mxu0 0
      %2078 = vmatmul.mubr.bf16.gmra.mrb[0].mxu0 %v2003
      %v2079 = vpop.f32.mrb[0].mxu0
      %v2080 = vadd.f32 0.0, %v2079
      %v2081 = vpop.f32.mrb[0].mxu0
      %v2082 = vpop.f32.mrb[0].mxu0
      %v2083 = vadd.f32 0.0, %v2082
      %v2084 = vpop.f32.mrb[0].mxu0
      %2085 = vmatprep.mubr.bf16.mxu0 0
      %2086 = vmatmul.mubr.bf16.gmra.mrb[0].mxu0 %v2006
      %v2087 = vpop.f32.mrb[0].mxu0
      %v2088 = vadd.f32 0.0, %v2087
      %v2089 = vpop.f32.mrb[0].mxu0
      %v2090 = vpop.f32.mrb[0].mxu0
      %v2091 = vadd.f32 0.0, %v2090
      %v2092 = vpop.f32.mrb[0].mxu0
      %2093 = vmatprep.mubr.bf16.mxu0 0
      %2094 = vmatmul.mubr.bf16.gmra.mrb[0].mxu0 %v2009
      %v2095 = vpop.f32.mrb[0].mxu0
      %v2096 = vadd.f32 0.0, %v2095
      %v2097 = vpop.f32.mrb[0].mxu0
      %v2098 = vpop.f32.mrb[0].mxu0
      %v2099 = vadd.f32 0.0, %v2098
      %v2100 = vpop.f32.mrb[0].mxu0
      %2101 = vmatprep.mubr.bf16.mxu0 0
      %2102 = vmatmul.mubr.bf16.gmra.mrb[0].mxu0 %v2012
      %v2103 = vpop.f32.mrb[0].mxu0
      %v2104 = vadd.f32 0.0, %v2103
      %v2105 = vpop.f32.mrb[0].mxu0
      %v2106 = vpop.f32.mrb[0].mxu0
      %v2107 = vadd.f32 0.0, %v2106
      %v2108 = vpop.f32.mrb[0].mxu0
      %2109 = vmatprep.mubr.bf16.mxu0 0
      %2110 = vmatmul.mubr.bf16.gmra.mrb[0].mxu0 %v2015
      %v2111 = vpop.f32.mrb[0].mxu0
      %v2112 = vadd.f32 0.0, %v2111
      %v2113 = vpop.f32.mrb[0].mxu0
      %v2114 = vpop.f32.mrb[0].mxu0
      %v2115 = vadd.f32 0.0, %v2114
      %v2116 = vpop.f32.mrb[0].mxu0
      %2117 = vmatprep.mubr.bf16.mxu0 0
      %2118 = vmatmul.mubr.bf16.gmra.mrb[0].mxu0 %v2018
      %v2119 = vpop.f32.mrb[0].mxu0
      %v2120 = vadd.f32 0.0, %v2119
      %v2121 = vpop.f32.mrb[0].mxu0
      %v2122 = vpop.f32.mrb[0].mxu0
      %v2123 = vadd.f32 0.0, %v2122
      %v2124 = vpop.f32.mrb[0].mxu0
      %2125 = vmatprep.mubr.bf16.mxu0 0
      %2126 = vmatmul.mubr.bf16.gmra.mrb[0].mxu0 %v2021
      %v2127 = vpop.f32.mrb[0].mxu0
      %v2128 = vadd.f32 0.0, %v2127
      %v2129 = vpop.f32.mrb[0].mxu0
      %v2130 = vpop.f32.mrb[0].mxu0
      %v2131 = vadd.f32 0.0, %v2130
      %v2132 = vpop.f32.mrb[0].mxu0
      %2133 = vmatprep.mubr.bf16.mxu0 0
      %2134 = vmatmul.mubr.bf16.gmra.mrb[0].mxu0 %v2024
      %v2135 = vpop.f32.mrb[0].mxu0
      %v2136 = vadd.f32 0.0, %v2135
      %v2137 = vpop.f32.mrb[0].mxu0
      %v2138 = vpop.f32.mrb[0].mxu0
      %v2139 = vadd.f32 0.0, %v2138
      %v2140 = vpop.f32.mrb[0].mxu0
      %2141 = vdwg.mxu0
      %v2142 = vld [vmem:[#allocation4] sm:$0xff]
      %v2143 = vld [vmem:[#allocation4 + $0x8] sm:$0xff]
      %v2144 = vld [vmem:[#allocation4 + $0x10] sm:$0xff]
      %v2145 = vld [vmem:[#allocation4 + $0x18] sm:$0xff]
      %v2146 = vld [vmem:[#allocation4 + $0x20] sm:$0xff]
      %v2147 = vld [vmem:[#allocation4 + $0x28] sm:$0xff]
      %v2148 = vld [vmem:[#allocation4 + $0x30] sm:$0xff]
      %v2149 = vld [vmem:[#allocation4 + $0x38] sm:$0xff]
      %v2150 = vld [vmem:[#allocation4 + $0x40] sm:$0xff]
      %v2151 = vld [vmem:[#allocation4 + $0x48] sm:$0xff]
      %v2152 = vld [vmem:[#allocation4 + $0x50] sm:$0xff]
      %v2153 = vld [vmem:[#allocation4 + $0x58] sm:$0xff]
      %v2154 = vld [vmem:[#allocation4 + $0x60] sm:$0xff]
      %v2155 = vld [vmem:[#allocation4 + $0x68] sm:$0xff]
      %v2156 = vld [vmem:[#allocation4 + $0x70] sm:$0xff]
      %v2157 = vld [vmem:[#allocation4 + $0x78] sm:$0xff]
      %v2158 = vld [vmem:[#allocation4 + $0x80] sm:$0xff]
      %v2159 = vld [vmem:[#allocation4 + $0x88] sm:$0xff]
      %v2160 = vld [vmem:[#allocation4 + $0x90] sm:$0xff]
      %v2161 = vld [vmem:[#allocation4 + $0x98] sm:$0xff]
      %v2162 = vadd.f32 %v2142, %v2064
      %v2163 = vadd.f32 %v2143, %v2067
      %v2164 = vadd.f32 %v2144, %v2072
      %v2165 = vadd.f32 %v2145, %v2075
      %v2166 = vadd.f32 %v2146, %v2080
      %v2167 = vadd.f32 %v2147, %v2083
      %v2168 = vadd.f32 %v2148, %v2088
      %v2169 = vadd.f32 %v2149, %v2091
      %v2170 = vadd.f32 %v2150, %v2096
      %v2171 = vadd.f32 %v2151, %v2099
      %v2172 = vadd.f32 %v2152, %v2104
      %v2173 = vadd.f32 %v2153, %v2107
      %v2174 = vadd.f32 %v2154, %v2112
      %v2175 = vadd.f32 %v2155, %v2115
      %v2176 = vadd.f32 %v2156, %v2120
      %v2177 = vadd.f32 %v2157, %v2123
      %v2178 = vadd.f32 %v2158, %v2128
      %v2179 = vadd.f32 %v2159, %v2131
      %v2180 = vadd.f32 %v2160, %v2136
      %v2181 = vadd.f32 %v2161, %v2139
      %2182 = vst.msk [vmem:[#allocation4] sm:$0xff] %vm1272, %v2162
      %2183 = vst.msk [vmem:[#allocation4 + $0x8] sm:$0xff] %vm1272, %v2163
      %2184 = vst.msk [vmem:[#allocation4 + $0x10] sm:$0xff] %vm1272, %v2164
      %2185 = vst.msk [vmem:[#allocation4 + $0x18] sm:$0xff] %vm1272, %v2165
      %2186 = vst.msk [vmem:[#allocation4 + $0x20] sm:$0xff] %vm1272, %v2166
      %2187 = vst.msk [vmem:[#allocation4 + $0x28] sm:$0xff] %vm1272, %v2167
      %2188 = vst.msk [vmem:[#allocation4 + $0x30] sm:$0xff] %vm1272, %v2168
      %2189 = vst.msk [vmem:[#allocation4 + $0x38] sm:$0xff] %vm1272, %v2169
      %2190 = vst.msk [vmem:[#allocation4 + $0x40] sm:$0xff] %vm1272, %v2170
      %2191 = vst.msk [vmem:[#allocation4 + $0x48] sm:$0xff] %vm1272, %v2171
      %2192 = vst.msk [vmem:[#allocation4 + $0x50] sm:$0xff] %vm1272, %v2172
      %2193 = vst.msk [vmem:[#allocation4 + $0x58] sm:$0xff] %vm1272, %v2173
      %2194 = vst.msk [vmem:[#allocation4 + $0x60] sm:$0xff] %vm1272, %v2174
      %2195 = vst.msk [vmem:[#allocation4 + $0x68] sm:$0xff] %vm1272, %v2175
      %2196 = vst.msk [vmem:[#allocation4 + $0x70] sm:$0xff] %vm1272, %v2176
      %2197 = vst.msk [vmem:[#allocation4 + $0x78] sm:$0xff] %vm1272, %v2177
      %2198 = vst.msk [vmem:[#allocation4 + $0x80] sm:$0xff] %vm1272, %v2178
      %2199 = vst.msk [vmem:[#allocation4 + $0x88] sm:$0xff] %vm1272, %v2179
      %2200 = vst.msk [vmem:[#allocation4 + $0x90] sm:$0xff] %vm1272, %v2180
      %2201 = vst.msk [vmem:[#allocation4 + $0x98] sm:$0xff] %vm1272, %v2181
      %s2202 = scalar_lea.vmem [#allocation3], 24
      %v2203 = vld [vmem:[%s2202] sm:$0xff]
      %v2204 = vld [vmem:[%s2202 + $0x8] sm:$0xff]
      %v2205 = vld [vmem:[%s2202 + $0x10] sm:$0xff]
      %v2206 = vld [vmem:[%s2202 + $0x18] sm:$0xff]
      %v2207 = vld [vmem:[%s2202 + $0x20] sm:$0xff]
      %v2208 = vld [vmem:[%s2202 + $0x28] sm:$0xff]
      %v2209 = vld [vmem:[%s2202 + $0x30] sm:$0xff]
      %v2210 = vld [vmem:[%s2202 + $0x38] sm:$0xff]
      %v2211 = vld [vmem:[%s2202 + $0x40] sm:$0xff]
      %v2212 = vld [vmem:[%s2202 + $0x48] sm:$0xff]
      %s2213 = scalar_lea.vmem %s3, 60
      %v2214 = vld [vmem:[%s2213] sm:$0xf]
      %v2215 = vld [vmem:[%s2213 + $0x4] sm:$0xf]
      %v2216 = vld [vmem:[%s2213 + $0x8] sm:$0xf]
      %v2217 = vld [vmem:[%s2213 + $0xc] sm:$0xf]
      %v2218 = vld [vmem:[%s2213 + $0x10] sm:$0xf]
      %v2224 = vunpack.c.l.b16 %v2214
      %v2225 = vunpack.c.l.b16 %v2215
      %v2226 = vunpack.c.l.b16 %v2216
      %v2227 = vunpack.c.l.b16 %v2217
      %v2228 = vunpack.c.l.b16 %v2218
      %v2229 = vpack.c.b16 %v2225, %v2224
      %v2230 = vpack.c.b16 %v2227, %v2226
      %v2231 = vpack.c.b16 %v2228, %v2228
      %v2235 = vsel %vm1514, %v2203, 0
      %v2238 = vsel %vm1514, %v2204, 0
      %v2241 = vsel %vm1514, %v2205, 0
      %v2244 = vsel %vm1514, %v2206, 0
      %v2247 = vsel %vm1514, %v2207, 0
      %v2250 = vsel %vm1514, %v2208, 0
      %v2253 = vsel %vm1514, %v2209, 0
      %v2256 = vsel %vm1514, %v2210, 0
      %v2259 = vsel %vm1514, %v2211, 0
      %v2262 = vsel %vm1514, %v2212, 0
      %v2265 = vsel %vm1589, %v2231, 0
      %2267 = vmatprep.subr.bf16.mxu0 0
      %2268 = vmatpush1.bf16.msra.mxu0 %v2229
      %2269 = vmatprep.subr.bf16.mxu0 0
      %2270 = vmatpush1.bf16.msra.mxu0 %v2230
      %2271 = vmatprep.subr.bf16.mxu0 0
      %2272 = vmatpush1.bf16.msra.mxu0 %v2265
      %2273 = vmatprep.subr.bf16.mxu0 0
      %2274 = vmatpush1.bf16.msra.mxu0 0
      %2275 = vmatprep.subr.bf16.mxu0 0
      %2276 = vmatpush1.bf16.msra.mxu0 0
      %2277 = vmatprep.subr.bf16.mxu0 0
      %2278 = vmatpush1.bf16.msra.mxu0 0
      %2279 = vmatprep.subr.bf16.mxu0 0
      %2280 = vmatpush1.bf16.msra.mxu0 0
      %2281 = vmatprep.subr.bf16.mxu0 0
      %2282 = vmatpush1.bf16.msra.mxu0 0
      %2283 = vmatprep.subr.bf16.mxu0 0
      %2284 = vmatpush1.bf16.msra.mxu0 0
      %2285 = vmatprep.subr.bf16.mxu0 0
      %2286 = vmatpush1.bf16.msra.mxu0 0
      %2287 = vmatprep.subr.bf16.mxu0 0
      %2288 = vmatpush1.bf16.msra.mxu0 0
      %2289 = vmatprep.subr.bf16.mxu0 0
      %2290 = vmatpush1.bf16.msra.mxu0 0
      %2291 = vmatprep.subr.bf16.mxu0 0
      %2292 = vmatpush1.bf16.msra.mxu0 0
      %2293 = vmatprep.subr.bf16.mxu0 0
      %2294 = vmatpush1.bf16.msra.mxu0 0
      %2295 = vmatprep.subr.bf16.mxu0 0
      %2296 = vmatpush1.bf16.msra.mxu0 0
      %2297 = vmatprep.subr.bf16.mxu0 0
      %2298 = vmatpush1.bf16.msra.mxu0 0
      %2299 = vmatprep.mubr.bf16.mxu0 0
      %2300 = vmatmul.mubr.bf16.gmra.mrb[0].mxu0 %v2235
      %v2301 = vpop.f32.mrb[0].mxu0
      %v2302 = vadd.f32 0.0, %v2301
      %v2303 = vpop.f32.mrb[0].mxu0
      %v2304 = vpop.f32.mrb[0].mxu0
      %v2305 = vadd.f32 0.0, %v2304
      %v2306 = vpop.f32.mrb[0].mxu0
      %2307 = vmatprep.mubr.bf16.mxu0 0
      %2308 = vmatmul.mubr.bf16.gmra.mrb[0].mxu0 %v2238
      %v2309 = vpop.f32.mrb[0].mxu0
      %v2310 = vadd.f32 0.0, %v2309
      %v2311 = vpop.f32.mrb[0].mxu0
      %v2312 = vpop.f32.mrb[0].mxu0
      %v2313 = vadd.f32 0.0, %v2312
      %v2314 = vpop.f32.mrb[0].mxu0
      %2315 = vmatprep.mubr.bf16.mxu0 0
      %2316 = vmatmul.mubr.bf16.gmra.mrb[0].mxu0 %v2241
      %v2317 = vpop.f32.mrb[0].mxu0
      %v2318 = vadd.f32 0.0, %v2317
      %v2319 = vpop.f32.mrb[0].mxu0
      %v2320 = vpop.f32.mrb[0].mxu0
      %v2321 = vadd.f32 0.0, %v2320
      %v2322 = vpop.f32.mrb[0].mxu0
      %2323 = vmatprep.mubr.bf16.mxu0 0
      %2324 = vmatmul.mubr.bf16.gmra.mrb[0].mxu0 %v2244
      %v2325 = vpop.f32.mrb[0].mxu0
      %v2326 = vadd.f32 0.0, %v2325
      %v2327 = vpop.f32.mrb[0].mxu0
      %v2328 = vpop.f32.mrb[0].mxu0
      %v2329 = vadd.f32 0.0, %v2328
      %v2330 = vpop.f32.mrb[0].mxu0
      %2331 = vmatprep.mubr.bf16.mxu0 0
      %2332 = vmatmul.mubr.bf16.gmra.mrb[0].mxu0 %v2247
      %v2333 = vpop.f32.mrb[0].mxu0
      %v2334 = vadd.f32 0.0, %v2333
      %v2335 = vpop.f32.mrb[0].mxu0
      %v2336 = vpop.f32.mrb[0].mxu0
      %v2337 = vadd.f32 0.0, %v2336
      %v2338 = vpop.f32.mrb[0].mxu0
      %2339 = vmatprep.mubr.bf16.mxu0 0
      %2340 = vmatmul.mubr.bf16.gmra.mrb[0].mxu0 %v2250
      %v2341 = vpop.f32.mrb[0].mxu0
      %v2342 = vadd.f32 0.0, %v2341
      %v2343 = vpop.f32.mrb[0].mxu0
      %v2344 = vpop.f32.mrb[0].mxu0
      %v2345 = vadd.f32 0.0, %v2344
      %v2346 = vpop.f32.mrb[0].mxu0
      %2347 = vmatprep.mubr.bf16.mxu0 0
      %2348 = vmatmul.mubr.bf16.gmra.mrb[0].mxu0 %v2253
      %v2349 = vpop.f32.mrb[0].mxu0
      %v2350 = vadd.f32 0.0, %v2349
      %v2351 = vpop.f32.mrb[0].mxu0
      %v2352 = vpop.f32.mrb[0].mxu0
      %v2353 = vadd.f32 0.0, %v2352
      %v2354 = vpop.f32.mrb[0].mxu0
      %2355 = vmatprep.mubr.bf16.mxu0 0
      %2356 = vmatmul.mubr.bf16.gmra.mrb[0].mxu0 %v2256
      %v2357 = vpop.f32.mrb[0].mxu0
      %v2358 = vadd.f32 0.0, %v2357
      %v2359 = vpop.f32.mrb[0].mxu0
      %v2360 = vpop.f32.mrb[0].mxu0
      %v2361 = vadd.f32 0.0, %v2360
      %v2362 = vpop.f32.mrb[0].mxu0
      %2363 = vmatprep.mubr.bf16.mxu0 0
      %2364 = vmatmul.mubr.bf16.gmra.mrb[0].mxu0 %v2259
      %v2365 = vpop.f32.mrb[0].mxu0
      %v2366 = vadd.f32 0.0, %v2365
      %v2367 = vpop.f32.mrb[0].mxu0
      %v2368 = vpop.f32.mrb[0].mxu0
      %v2369 = vadd.f32 0.0, %v2368
      %v2370 = vpop.f32.mrb[0].mxu0
      %2371 = vmatprep.mubr.bf16.mxu0 0
      %2372 = vmatmul.mubr.bf16.gmra.mrb[0].mxu0 %v2262
      %v2373 = vpop.f32.mrb[0].mxu0
      %v2374 = vadd.f32 0.0, %v2373
      %v2375 = vpop.f32.mrb[0].mxu0
      %v2376 = vpop.f32.mrb[0].mxu0
      %v2377 = vadd.f32 0.0, %v2376
      %v2378 = vpop.f32.mrb[0].mxu0
      %2379 = vdwg.mxu0
      %v2380 = vld [vmem:[#allocation4] sm:$0xff]
      %v2381 = vld [vmem:[#allocation4 + $0x8] sm:$0xff]
      %v2382 = vld [vmem:[#allocation4 + $0x10] sm:$0xff]
      %v2383 = vld [vmem:[#allocation4 + $0x18] sm:$0xff]
      %v2384 = vld [vmem:[#allocation4 + $0x20] sm:$0xff]
      %v2385 = vld [vmem:[#allocation4 + $0x28] sm:$0xff]
      %v2386 = vld [vmem:[#allocation4 + $0x30] sm:$0xff]
      %v2387 = vld [vmem:[#allocation4 + $0x38] sm:$0xff]
      %v2388 = vld [vmem:[#allocation4 + $0x40] sm:$0xff]
      %v2389 = vld [vmem:[#allocation4 + $0x48] sm:$0xff]
      %v2390 = vld [vmem:[#allocation4 + $0x50] sm:$0xff]
      %v2391 = vld [vmem:[#allocation4 + $0x58] sm:$0xff]
      %v2392 = vld [vmem:[#allocation4 + $0x60] sm:$0xff]
      %v2393 = vld [vmem:[#allocation4 + $0x68] sm:$0xff]
      %v2394 = vld [vmem:[#allocation4 + $0x70] sm:$0xff]
      %v2395 = vld [vmem:[#allocation4 + $0x78] sm:$0xff]
      %v2396 = vld [vmem:[#allocation4 + $0x80] sm:$0xff]
      %v2397 = vld [vmem:[#allocation4 + $0x88] sm:$0xff]
      %v2398 = vld [vmem:[#allocation4 + $0x90] sm:$0xff]
      %v2399 = vld [vmem:[#allocation4 + $0x98] sm:$0xff]
      %v2400 = vadd.f32 %v2380, %v2302
      %v2401 = vadd.f32 %v2381, %v2305
      %v2402 = vadd.f32 %v2382, %v2310
      %v2403 = vadd.f32 %v2383, %v2313
      %v2404 = vadd.f32 %v2384, %v2318
      %v2405 = vadd.f32 %v2385, %v2321
      %v2406 = vadd.f32 %v2386, %v2326
      %v2407 = vadd.f32 %v2387, %v2329
      %v2408 = vadd.f32 %v2388, %v2334
      %v2409 = vadd.f32 %v2389, %v2337
      %v2410 = vadd.f32 %v2390, %v2342
      %v2411 = vadd.f32 %v2391, %v2345
      %v2412 = vadd.f32 %v2392, %v2350
      %v2413 = vadd.f32 %v2393, %v2353
      %v2414 = vadd.f32 %v2394, %v2358
      %v2415 = vadd.f32 %v2395, %v2361
      %v2416 = vadd.f32 %v2396, %v2366
      %v2417 = vadd.f32 %v2397, %v2369
      %v2418 = vadd.f32 %v2398, %v2374
      %v2419 = vadd.f32 %v2399, %v2377
      %2420 = vst.msk [vmem:[#allocation4] sm:$0xff] %vm1272, %v2400
      %2421 = vst.msk [vmem:[#allocation4 + $0x8] sm:$0xff] %vm1272, %v2401
      %2422 = vst.msk [vmem:[#allocation4 + $0x10] sm:$0xff] %vm1272, %v2402
      %2423 = vst.msk [vmem:[#allocation4 + $0x18] sm:$0xff] %vm1272, %v2403
      %2424 = vst.msk [vmem:[#allocation4 + $0x20] sm:$0xff] %vm1272, %v2404
      %2425 = vst.msk [vmem:[#allocation4 + $0x28] sm:$0xff] %vm1272, %v2405
      %2426 = vst.msk [vmem:[#allocation4 + $0x30] sm:$0xff] %vm1272, %v2406
      %2427 = vst.msk [vmem:[#allocation4 + $0x38] sm:$0xff] %vm1272, %v2407
      %2428 = vst.msk [vmem:[#allocation4 + $0x40] sm:$0xff] %vm1272, %v2408
      %2429 = vst.msk [vmem:[#allocation4 + $0x48] sm:$0xff] %vm1272, %v2409
      %2430 = vst.msk [vmem:[#allocation4 + $0x50] sm:$0xff] %vm1272, %v2410
      %2431 = vst.msk [vmem:[#allocation4 + $0x58] sm:$0xff] %vm1272, %v2411
      %2432 = vst.msk [vmem:[#allocation4 + $0x60] sm:$0xff] %vm1272, %v2412
      %2433 = vst.msk [vmem:[#allocation4 + $0x68] sm:$0xff] %vm1272, %v2413
      %2434 = vst.msk [vmem:[#allocation4 + $0x70] sm:$0xff] %vm1272, %v2414
      %2435 = vst.msk [vmem:[#allocation4 + $0x78] sm:$0xff] %vm1272, %v2415
      %2436 = vst.msk [vmem:[#allocation4 + $0x80] sm:$0xff] %vm1272, %v2416
      %2437 = vst.msk [vmem:[#allocation4 + $0x88] sm:$0xff] %vm1272, %v2417
      %2438 = vst.msk [vmem:[#allocation4 + $0x90] sm:$0xff] %vm1272, %v2418
      %2439 = vst.msk [vmem:[#allocation4 + $0x98] sm:$0xff] %vm1272, %v2419
      %s2440 = scalar_lea.vmem [#allocation3], 32
      %v2441 = vld [vmem:[%s2440] sm:$0xff]
      %v2442 = vld [vmem:[%s2440 + $0x8] sm:$0xff]
      %v2443 = vld [vmem:[%s2440 + $0x10] sm:$0xff]
      %v2444 = vld [vmem:[%s2440 + $0x18] sm:$0xff]
      %v2445 = vld [vmem:[%s2440 + $0x20] sm:$0xff]
      %v2446 = vld [vmem:[%s2440 + $0x28] sm:$0xff]
      %v2447 = vld [vmem:[%s2440 + $0x30] sm:$0xff]
      %v2448 = vld [vmem:[%s2440 + $0x38] sm:$0xff]
      %v2449 = vld [vmem:[%s2440 + $0x40] sm:$0xff]
      %v2450 = vld [vmem:[%s2440 + $0x48] sm:$0xff]
      %s2451 = scalar_lea.vmem %s3, 80
      %v2452 = vld [vmem:[%s2451] sm:$0xf]
      %v2453 = vld [vmem:[%s2451 + $0x4] sm:$0xf]
      %v2454 = vld [vmem:[%s2451 + $0x8] sm:$0xf]
      %v2455 = vld [vmem:[%s2451 + $0xc] sm:$0xf]
      %v2456 = vld [vmem:[%s2451 + $0x10] sm:$0xf]
      %v2462 = vunpack.c.l.b16 %v2452
      %v2463 = vunpack.c.l.b16 %v2453
      %v2464 = vunpack.c.l.b16 %v2454
      %v2465 = vunpack.c.l.b16 %v2455
      %v2466 = vunpack.c.l.b16 %v2456
      %v2467 = vpack.c.b16 %v2463, %v2462
      %v2468 = vpack.c.b16 %v2465, %v2464
      %v2469 = vpack.c.b16 %v2466, %v2466
      %v2473 = vsel %vm1514, %v2441, 0
      %v2476 = vsel %vm1514, %v2442, 0
      %v2479 = vsel %vm1514, %v2443, 0
      %v2482 = vsel %vm1514, %v2444, 0
      %v2485 = vsel %vm1514, %v2445, 0
      %v2488 = vsel %vm1514, %v2446, 0
      %v2491 = vsel %vm1514, %v2447, 0
      %v2494 = vsel %vm1514, %v2448, 0
      %v2497 = vsel %vm1514, %v2449, 0
      %v2500 = vsel %vm1514, %v2450, 0
      %v2503 = vsel %vm1589, %v2469, 0
      %2505 = vmatprep.subr.bf16.mxu0 0
      %2506 = vmatpush1.bf16.msra.mxu0 %v2467
      %2507 = vmatprep.subr.bf16.mxu0 0
      %2508 = vmatpush1.bf16.msra.mxu0 %v2468
      %2509 = vmatprep.subr.bf16.mxu0 0
      %2510 = vmatpush1.bf16.msra.mxu0 %v2503
      %2511 = vmatprep.subr.bf16.mxu0 0
      %2512 = vmatpush1.bf16.msra.mxu0 0
      %2513 = vmatprep.subr.bf16.mxu0 0
      %2514 = vmatpush1.bf16.msra.mxu0 0
      %2515 = vmatprep.subr.bf16.mxu0 0
      %2516 = vmatpush1.bf16.msra.mxu0 0
      %2517 = vmatprep.subr.bf16.mxu0 0
      %2518 = vmatpush1.bf16.msra.mxu0 0
      %2519 = vmatprep.subr.bf16.mxu0 0
      %2520 = vmatpush1.bf16.msra.mxu0 0
      %2521 = vmatprep.subr.bf16.mxu0 0
      %2522 = vmatpush1.bf16.msra.mxu0 0
      %2523 = vmatprep.subr.bf16.mxu0 0
      %2524 = vmatpush1.bf16.msra.mxu0 0
      %2525 = vmatprep.subr.bf16.mxu0 0
      %2526 = vmatpush1.bf16.msra.mxu0 0
      %2527 = vmatprep.subr.bf16.mxu0 0
      %2528 = vmatpush1.bf16.msra.mxu0 0
      %2529 = vmatprep.subr.bf16.mxu0 0
      %2530 = vmatpush1.bf16.msra.mxu0 0
      %2531 = vmatprep.subr.bf16.mxu0 0
      %2532 = vmatpush1.bf16.msra.mxu0 0
      %2533 = vmatprep.subr.bf16.mxu0 0
      %2534 = vmatpush1.bf16.msra.mxu0 0
      %2535 = vmatprep.subr.bf16.mxu0 0
      %2536 = vmatpush1.bf16.msra.mxu0 0
      %2537 = vmatprep.mubr.bf16.mxu0 0
      %2538 = vmatmul.mubr.bf16.gmra.mrb[0].mxu0 %v2473
      %v2539 = vpop.f32.mrb[0].mxu0
      %v2540 = vadd.f32 0.0, %v2539
      %v2541 = vpop.f32.mrb[0].mxu0
      %v2542 = vpop.f32.mrb[0].mxu0
      %v2543 = vadd.f32 0.0, %v2542
      %v2544 = vpop.f32.mrb[0].mxu0
      %2545 = vmatprep.mubr.bf16.mxu0 0
      %2546 = vmatmul.mubr.bf16.gmra.mrb[0].mxu0 %v2476
      %v2547 = vpop.f32.mrb[0].mxu0
      %v2548 = vadd.f32 0.0, %v2547
      %v2549 = vpop.f32.mrb[0].mxu0
      %v2550 = vpop.f32.mrb[0].mxu0
      %v2551 = vadd.f32 0.0, %v2550
      %v2552 = vpop.f32.mrb[0].mxu0
      %2553 = vmatprep.mubr.bf16.mxu0 0
      %2554 = vmatmul.mubr.bf16.gmra.mrb[0].mxu0 %v2479
      %v2555 = vpop.f32.mrb[0].mxu0
      %v2556 = vadd.f32 0.0, %v2555
      %v2557 = vpop.f32.mrb[0].mxu0
      %v2558 = vpop.f32.mrb[0].mxu0
      %v2559 = vadd.f32 0.0, %v2558
      %v2560 = vpop.f32.mrb[0].mxu0
      %2561 = vmatprep.mubr.bf16.mxu0 0
      %2562 = vmatmul.mubr.bf16.gmra.mrb[0].mxu0 %v2482
      %v2563 = vpop.f32.mrb[0].mxu0
      %v2564 = vadd.f32 0.0, %v2563
      %v2565 = vpop.f32.mrb[0].mxu0
      %v2566 = vpop.f32.mrb[0].mxu0
      %v2567 = vadd.f32 0.0, %v2566
      %v2568 = vpop.f32.mrb[0].mxu0
      %2569 = vmatprep.mubr.bf16.mxu0 0
      %2570 = vmatmul.mubr.bf16.gmra.mrb[0].mxu0 %v2485
      %v2571 = vpop.f32.mrb[0].mxu0
      %v2572 = vadd.f32 0.0, %v2571
      %v2573 = vpop.f32.mrb[0].mxu0
      %v2574 = vpop.f32.mrb[0].mxu0
      %v2575 = vadd.f32 0.0, %v2574
      %v2576 = vpop.f32.mrb[0].mxu0
      %2577 = vmatprep.mubr.bf16.mxu0 0
      %2578 = vmatmul.mubr.bf16.gmra.mrb[0].mxu0 %v2488
      %v2579 = vpop.f32.mrb[0].mxu0
      %v2580 = vadd.f32 0.0, %v2579
      %v2581 = vpop.f32.mrb[0].mxu0
      %v2582 = vpop.f32.mrb[0].mxu0
      %v2583 = vadd.f32 0.0, %v2582
      %v2584 = vpop.f32.mrb[0].mxu0
      %2585 = vmatprep.mubr.bf16.mxu0 0
      %2586 = vmatmul.mubr.bf16.gmra.mrb[0].mxu0 %v2491
      %v2587 = vpop.f32.mrb[0].mxu0
      %v2588 = vadd.f32 0.0, %v2587
      %v2589 = vpop.f32.mrb[0].mxu0
      %v2590 = vpop.f32.mrb[0].mxu0
      %v2591 = vadd.f32 0.0, %v2590
      %v2592 = vpop.f32.mrb[0].mxu0
      %2593 = vmatprep.mubr.bf16.mxu0 0
      %2594 = vmatmul.mubr.bf16.gmra.mrb[0].mxu0 %v2494
      %v2595 = vpop.f32.mrb[0].mxu0
      %v2596 = vadd.f32 0.0, %v2595
      %v2597 = vpop.f32.mrb[0].mxu0
      %v2598 = vpop.f32.mrb[0].mxu0
      %v2599 = vadd.f32 0.0, %v2598
      %v2600 = vpop.f32.mrb[0].mxu0
      %2601 = vmatprep.mubr.bf16.mxu0 0
      %2602 = vmatmul.mubr.bf16.gmra.mrb[0].mxu0 %v2497
      %v2603 = vpop.f32.mrb[0].mxu0
      %v2604 = vadd.f32 0.0, %v2603
      %v2605 = vpop.f32.mrb[0].mxu0
      %v2606 = vpop.f32.mrb[0].mxu0
      %v2607 = vadd.f32 0.0, %v2606
      %v2608 = vpop.f32.mrb[0].mxu0
      %2609 = vmatprep.mubr.bf16.mxu0 0
      %2610 = vmatmul.mubr.bf16.gmra.mrb[0].mxu0 %v2500
      %v2611 = vpop.f32.mrb[0].mxu0
      %v2612 = vadd.f32 0.0, %v2611
      %v2613 = vpop.f32.mrb[0].mxu0
      %v2614 = vpop.f32.mrb[0].mxu0
      %v2615 = vadd.f32 0.0, %v2614
      %v2616 = vpop.f32.mrb[0].mxu0
      %2617 = vdwg.mxu0
      %v2618 = vld [vmem:[#allocation4] sm:$0xff]
      %v2619 = vld [vmem:[#allocation4 + $0x8] sm:$0xff]
      %v2620 = vld [vmem:[#allocation4 + $0x10] sm:$0xff]
      %v2621 = vld [vmem:[#allocation4 + $0x18] sm:$0xff]
      %v2622 = vld [vmem:[#allocation4 + $0x20] sm:$0xff]
      %v2623 = vld [vmem:[#allocation4 + $0x28] sm:$0xff]
      %v2624 = vld [vmem:[#allocation4 + $0x30] sm:$0xff]
      %v2625 = vld [vmem:[#allocation4 + $0x38] sm:$0xff]
      %v2626 = vld [vmem:[#allocation4 + $0x40] sm:$0xff]
      %v2627 = vld [vmem:[#allocation4 + $0x48] sm:$0xff]
      %v2628 = vld [vmem:[#allocation4 + $0x50] sm:$0xff]
      %v2629 = vld [vmem:[#allocation4 + $0x58] sm:$0xff]
      %v2630 = vld [vmem:[#allocation4 + $0x60] sm:$0xff]
      %v2631 = vld [vmem:[#allocation4 + $0x68] sm:$0xff]
      %v2632 = vld [vmem:[#allocation4 + $0x70] sm:$0xff]
      %v2633 = vld [vmem:[#allocation4 + $0x78] sm:$0xff]
      %v2634 = vld [vmem:[#allocation4 + $0x80] sm:$0xff]
      %v2635 = vld [vmem:[#allocation4 + $0x88] sm:$0xff]
      %v2636 = vld [vmem:[#allocation4 + $0x90] sm:$0xff]
      %v2637 = vld [vmem:[#allocation4 + $0x98] sm:$0xff]
      %v2638 = vadd.f32 %v2618, %v2540
      %v2639 = vadd.f32 %v2619, %v2543
      %v2640 = vadd.f32 %v2620, %v2548
      %v2641 = vadd.f32 %v2621, %v2551
      %v2642 = vadd.f32 %v2622, %v2556
      %v2643 = vadd.f32 %v2623, %v2559
      %v2644 = vadd.f32 %v2624, %v2564
      %v2645 = vadd.f32 %v2625, %v2567
      %v2646 = vadd.f32 %v2626, %v2572
      %v2647 = vadd.f32 %v2627, %v2575
      %v2648 = vadd.f32 %v2628, %v2580
      %v2649 = vadd.f32 %v2629, %v2583
      %v2650 = vadd.f32 %v2630, %v2588
      %v2651 = vadd.f32 %v2631, %v2591
      %v2652 = vadd.f32 %v2632, %v2596
      %v2653 = vadd.f32 %v2633, %v2599
      %v2654 = vadd.f32 %v2634, %v2604
      %v2655 = vadd.f32 %v2635, %v2607
      %v2656 = vadd.f32 %v2636, %v2612
      %v2657 = vadd.f32 %v2637, %v2615
      %2658 = vst.msk [vmem:[#allocation4] sm:$0xff] %vm1272, %v2638
      %2659 = vst.msk [vmem:[#allocation4 + $0x8] sm:$0xff] %vm1272, %v2639
      %2660 = vst.msk [vmem:[#allocation4 + $0x10] sm:$0xff] %vm1272, %v2640
      %2661 = vst.msk [vmem:[#allocation4 + $0x18] sm:$0xff] %vm1272, %v2641
      %2662 = vst.msk [vmem:[#allocation4 + $0x20] sm:$0xff] %vm1272, %v2642
      %2663 = vst.msk [vmem:[#allocation4 + $0x28] sm:$0xff] %vm1272, %v2643
      %2664 = vst.msk [vmem:[#allocation4 + $0x30] sm:$0xff] %vm1272, %v2644
      %2665 = vst.msk [vmem:[#allocation4 + $0x38] sm:$0xff] %vm1272, %v2645
      %2666 = vst.msk [vmem:[#allocation4 + $0x40] sm:$0xff] %vm1272, %v2646
      %2667 = vst.msk [vmem:[#allocation4 + $0x48] sm:$0xff] %vm1272, %v2647
      %2668 = vst.msk [vmem:[#allocation4 + $0x50] sm:$0xff] %vm1272, %v2648
      %2669 = vst.msk [vmem:[#allocation4 + $0x58] sm:$0xff] %vm1272, %v2649
      %2670 = vst.msk [vmem:[#allocation4 + $0x60] sm:$0xff] %vm1272, %v2650
      %2671 = vst.msk [vmem:[#allocation4 + $0x68] sm:$0xff] %vm1272, %v2651
      %2672 = vst.msk [vmem:[#allocation4 + $0x70] sm:$0xff] %vm1272, %v2652
      %2673 = vst.msk [vmem:[#allocation4 + $0x78] sm:$0xff] %vm1272, %v2653
      %2674 = vst.msk [vmem:[#allocation4 + $0x80] sm:$0xff] %vm1272, %v2654
      %2675 = vst.msk [vmem:[#allocation4 + $0x88] sm:$0xff] %vm1272, %v2655
      %2676 = vst.msk [vmem:[#allocation4 + $0x90] sm:$0xff] %vm1272, %v2656
      %2677 = vst.msk [vmem:[#allocation4 + $0x98] sm:$0xff] %vm1272, %v2657
      %v2678 = vld [vmem:[%s4] sm:$0x1]
      %v2679 = vld [vmem:[#allocation4] sm:$0xff]
      %v2680 = vld [vmem:[#allocation4 + $0x8] sm:$0xff]
      %v2681 = vld [vmem:[#allocation4 + $0x10] sm:$0xff]
      %v2682 = vld [vmem:[#allocation4 + $0x18] sm:$0xff]
      %v2683 = vld [vmem:[#allocation4 + $0x20] sm:$0xff]
      %v2684 = vld [vmem:[#allocation4 + $0x28] sm:$0xff]
      %v2685 = vld [vmem:[#allocation4 + $0x30] sm:$0xff]
      %v2686 = vld [vmem:[#allocation4 + $0x38] sm:$0xff]
      %v2687 = vld [vmem:[#allocation4 + $0x40] sm:$0xff]
      %v2688 = vld [vmem:[#allocation4 + $0x48] sm:$0xff]
      %v2689 = vld [vmem:[#allocation4 + $0x50] sm:$0xff]
      %v2690 = vld [vmem:[#allocation4 + $0x58] sm:$0xff]
      %v2691 = vld [vmem:[#allocation4 + $0x60] sm:$0xff]
      %v2692 = vld [vmem:[#allocation4 + $0x68] sm:$0xff]
      %v2693 = vld [vmem:[#allocation4 + $0x70] sm:$0xff]
      %v2694 = vld [vmem:[#allocation4 + $0x78] sm:$0xff]
      %v2695 = vld [vmem:[#allocation4 + $0x80] sm:$0xff]
      %v2696 = vld [vmem:[#allocation4 + $0x88] sm:$0xff]
      %v2697 = vld [vmem:[#allocation4 + $0x90] sm:$0xff]
      %v2698 = vld [vmem:[#allocation4 + $0x98] sm:$0xff]
      %v2700 = vlaneseq
      %v2701 = vshrl.u32 %v2700, 7
      %v2702 = vsub.s32 0, %v2701
      %v2703 = vrot.slane %v2678, %v2702
      %v2705 = vadd.f32 %v2679, %v2703
      %v2706 = vadd.f32 %v2680, %v2703
      %v2707 = vadd.f32 %v2681, %v2703
      %v2708 = vadd.f32 %v2682, %v2703
      %v2709 = vadd.f32 %v2683, %v2703
      %v2710 = vadd.f32 %v2684, %v2703
      %v2711 = vadd.f32 %v2685, %v2703
      %v2712 = vadd.f32 %v2686, %v2703
      %v2713 = vadd.f32 %v2687, %v2703
      %v2714 = vadd.f32 %v2688, %v2703
      %v2715 = vadd.f32 %v2689, %v2703
      %v2716 = vadd.f32 %v2690, %v2703
      %v2717 = vadd.f32 %v2691, %v2703
      %v2718 = vadd.f32 %v2692, %v2703
      %v2719 = vadd.f32 %v2693, %v2703
      %v2720 = vadd.f32 %v2694, %v2703
      %v2721 = vadd.f32 %v2695, %v2703
      %v2722 = vadd.f32 %v2696, %v2703
      %v2723 = vadd.f32 %v2697, %v2703
      %v2724 = vadd.f32 %v2698, %v2703
      %v2725 = vmax.f32 %v2705, 0.0
      %v2726 = vmax.f32 %v2706, 0.0
      %v2727 = vmax.f32 %v2707, 0.0
      %v2728 = vmax.f32 %v2708, 0.0
      %v2729 = vmax.f32 %v2709, 0.0
      %v2730 = vmax.f32 %v2710, 0.0
      %v2731 = vmax.f32 %v2711, 0.0
      %v2732 = vmax.f32 %v2712, 0.0
      %v2733 = vmax.f32 %v2713, 0.0
      %v2734 = vmax.f32 %v2714, 0.0
      %v2735 = vmax.f32 %v2715, 0.0
      %v2736 = vmax.f32 %v2716, 0.0
      %v2737 = vmax.f32 %v2717, 0.0
      %v2738 = vmax.f32 %v2718, 0.0
      %v2739 = vmax.f32 %v2719, 0.0
      %v2740 = vmax.f32 %v2720, 0.0
      %v2741 = vmax.f32 %v2721, 0.0
      %v2742 = vmax.f32 %v2722, 0.0
      %v2743 = vmax.f32 %v2723, 0.0
      %v2744 = vmax.f32 %v2724, 0.0
      %vm2745 = vcmask 57344
      %vm2746 = vsmask.f32 256
      %vm2747 = vmand %vm2745, %vm2746
      %v2748 = vld [vmem:[#allocation5] sm:$0x1]
      %v2749 = vsel %vm2747, 0, %v2748
      %2750 = vst [vmem:[#allocation5] sm:$0x1] %v2749
      %v2751 = vld [vmem:[#allocation5 + $0xc] sm:$0x1]
      %v2752 = vsel %vm2747, 0, %v2751
      %2753 = vst [vmem:[#allocation5 + $0xc] sm:$0x1] %v2752
      %v2754 = vld [vmem:[#allocation5 + $0x18] sm:$0x1]
      %v2755 = vsel %vm2747, 0, %v2754
      %2756 = vst [vmem:[#allocation5 + $0x18] sm:$0x1] %v2755
      %v2757 = vld [vmem:[#allocation5 + $0x24] sm:$0x1]
      %v2758 = vsel %vm2747, 0, %v2757
      %2759 = vst [vmem:[#allocation5 + $0x24] sm:$0x1] %v2758
      %v2760 = vld [vmem:[#allocation5 + $0x30] sm:$0x1]
      %v2761 = vsel %vm2747, 0, %v2760
      %2762 = vst [vmem:[#allocation5 + $0x30] sm:$0x1] %v2761
      %v2763 = vld [vmem:[#allocation5 + $0x3c] sm:$0x1]
      %v2764 = vsel %vm2747, 0, %v2763
      %2765 = vst [vmem:[#allocation5 + $0x3c] sm:$0x1] %v2764
      %v2766 = vld [vmem:[#allocation5 + $0x48] sm:$0x1]
      %v2767 = vsel %vm2747, 0, %v2766
      %2768 = vst [vmem:[#allocation5 + $0x48] sm:$0x1] %v2767
      %v2769 = vld [vmem:[#allocation5 + $0x54] sm:$0x1]
      %v2770 = vsel %vm2747, 0, %v2769
      %2771 = vst [vmem:[#allocation5 + $0x54] sm:$0x1] %v2770
      %v2772 = vld [vmem:[#allocation5 + $0x60] sm:$0x1]
      %v2773 = vsel %vm2747, 0, %v2772
      %2774 = vst [vmem:[#allocation5 + $0x60] sm:$0x1] %v2773
      %v2775 = vld [vmem:[#allocation5 + $0x6c] sm:$0x1]
      %v2776 = vsel %vm2747, 0, %v2775
      %2777 = vst [vmem:[#allocation5 + $0x6c] sm:$0x1] %v2776
      %vm2778 = vsmask.f32 7938
      %vm2779 = vmand %vm2745, %vm2778
      %v2780 = vld [vmem:[#allocation5 + $0x8] sm:$0x1]
      %v2781 = vsel %vm2779, 0, %v2780
      %2782 = vst [vmem:[#allocation5 + $0x8] sm:$0x1] %v2781
      %v2783 = vld [vmem:[#allocation5 + $0x14] sm:$0x1]
      %v2784 = vsel %vm2779, 0, %v2783
      %2785 = vst [vmem:[#allocation5 + $0x14] sm:$0x1] %v2784
      %v2786 = vld [vmem:[#allocation5 + $0x20] sm:$0x1]
      %v2787 = vsel %vm2779, 0, %v2786
      %2788 = vst [vmem:[#allocation5 + $0x20] sm:$0x1] %v2787
      %v2789 = vld [vmem:[#allocation5 + $0x2c] sm:$0x1]
      %v2790 = vsel %vm2779, 0, %v2789
      %2791 = vst [vmem:[#allocation5 + $0x2c] sm:$0x1] %v2790
      %v2792 = vld [vmem:[#allocation5 + $0x38] sm:$0x1]
      %v2793 = vsel %vm2779, 0, %v2792
      %2794 = vst [vmem:[#allocation5 + $0x38] sm:$0x1] %v2793
      %v2795 = vld [vmem:[#allocation5 + $0x44] sm:$0x1]
      %v2796 = vsel %vm2779, 0, %v2795
      %2797 = vst [vmem:[#allocation5 + $0x44] sm:$0x1] %v2796
      %v2798 = vld [vmem:[#allocation5 + $0x50] sm:$0x1]
      %v2799 = vsel %vm2779, 0, %v2798
      %2800 = vst [vmem:[#allocation5 + $0x50] sm:$0x1] %v2799
      %v2801 = vld [vmem:[#allocation5 + $0x5c] sm:$0x1]
      %v2802 = vsel %vm2779, 0, %v2801
      %2803 = vst [vmem:[#allocation5 + $0x5c] sm:$0x1] %v2802
      %v2804 = vld [vmem:[#allocation5 + $0x68] sm:$0x1]
      %v2805 = vsel %vm2779, 0, %v2804
      %2806 = vst [vmem:[#allocation5 + $0x68] sm:$0x1] %v2805
      %v2807 = vld [vmem:[#allocation5 + $0x74] sm:$0x1]
      %v2808 = vsel %vm2779, 0, %v2807
      %2809 = vst [vmem:[#allocation5 + $0x74] sm:$0x1] %v2808
      %v2810 = vpack.c.bf16 %v2726, %v2725
      %v2811 = vpack.c.bf16 %v2728, %v2727
      %v2812 = vpack.c.bf16 %v2730, %v2729
      %v2813 = vpack.c.bf16 %v2732, %v2731
      %v2814 = vpack.c.bf16 %v2734, %v2733
      %v2815 = vpack.c.bf16 %v2736, %v2735
      %v2816 = vpack.c.bf16 %v2738, %v2737
      %v2817 = vpack.c.bf16 %v2740, %v2739
      %v2818 = vpack.c.bf16 %v2742, %v2741
      %v2819 = vpack.c.bf16 %v2744, %v2743
      %v2830 = vunpack.c.l.b16 %v2810
      %v2831 = vunpack.c.h.b16 %v2810
      %v2832 = vunpack.c.l.b16 %v2811
      %v2833 = vunpack.c.h.b16 %v2811
      %v2834 = vunpack.c.l.b16 %v2812
      %v2835 = vunpack.c.h.b16 %v2812
      %v2836 = vunpack.c.l.b16 %v2813
      %v2837 = vunpack.c.h.b16 %v2813
      %v2838 = vunpack.c.l.b16 %v2814
      %v2839 = vunpack.c.h.b16 %v2814
      %v2840 = vunpack.c.l.b16 %v2815
      %v2841 = vunpack.c.h.b16 %v2815
      %v2842 = vunpack.c.l.b16 %v2816
      %v2843 = vunpack.c.h.b16 %v2816
      %v2844 = vunpack.c.l.b16 %v2817
      %v2845 = vunpack.c.h.b16 %v2817
      %v2846 = vunpack.c.l.b16 %v2818
      %v2847 = vunpack.c.h.b16 %v2818
      %v2848 = vunpack.c.l.b16 %v2819
      %v2849 = vunpack.c.h.b16 %v2819
      %v2850 = vpack.c.b16 %v2830, %v2830
      %v2851 = vpack.c.b16 %v2831, %v2831
      %v2852 = vpack.c.b16 %v2832, %v2832
      %v2853 = vpack.c.b16 %v2833, %v2833
      %v2854 = vpack.c.b16 %v2834, %v2834
      %v2855 = vpack.c.b16 %v2835, %v2835
      %v2856 = vpack.c.b16 %v2836, %v2836
      %v2857 = vpack.c.b16 %v2837, %v2837
      %v2858 = vpack.c.b16 %v2838, %v2838
      %v2859 = vpack.c.b16 %v2839, %v2839
      %v2860 = vpack.c.b16 %v2840, %v2840
      %v2861 = vpack.c.b16 %v2841, %v2841
      %v2862 = vpack.c.b16 %v2842, %v2842
      %v2863 = vpack.c.b16 %v2843, %v2843
      %v2864 = vpack.c.b16 %v2844, %v2844
      %v2865 = vpack.c.b16 %v2845, %v2845
      %v2866 = vpack.c.b16 %v2846, %v2846
      %v2867 = vpack.c.b16 %v2847, %v2847
      %v2868 = vpack.c.b16 %v2848, %v2848
      %v2869 = vpack.c.b16 %v2849, %v2849
      %vm2870 = vsmask.f32 4368
      %vm2871 = vmor %vm2746, %vm2870
      %v2873 = vshrl.u32 %v2850, 16
      %v2875 = vrot.slane %v2873, 7
      %v2876 = vshll.u32 %v2850, 16
      %v2878 = vor.u32 %v2875, %v2876
      %v2879 = vrot.slane %v2875, 4
      %v2881 = vshrl.u32 %v2851, 16
      %v2883 = vrot.slane %v2881, 7
      %v2884 = vshll.u32 %v2851, 16
      %v2886 = vor.u32 %v2883, %v2884
      %v2887 = vsel %vm2871, %v2879, %v2886
      %v2888 = vrot.slane %v2883, 4
      %v2890 = vshrl.u32 %v2852, 16
      %v2892 = vrot.slane %v2890, 7
      %v2893 = vshll.u32 %v2852, 16
      %v2895 = vor.u32 %v2892, %v2893
      %v2896 = vrot.slane %v2892, 4
      %v2898 = vshrl.u32 %v2853, 16
      %v2900 = vrot.slane %v2898, 7
      %v2901 = vshll.u32 %v2853, 16
      %v2903 = vor.u32 %v2900, %v2901
      %v2904 = vsel %vm2871, %v2896, %v2903
      %v2905 = vrot.slane %v2900, 4
      %v2907 = vshrl.u32 %v2854, 16
      %v2909 = vrot.slane %v2907, 7
      %v2910 = vshll.u32 %v2854, 16
      %v2912 = vor.u32 %v2909, %v2910
      %v2913 = vrot.slane %v2909, 4
      %v2915 = vshrl.u32 %v2855, 16
      %v2917 = vrot.slane %v2915, 7
      %v2918 = vshll.u32 %v2855, 16
      %v2920 = vor.u32 %v2917, %v2918
      %v2921 = vsel %vm2871, %v2913, %v2920
      %v2922 = vrot.slane %v2917, 4
      %v2924 = vshrl.u32 %v2856, 16
      %v2926 = vrot.slane %v2924, 7
      %v2927 = vshll.u32 %v2856, 16
      %v2929 = vor.u32 %v2926, %v2927
      %v2930 = vrot.slane %v2926, 4
      %v2932 = vshrl.u32 %v2857, 16
      %v2934 = vrot.slane %v2932, 7
      %v2935 = vshll.u32 %v2857, 16
      %v2937 = vor.u32 %v2934, %v2935
      %v2938 = vsel %vm2871, %v2930, %v2937
      %v2939 = vrot.slane %v2934, 4
      %v2941 = vshrl.u32 %v2858, 16
      %v2943 = vrot.slane %v2941, 7
      %v2944 = vshll.u32 %v2858, 16
      %v2946 = vor.u32 %v2943, %v2944
      %v2947 = vrot.slane %v2943, 4
      %v2949 = vshrl.u32 %v2859, 16
      %v2951 = vrot.slane %v2949, 7
      %v2952 = vshll.u32 %v2859, 16
      %v2954 = vor.u32 %v2951, %v2952
      %v2955 = vsel %vm2871, %v2947, %v2954
      %v2956 = vrot.slane %v2951, 4
      %v2958 = vshrl.u32 %v2860, 16
      %v2960 = vrot.slane %v2958, 7
      %v2961 = vshll.u32 %v2860, 16
      %v2963 = vor.u32 %v2960, %v2961
      %v2964 = vrot.slane %v2960, 4
      %v2966 = vshrl.u32 %v2861, 16
      %v2968 = vrot.slane %v2966, 7
      %v2969 = vshll.u32 %v2861, 16
      %v2971 = vor.u32 %v2968, %v2969
      %v2972 = vsel %vm2871, %v2964, %v2971
      %v2973 = vrot.slane %v2968, 4
      %v2975 = vshrl.u32 %v2862, 16
      %v2977 = vrot.slane %v2975, 7
      %v2978 = vshll.u32 %v2862, 16
      %v2980 = vor.u32 %v2977, %v2978
      %v2981 = vrot.slane %v2977, 4
      %v2983 = vshrl.u32 %v2863, 16
      %v2985 = vrot.slane %v2983, 7
      %v2986 = vshll.u32 %v2863, 16
      %v2988 = vor.u32 %v2985, %v2986
      %v2989 = vsel %vm2871, %v2981, %v2988
      %v2990 = vrot.slane %v2985, 4
      %v2992 = vshrl.u32 %v2864, 16
      %v2994 = vrot.slane %v2992, 7
      %v2995 = vshll.u32 %v2864, 16
      %v2997 = vor.u32 %v2994, %v2995
      %v2998 = vrot.slane %v2994, 4
      %v3000 = vshrl.u32 %v2865, 16
      %v3002 = vrot.slane %v3000, 7
      %v3003 = vshll.u32 %v2865, 16
      %v3005 = vor.u32 %v3002, %v3003
      %v3006 = vsel %vm2871, %v2998, %v3005
      %v3007 = vrot.slane %v3002, 4
      %v3009 = vshrl.u32 %v2866, 16
      %v3011 = vrot.slane %v3009, 7
      %v3012 = vshll.u32 %v2866, 16
      %v3014 = vor.u32 %v3011, %v3012
      %v3015 = vrot.slane %v3011, 4
      %v3017 = vshrl.u32 %v2867, 16
      %v3019 = vrot.slane %v3017, 7
      %v3020 = vshll.u32 %v2867, 16
      %v3022 = vor.u32 %v3019, %v3020
      %v3023 = vsel %vm2871, %v3015, %v3022
      %v3024 = vrot.slane %v3019, 4
      %v3026 = vshrl.u32 %v2868, 16
      %v3028 = vrot.slane %v3026, 7
      %v3029 = vshll.u32 %v2868, 16
      %v3031 = vor.u32 %v3028, %v3029
      %v3032 = vrot.slane %v3028, 4
      %v3034 = vshrl.u32 %v2869, 16
      %v3036 = vrot.slane %v3034, 7
      %v3037 = vshll.u32 %v2869, 16
      %v3039 = vor.u32 %v3036, %v3037
      %v3040 = vsel %vm2871, %v3032, %v3039
      %v3041 = vrot.slane %v3036, 4
      %vm3072 = vcmask 60416
      %vm3073 = vmand %vm3072, %vm2778
      %v3074 = vld [vmem:[#allocation5] sm:$0xf]
      %v3075 = vsel %vm3073, %v2878, %v3074
      %3076 = vst [vmem:[#allocation5] sm:$0xf] %v3075
      %vm3077 = vcmask 60416
      %3078 = vst.msk [vmem:[#allocation5 + $0x4] sm:$0xf] %vm3077, %v2887
      %v3079 = vld [vmem:[#allocation5 + $0x8] sm:$0x1]
      %v3080 = vsel %vm2747, %v2888, %v3079
      %3081 = vst [vmem:[#allocation5 + $0x8] sm:$0x1] %v3080
      %v3082 = vld [vmem:[#allocation5 + $0xc] sm:$0xf]
      %v3083 = vsel %vm3073, %v2895, %v3082
      %3084 = vst [vmem:[#allocation5 + $0xc] sm:$0xf] %v3083
      %3085 = vst.msk [vmem:[#allocation5 + $0x10] sm:$0xf] %vm3077, %v2904
      %v3086 = vld [vmem:[#allocation5 + $0x14] sm:$0x1]
      %v3087 = vsel %vm2747, %v2905, %v3086
      %3088 = vst [vmem:[#allocation5 + $0x14] sm:$0x1] %v3087
      %v3089 = vld [vmem:[#allocation5 + $0x18] sm:$0xf]
      %v3090 = vsel %vm3073, %v2912, %v3089
      %3091 = vst [vmem:[#allocation5 + $0x18] sm:$0xf] %v3090
      %3092 = vst.msk [vmem:[#allocation5 + $0x1c] sm:$0xf] %vm3077, %v2921
      %v3093 = vld [vmem:[#allocation5 + $0x20] sm:$0x1]
      %v3094 = vsel %vm2747, %v2922, %v3093
      %3095 = vst [vmem:[#allocation5 + $0x20] sm:$0x1] %v3094
      %v3096 = vld [vmem:[#allocation5 + $0x24] sm:$0xf]
      %v3097 = vsel %vm3073, %v2929, %v3096
      %3098 = vst [vmem:[#allocation5 + $0x24] sm:$0xf] %v3097
      %3099 = vst.msk [vmem:[#allocation5 + $0x28] sm:$0xf] %vm3077, %v2938
      %v3100 = vld [vmem:[#allocation5 + $0x2c] sm:$0x1]
      %v3101 = vsel %vm2747, %v2939, %v3100
      %3102 = vst [vmem:[#allocation5 + $0x2c] sm:$0x1] %v3101
      %v3103 = vld [vmem:[#allocation5 + $0x30] sm:$0xf]
      %v3104 = vsel %vm3073, %v2946, %v3103
      %3105 = vst [vmem:[#allocation5 + $0x30] sm:$0xf] %v3104
      %3106 = vst.msk [vmem:[#allocation5 + $0x34] sm:$0xf] %vm3077, %v2955
      %v3107 = vld [vmem:[#allocation5 + $0x38] sm:$0x1]
      %v3108 = vsel %vm2747, %v2956, %v3107
      %3109 = vst [vmem:[#allocation5 + $0x38] sm:$0x1] %v3108
      %v3110 = vld [vmem:[#allocation5 + $0x3c] sm:$0xf]
      %v3111 = vsel %vm3073, %v2963, %v3110
      %3112 = vst [vmem:[#allocation5 + $0x3c] sm:$0xf] %v3111
      %3113 = vst.msk [vmem:[#allocation5 + $0x40] sm:$0xf] %vm3077, %v2972
      %v3114 = vld [vmem:[#allocation5 + $0x44] sm:$0x1]
      %v3115 = vsel %vm2747, %v2973, %v3114
      %3116 = vst [vmem:[#allocation5 + $0x44] sm:$0x1] %v3115
      %v3117 = vld [vmem:[#allocation5 + $0x48] sm:$0xf]
      %v3118 = vsel %vm3073, %v2980, %v3117
      %3119 = vst [vmem:[#allocation5 + $0x48] sm:$0xf] %v3118
      %3120 = vst.msk [vmem:[#allocation5 + $0x4c] sm:$0xf] %vm3077, %v2989
      %v3121 = vld [vmem:[#allocation5 + $0x50] sm:$0x1]
      %v3122 = vsel %vm2747, %v2990, %v3121
      %3123 = vst [vmem:[#allocation5 + $0x50] sm:$0x1] %v3122
      %v3124 = vld [vmem:[#allocation5 + $0x54] sm:$0xf]
      %v3125 = vsel %vm3073, %v2997, %v3124
      %3126 = vst [vmem:[#allocation5 + $0x54] sm:$0xf] %v3125
      %3127 = vst.msk [vmem:[#allocation5 + $0x58] sm:$0xf] %vm3077, %v3006
      %v3128 = vld [vmem:[#allocation5 + $0x5c] sm:$0x1]
      %v3129 = vsel %vm2747, %v3007, %v3128
      %3130 = vst [vmem:[#allocation5 + $0x5c] sm:$0x1] %v3129
      %v3131 = vld [vmem:[#allocation5 + $0x60] sm:$0xf]
      %v3132 = vsel %vm3073, %v3014, %v3131
      %3133 = vst [vmem:[#allocation5 + $0x60] sm:$0xf] %v3132
      %3134 = vst.msk [vmem:[#allocation5 + $0x64] sm:$0xf] %vm3077, %v3023
      %v3135 = vld [vmem:[#allocation5 + $0x68] sm:$0x1]
      %v3136 = vsel %vm2747, %v3024, %v3135
      %3137 = vst [vmem:[#allocation5 + $0x68] sm:$0x1] %v3136
      %v3138 = vld [vmem:[#allocation5 + $0x6c] sm:$0xf]
      %v3139 = vsel %vm3073, %v3031, %v3138
      %3140 = vst [vmem:[#allocation5 + $0x6c] sm:$0xf] %v3139
      %3141 = vst.msk [vmem:[#allocation5 + $0x70] sm:$0xf] %vm3077, %v3040
      %v3142 = vld [vmem:[#allocation5 + $0x74] sm:$0x1]
      %v3143 = vsel %vm2747, %v3041, %v3142
      %3144 = vst [vmem:[#allocation5 + $0x74] sm:$0x1] %v3143
      // Predicated region
      $region65: #{tpu_custom_call.1} parent=47 // pred_check
        %p3145 = pneg %p493
      $region66: #{tpu_custom_call.1} parent=47 // pred_check_branch
        %3147 = sbr.rel (%p3145) target = $region68
      $region67: #{tpu_custom_call.1} parent=47 // pred_region
        %3148 = vst.msk [vmem:[#allocation5] sm:$0xf] %vm3077, 0
        %3149 = vst.msk [vmem:[#allocation5 + $0x4] sm:$0xf] %vm3077, 0
        %vm3150 = vcmask 57344
        %3151 = vst.msk [vmem:[#allocation5 + $0x8] sm:$0x1] %vm3150, 0
      $region68: #{tpu_custom_call.1} parent=47 // pred_fallthru
        _
      // Predicated region
      $region69: #{tpu_custom_call.1} parent=47 // pred_check
        %p3152 = pneg %p574
      $region70: #{tpu_custom_call.1} parent=47 // pred_check_branch
        %3154 = sbr.rel (%p3152) target = $region72
      $region71: #{tpu_custom_call.1} parent=47 // pred_region
        %s3155 = scalar_lea.vmem [#allocation5], 108
        %3156 = vst.msk [vmem:[%s3155] sm:$0xf] %vm3077, 0
        %3157 = vst.msk [vmem:[%s3155 + $0x4] sm:$0xf] %vm3077, 0
        %vm3158 = vcmask 57344
        %3159 = vst.msk [vmem:[%s3155 + $0x8] sm:$0x1] %vm3158, 0
      $region72: #{tpu_custom_call.1} parent=47 // pred_fallthru
        _
      %v3160 = vld [vmem:[#allocation5] sm:$0xf]
      %v3161 = vld [vmem:[#allocation5 + $0x4] sm:$0xf]
      %v3162 = vld [vmem:[#allocation5 + $0x8] sm:$0x1]
      %v3163 = vld [vmem:[#allocation5 + $0xc] sm:$0xf]
      %v3164 = vld [vmem:[#allocation5 + $0x10] sm:$0xf]
      %v3165 = vld [vmem:[#allocation5 + $0x14] sm:$0x1]
      %v3166 = vld [vmem:[#allocation5 + $0x18] sm:$0xf]
      %v3167 = vld [vmem:[#allocation5 + $0x1c] sm:$0xf]
      %v3168 = vld [vmem:[#allocation5 + $0x20] sm:$0x1]
      %v3169 = vld [vmem:[#allocation5 + $0x24] sm:$0xf]
      %v3170 = vld [vmem:[#allocation5 + $0x28] sm:$0xf]
      %v3171 = vld [vmem:[#allocation5 + $0x2c] sm:$0x1]
      %v3172 = vld [vmem:[#allocation5 + $0x30] sm:$0xf]
      %v3173 = vld [vmem:[#allocation5 + $0x34] sm:$0xf]
      %v3174 = vld [vmem:[#allocation5 + $0x38] sm:$0x1]
      %v3175 = vld [vmem:[#allocation5 + $0x3c] sm:$0xf]
      %v3176 = vld [vmem:[#allocation5 + $0x40] sm:$0xf]
      %v3177 = vld [vmem:[#allocation5 + $0x44] sm:$0x1]
      %v3178 = vld [vmem:[#allocation5 + $0x48] sm:$0xf]
      %v3179 = vld [vmem:[#allocation5 + $0x4c] sm:$0xf]
      %v3180 = vld [vmem:[#allocation5 + $0x50] sm:$0x1]
      %v3181 = vld [vmem:[#allocation5 + $0x54] sm:$0xf]
      %v3182 = vld [vmem:[#allocation5 + $0x58] sm:$0xf]
      %v3183 = vld [vmem:[#allocation5 + $0x5c] sm:$0x1]
      %s3184 = scalar_lea.vmem [#allocation5], 12
      %v3185 = vld [vmem:[%s3184] sm:$0xf]
      %v3186 = vld [vmem:[%s3184 + $0x4] sm:$0xf]
      %v3187 = vld [vmem:[%s3184 + $0x8] sm:$0x1]
      %v3188 = vld [vmem:[%s3184 + $0xc] sm:$0xf]
      %v3189 = vld [vmem:[%s3184 + $0x10] sm:$0xf]
      %v3190 = vld [vmem:[%s3184 + $0x14] sm:$0x1]
      %v3191 = vld [vmem:[%s3184 + $0x18] sm:$0xf]
      %v3192 = vld [vmem:[%s3184 + $0x1c] sm:$0xf]
      %v3193 = vld [vmem:[%s3184 + $0x20] sm:$0x1]
      %v3194 = vld [vmem:[%s3184 + $0x24] sm:$0xf]
      %v3195 = vld [vmem:[%s3184 + $0x28] sm:$0xf]
      %v3196 = vld [vmem:[%s3184 + $0x2c] sm:$0x1]
      %v3197 = vld [vmem:[%s3184 + $0x30] sm:$0xf]
      %v3198 = vld [vmem:[%s3184 + $0x34] sm:$0xf]
      %v3199 = vld [vmem:[%s3184 + $0x38] sm:$0x1]
      %v3200 = vld [vmem:[%s3184 + $0x3c] sm:$0xf]
      %v3201 = vld [vmem:[%s3184 + $0x40] sm:$0xf]
      %v3202 = vld [vmem:[%s3184 + $0x44] sm:$0x1]
      %v3203 = vld [vmem:[%s3184 + $0x48] sm:$0xf]
      %v3204 = vld [vmem:[%s3184 + $0x4c] sm:$0xf]
      %v3205 = vld [vmem:[%s3184 + $0x50] sm:$0x1]
      %v3206 = vld [vmem:[%s3184 + $0x54] sm:$0xf]
      %v3207 = vld [vmem:[%s3184 + $0x58] sm:$0xf]
      %v3208 = vld [vmem:[%s3184 + $0x5c] sm:$0x1]
      %s3209 = scalar_lea.vmem [#allocation5], 24
      %v3210 = vld [vmem:[%s3209] sm:$0xf]
      %v3211 = vld [vmem:[%s3209 + $0x4] sm:$0xf]
      %v3212 = vld [vmem:[%s3209 + $0x8] sm:$0x1]
      %v3213 = vld [vmem:[%s3209 + $0xc] sm:$0xf]
      %v3214 = vld [vmem:[%s3209 + $0x10] sm:$0xf]
      %v3215 = vld [vmem:[%s3209 + $0x14] sm:$0x1]
      %v3216 = vld [vmem:[%s3209 + $0x18] sm:$0xf]
      %v3217 = vld [vmem:[%s3209 + $0x1c] sm:$0xf]
      %v3218 = vld [vmem:[%s3209 + $0x20] sm:$0x1]
      %v3219 = vld [vmem:[%s3209 + $0x24] sm:$0xf]
      %v3220 = vld [vmem:[%s3209 + $0x28] sm:$0xf]
      %v3221 = vld [vmem:[%s3209 + $0x2c] sm:$0x1]
      %v3222 = vld [vmem:[%s3209 + $0x30] sm:$0xf]
      %v3223 = vld [vmem:[%s3209 + $0x34] sm:$0xf]
      %v3224 = vld [vmem:[%s3209 + $0x38] sm:$0x1]
      %v3225 = vld [vmem:[%s3209 + $0x3c] sm:$0xf]
      %v3226 = vld [vmem:[%s3209 + $0x40] sm:$0xf]
      %v3227 = vld [vmem:[%s3209 + $0x44] sm:$0x1]
      %v3228 = vld [vmem:[%s3209 + $0x48] sm:$0xf]
      %v3229 = vld [vmem:[%s3209 + $0x4c] sm:$0xf]
      %v3230 = vld [vmem:[%s3209 + $0x50] sm:$0x1]
      %v3231 = vld [vmem:[%s3209 + $0x54] sm:$0xf]
      %v3232 = vld [vmem:[%s3209 + $0x58] sm:$0xf]
      %v3233 = vld [vmem:[%s3209 + $0x5c] sm:$0x1]
      %v3250 = vunpack.c.l.b16 %v3160
      %v3251 = vunpack.c.l.b16 %v3161
      %v3252 = vunpack.c.l.b16 %v3163
      %v3253 = vunpack.c.l.b16 %v3164
      %v3254 = vunpack.c.l.b16 %v3166
      %v3255 = vunpack.c.l.b16 %v3167
      %v3256 = vunpack.c.l.b16 %v3169
      %v3257 = vunpack.c.l.b16 %v3170
      %v3258 = vunpack.c.l.b16 %v3172
      %v3259 = vunpack.c.l.b16 %v3173
      %v3260 = vunpack.c.l.b16 %v3175
      %v3261 = vunpack.c.l.b16 %v3176
      %v3262 = vunpack.c.l.b16 %v3178
      %v3263 = vunpack.c.l.b16 %v3179
      %v3264 = vunpack.c.l.b16 %v3181
      %v3265 = vunpack.c.l.b16 %v3182
      %v3266 = vpack.c.b16 %v3251, %v3250
      %v3267 = vpack.c.b16 %v3253, %v3252
      %v3268 = vpack.c.b16 %v3255, %v3254
      %v3269 = vpack.c.b16 %v3257, %v3256
      %v3270 = vpack.c.b16 %v3259, %v3258
      %v3271 = vpack.c.b16 %v3261, %v3260
      %v3272 = vpack.c.b16 %v3263, %v3262
      %v3273 = vpack.c.b16 %v3265, %v3264
      %v3282 = vunpack.c.l.b16 %v3162
      %v3283 = vunpack.c.l.b16 %v3165
      %v3284 = vunpack.c.l.b16 %v3168
      %v3285 = vunpack.c.l.b16 %v3171
      %v3286 = vunpack.c.l.b16 %v3174
      %v3287 = vunpack.c.l.b16 %v3177
      %v3288 = vunpack.c.l.b16 %v3180
      %v3289 = vunpack.c.l.b16 %v3183
      %v3290 = vpack.c.b16 %v3282, %v3282
      %v3291 = vpack.c.b16 %v3283, %v3283
      %v3292 = vpack.c.b16 %v3284, %v3284
      %v3293 = vpack.c.b16 %v3285, %v3285
      %v3294 = vpack.c.b16 %v3286, %v3286
      %v3295 = vpack.c.b16 %v3287, %v3287
      %v3296 = vpack.c.b16 %v3288, %v3288
      %v3297 = vpack.c.b16 %v3289, %v3289
      %v3299 = vshrl.u32 %v3266, 16
      %v3301 = vshll.u32 %v3266, 16
      %v3303 = vrot.slane %v3301, 1
      %v3304 = vor.u32 %v3299, %v3303
      %v3306 = vshll.u32 %v3290, 16
      %v3308 = vrot.slane %v3306, 1
      %v3309 = vsel %vm667, %v3304, %v3308
      %v3311 = vshrl.u32 %v3267, 16
      %v3313 = vshll.u32 %v3267, 16
      %v3315 = vrot.slane %v3313, 1
      %v3316 = vor.u32 %v3311, %v3315
      %v3318 = vshll.u32 %v3291, 16
      %v3320 = vrot.slane %v3318, 1
      %v3321 = vsel %vm667, %v3316, %v3320
      %v3323 = vshrl.u32 %v3268, 16
      %v3325 = vshll.u32 %v3268, 16
      %v3327 = vrot.slane %v3325, 1
      %v3328 = vor.u32 %v3323, %v3327
      %v3330 = vshll.u32 %v3292, 16
      %v3332 = vrot.slane %v3330, 1
      %v3333 = vsel %vm667, %v3328, %v3332
      %v3335 = vshrl.u32 %v3269, 16
      %v3337 = vshll.u32 %v3269, 16
      %v3339 = vrot.slane %v3337, 1
      %v3340 = vor.u32 %v3335, %v3339
      %v3342 = vshll.u32 %v3293, 16
      %v3344 = vrot.slane %v3342, 1
      %v3345 = vsel %vm667, %v3340, %v3344
      %v3347 = vshrl.u32 %v3270, 16
      %v3349 = vshll.u32 %v3270, 16
      %v3351 = vrot.slane %v3349, 1
      %v3352 = vor.u32 %v3347, %v3351
      %v3354 = vshll.u32 %v3294, 16
      %v3356 = vrot.slane %v3354, 1
      %v3357 = vsel %vm667, %v3352, %v3356
      %v3359 = vshrl.u32 %v3271, 16
      %v3361 = vshll.u32 %v3271, 16
      %v3363 = vrot.slane %v3361, 1
      %v3364 = vor.u32 %v3359, %v3363
      %v3366 = vshll.u32 %v3295, 16
      %v3368 = vrot.slane %v3366, 1
      %v3369 = vsel %vm667, %v3364, %v3368
      %v3371 = vshrl.u32 %v3272, 16
      %v3373 = vshll.u32 %v3272, 16
      %v3375 = vrot.slane %v3373, 1
      %v3376 = vor.u32 %v3371, %v3375
      %v3378 = vshll.u32 %v3296, 16
      %v3380 = vrot.slane %v3378, 1
      %v3381 = vsel %vm667, %v3376, %v3380
      %v3383 = vshrl.u32 %v3273, 16
      %v3385 = vshll.u32 %v3273, 16
      %v3387 = vrot.slane %v3385, 1
      %v3388 = vor.u32 %v3383, %v3387
      %v3390 = vshll.u32 %v3297, 16
      %v3392 = vrot.slane %v3390, 1
      %v3393 = vsel %vm667, %v3388, %v3392
      %3394 = vrot.lane.b32.xlu0 %v3309, 8
      %v3395 = vpop.permute.xlu0 %3394
      %3396 = vrot.lane.b32.xlu0 %v3321, 8
      %v3397 = vpop.permute.xlu0 %3396
      %3398 = vrot.lane.b32.xlu0 %v3333, 8
      %v3399 = vpop.permute.xlu0 %3398
      %3400 = vrot.lane.b32.xlu0 %v3345, 8
      %v3401 = vpop.permute.xlu0 %3400
      %3402 = vrot.lane.b32.xlu0 %v3357, 8
      %v3403 = vpop.permute.xlu0 %3402
      %3404 = vrot.lane.b32.xlu0 %v3369, 8
      %v3405 = vpop.permute.xlu0 %3404
      %3406 = vrot.lane.b32.xlu0 %v3381, 8
      %v3407 = vpop.permute.xlu0 %3406
      %3408 = vrot.lane.b32.xlu0 %v3393, 8
      %v3409 = vpop.permute.xlu0 %3408
      %vm3410 = vcmask 1046528
      %v3411 = vrot.slane %v3266, 1
      %v3412 = vrot.slane %v3290, 1
      %v3413 = vsel %vm3410, %v3411, %v3412
      %v3414 = vrot.slane %v3267, 1
      %v3415 = vrot.slane %v3291, 1
      %v3416 = vsel %vm3410, %v3414, %v3415
      %v3417 = vrot.slane %v3268, 1
      %v3418 = vrot.slane %v3292, 1
      %v3419 = vsel %vm3410, %v3417, %v3418
      %v3420 = vrot.slane %v3269, 1
      %v3421 = vrot.slane %v3293, 1
      %v3422 = vsel %vm3410, %v3420, %v3421
      %v3423 = vrot.slane %v3270, 1
      %v3424 = vrot.slane %v3294, 1
      %v3425 = vsel %vm3410, %v3423, %v3424
      %v3426 = vrot.slane %v3271, 1
      %v3427 = vrot.slane %v3295, 1
      %v3428 = vsel %vm3410, %v3426, %v3427
      %v3429 = vrot.slane %v3272, 1
      %v3430 = vrot.slane %v3296, 1
      %v3431 = vsel %vm3410, %v3429, %v3430
      %v3432 = vrot.slane %v3273, 1
      %v3433 = vrot.slane %v3297, 1
      %v3434 = vsel %vm3410, %v3432, %v3433
      %3435 = vrot.lane.b32.xlu0 %v3413, 16
      %v3436 = vpop.permute.xlu0 %3435
      %3437 = vrot.lane.b32.xlu0 %v3416, 16
      %v3438 = vpop.permute.xlu0 %3437
      %3439 = vrot.lane.b32.xlu0 %v3419, 16
      %v3440 = vpop.permute.xlu0 %3439
      %3441 = vrot.lane.b32.xlu0 %v3422, 16
      %v3442 = vpop.permute.xlu0 %3441
      %3443 = vrot.lane.b32.xlu0 %v3425, 16
      %v3444 = vpop.permute.xlu0 %3443
      %3445 = vrot.lane.b32.xlu0 %v3428, 16
      %v3446 = vpop.permute.xlu0 %3445
      %3447 = vrot.lane.b32.xlu0 %v3431, 16
      %v3448 = vpop.permute.xlu0 %3447
      %3449 = vrot.lane.b32.xlu0 %v3434, 16
      %v3450 = vpop.permute.xlu0 %3449
      %v3467 = vunpack.c.l.b16 %v3185
      %v3468 = vunpack.c.l.b16 %v3186
      %v3469 = vunpack.c.l.b16 %v3188
      %v3470 = vunpack.c.l.b16 %v3189
      %v3471 = vunpack.c.l.b16 %v3191
      %v3472 = vunpack.c.l.b16 %v3192
      %v3473 = vunpack.c.l.b16 %v3194
      %v3474 = vunpack.c.l.b16 %v3195
      %v3475 = vunpack.c.l.b16 %v3197
      %v3476 = vunpack.c.l.b16 %v3198
      %v3477 = vunpack.c.l.b16 %v3200
      %v3478 = vunpack.c.l.b16 %v3201
      %v3479 = vunpack.c.l.b16 %v3203
      %v3480 = vunpack.c.l.b16 %v3204
      %v3481 = vunpack.c.l.b16 %v3206
      %v3482 = vunpack.c.l.b16 %v3207
      %v3483 = vpack.c.b16 %v3468, %v3467
      %v3484 = vpack.c.b16 %v3470, %v3469
      %v3485 = vpack.c.b16 %v3472, %v3471
      %v3486 = vpack.c.b16 %v3474, %v3473
      %v3487 = vpack.c.b16 %v3476, %v3475
      %v3488 = vpack.c.b16 %v3478, %v3477
      %v3489 = vpack.c.b16 %v3480, %v3479
      %v3490 = vpack.c.b16 %v3482, %v3481
      %3491 = vrot.lane.b32.xlu0 %v3483, 24
      %v3492 = vpop.permute.xlu0 %3491
      %3493 = vrot.lane.b32.xlu0 %v3484, 24
      %v3494 = vpop.permute.xlu0 %3493
      %3495 = vrot.lane.b32.xlu0 %v3485, 24
      %v3496 = vpop.permute.xlu0 %3495
      %3497 = vrot.lane.b32.xlu0 %v3486, 24
      %v3498 = vpop.permute.xlu0 %3497
      %3499 = vrot.lane.b32.xlu0 %v3487, 24
      %v3500 = vpop.permute.xlu0 %3499
      %3501 = vrot.lane.b32.xlu0 %v3488, 24
      %v3502 = vpop.permute.xlu0 %3501
      %3503 = vrot.lane.b32.xlu0 %v3489, 24
      %v3504 = vpop.permute.xlu0 %3503
      %3505 = vrot.lane.b32.xlu0 %v3490, 24
      %v3506 = vpop.permute.xlu0 %3505
      %v3515 = vunpack.c.l.b16 %v3187
      %v3516 = vunpack.c.l.b16 %v3190
      %v3517 = vunpack.c.l.b16 %v3193
      %v3518 = vunpack.c.l.b16 %v3196
      %v3519 = vunpack.c.l.b16 %v3199
      %v3520 = vunpack.c.l.b16 %v3202
      %v3521 = vunpack.c.l.b16 %v3205
      %v3522 = vunpack.c.l.b16 %v3208
      %v3523 = vpack.c.b16 %v3515, %v3515
      %v3524 = vpack.c.b16 %v3516, %v3516
      %v3525 = vpack.c.b16 %v3517, %v3517
      %v3526 = vpack.c.b16 %v3518, %v3518
      %v3527 = vpack.c.b16 %v3519, %v3519
      %v3528 = vpack.c.b16 %v3520, %v3520
      %v3529 = vpack.c.b16 %v3521, %v3521
      %v3530 = vpack.c.b16 %v3522, %v3522
      %v3532 = vshrl.u32 %v3483, 16
      %v3534 = vshll.u32 %v3483, 16
      %v3536 = vrot.slane %v3534, 1
      %v3537 = vor.u32 %v3532, %v3536
      %v3539 = vshll.u32 %v3523, 16
      %v3541 = vrot.slane %v3539, 1
      %v3542 = vsel %vm667, %v3537, %v3541
      %v3544 = vshrl.u32 %v3484, 16
      %v3546 = vshll.u32 %v3484, 16
      %v3548 = vrot.slane %v3546, 1
      %v3549 = vor.u32 %v3544, %v3548
      %v3551 = vshll.u32 %v3524, 16
      %v3553 = vrot.slane %v3551, 1
      %v3554 = vsel %vm667, %v3549, %v3553
      %v3556 = vshrl.u32 %v3485, 16
      %v3558 = vshll.u32 %v3485, 16
      %v3560 = vrot.slane %v3558, 1
      %v3561 = vor.u32 %v3556, %v3560
      %v3563 = vshll.u32 %v3525, 16
      %v3565 = vrot.slane %v3563, 1
      %v3566 = vsel %vm667, %v3561, %v3565
      %v3568 = vshrl.u32 %v3486, 16
      %v3570 = vshll.u32 %v3486, 16
      %v3572 = vrot.slane %v3570, 1
      %v3573 = vor.u32 %v3568, %v3572
      %v3575 = vshll.u32 %v3526, 16
      %v3577 = vrot.slane %v3575, 1
      %v3578 = vsel %vm667, %v3573, %v3577
      %v3580 = vshrl.u32 %v3487, 16
      %v3582 = vshll.u32 %v3487, 16
      %v3584 = vrot.slane %v3582, 1
      %v3585 = vor.u32 %v3580, %v3584
      %v3587 = vshll.u32 %v3527, 16
      %v3589 = vrot.slane %v3587, 1
      %v3590 = vsel %vm667, %v3585, %v3589
      %v3592 = vshrl.u32 %v3488, 16
      %v3594 = vshll.u32 %v3488, 16
      %v3596 = vrot.slane %v3594, 1
      %v3597 = vor.u32 %v3592, %v3596
      %v3599 = vshll.u32 %v3528, 16
      %v3601 = vrot.slane %v3599, 1
      %v3602 = vsel %vm667, %v3597, %v3601
      %v3604 = vshrl.u32 %v3489, 16
      %v3606 = vshll.u32 %v3489, 16
      %v3608 = vrot.slane %v3606, 1
      %v3609 = vor.u32 %v3604, %v3608
      %v3611 = vshll.u32 %v3529, 16
      %v3613 = vrot.slane %v3611, 1
      %v3614 = vsel %vm667, %v3609, %v3613
      %v3616 = vshrl.u32 %v3490, 16
      %v3618 = vshll.u32 %v3490, 16
      %v3620 = vrot.slane %v3618, 1
      %v3621 = vor.u32 %v3616, %v3620
      %v3623 = vshll.u32 %v3530, 16
      %v3625 = vrot.slane %v3623, 1
      %v3626 = vsel %vm667, %v3621, %v3625
      %3627 = vrot.lane.b32.xlu0 %v3542, 32
      %v3628 = vpop.permute.xlu0 %3627
      %3629 = vrot.lane.b32.xlu0 %v3554, 32
      %v3630 = vpop.permute.xlu0 %3629
      %3631 = vrot.lane.b32.xlu0 %v3566, 32
      %v3632 = vpop.permute.xlu0 %3631
      %3633 = vrot.lane.b32.xlu0 %v3578, 32
      %v3634 = vpop.permute.xlu0 %3633
      %3635 = vrot.lane.b32.xlu0 %v3590, 32
      %v3636 = vpop.permute.xlu0 %3635
      %3637 = vrot.lane.b32.xlu0 %v3602, 32
      %v3638 = vpop.permute.xlu0 %3637
      %3639 = vrot.lane.b32.xlu0 %v3614, 32
      %v3640 = vpop.permute.xlu0 %3639
      %3641 = vrot.lane.b32.xlu0 %v3626, 32
      %v3642 = vpop.permute.xlu0 %3641
      %v3643 = vrot.slane %v3483, 1
      %v3644 = vrot.slane %v3523, 1
      %v3645 = vsel %vm3410, %v3643, %v3644
      %v3646 = vrot.slane %v3484, 1
      %v3647 = vrot.slane %v3524, 1
      %v3648 = vsel %vm3410, %v3646, %v3647
      %v3649 = vrot.slane %v3485, 1
      %v3650 = vrot.slane %v3525, 1
      %v3651 = vsel %vm3410, %v3649, %v3650
      %v3652 = vrot.slane %v3486, 1
      %v3653 = vrot.slane %v3526, 1
      %v3654 = vsel %vm3410, %v3652, %v3653
      %v3655 = vrot.slane %v3487, 1
      %v3656 = vrot.slane %v3527, 1
      %v3657 = vsel %vm3410, %v3655, %v3656
      %v3658 = vrot.slane %v3488, 1
      %v3659 = vrot.slane %v3528, 1
      %v3660 = vsel %vm3410, %v3658, %v3659
      %v3661 = vrot.slane %v3489, 1
      %v3662 = vrot.slane %v3529, 1
      %v3663 = vsel %vm3410, %v3661, %v3662
      %v3664 = vrot.slane %v3490, 1
      %v3665 = vrot.slane %v3530, 1
      %v3666 = vsel %vm3410, %v3664, %v3665
      %3667 = vrot.lane.b32.xlu0 %v3645, 40
      %v3668 = vpop.permute.xlu0 %3667
      %3669 = vrot.lane.b32.xlu0 %v3648, 40
      %v3670 = vpop.permute.xlu0 %3669
      %3671 = vrot.lane.b32.xlu0 %v3651, 40
      %v3672 = vpop.permute.xlu0 %3671
      %3673 = vrot.lane.b32.xlu0 %v3654, 40
      %v3674 = vpop.permute.xlu0 %3673
      %3675 = vrot.lane.b32.xlu0 %v3657, 40
      %v3676 = vpop.permute.xlu0 %3675
      %3677 = vrot.lane.b32.xlu0 %v3660, 40
      %v3678 = vpop.permute.xlu0 %3677
      %3679 = vrot.lane.b32.xlu0 %v3663, 40
      %v3680 = vpop.permute.xlu0 %3679
      %3681 = vrot.lane.b32.xlu0 %v3666, 40
      %v3682 = vpop.permute.xlu0 %3681
      %v3699 = vunpack.c.l.b16 %v3210
      %v3700 = vunpack.c.l.b16 %v3211
      %v3701 = vunpack.c.l.b16 %v3213
      %v3702 = vunpack.c.l.b16 %v3214
      %v3703 = vunpack.c.l.b16 %v3216
      %v3704 = vunpack.c.l.b16 %v3217
      %v3705 = vunpack.c.l.b16 %v3219
      %v3706 = vunpack.c.l.b16 %v3220
      %v3707 = vunpack.c.l.b16 %v3222
      %v3708 = vunpack.c.l.b16 %v3223
      %v3709 = vunpack.c.l.b16 %v3225
      %v3710 = vunpack.c.l.b16 %v3226
      %v3711 = vunpack.c.l.b16 %v3228
      %v3712 = vunpack.c.l.b16 %v3229
      %v3713 = vunpack.c.l.b16 %v3231
      %v3714 = vunpack.c.l.b16 %v3232
      %v3715 = vpack.c.b16 %v3700, %v3699
      %v3716 = vpack.c.b16 %v3702, %v3701
      %v3717 = vpack.c.b16 %v3704, %v3703
      %v3718 = vpack.c.b16 %v3706, %v3705
      %v3719 = vpack.c.b16 %v3708, %v3707
      %v3720 = vpack.c.b16 %v3710, %v3709
      %v3721 = vpack.c.b16 %v3712, %v3711
      %v3722 = vpack.c.b16 %v3714, %v3713
      %3723 = vrot.lane.b32.xlu0 %v3715, 48
      %v3724 = vpop.permute.xlu0 %3723
      %3725 = vrot.lane.b32.xlu0 %v3716, 48
      %v3726 = vpop.permute.xlu0 %3725
      %3727 = vrot.lane.b32.xlu0 %v3717, 48
      %v3728 = vpop.permute.xlu0 %3727
      %3729 = vrot.lane.b32.xlu0 %v3718, 48
      %v3730 = vpop.permute.xlu0 %3729
      %3731 = vrot.lane.b32.xlu0 %v3719, 48
      %v3732 = vpop.permute.xlu0 %3731
      %3733 = vrot.lane.b32.xlu0 %v3720, 48
      %v3734 = vpop.permute.xlu0 %3733
      %3735 = vrot.lane.b32.xlu0 %v3721, 48
      %v3736 = vpop.permute.xlu0 %3735
      %3737 = vrot.lane.b32.xlu0 %v3722, 48
      %v3738 = vpop.permute.xlu0 %3737
      %v3747 = vunpack.c.l.b16 %v3212
      %v3748 = vunpack.c.l.b16 %v3215
      %v3749 = vunpack.c.l.b16 %v3218
      %v3750 = vunpack.c.l.b16 %v3221
      %v3751 = vunpack.c.l.b16 %v3224
      %v3752 = vunpack.c.l.b16 %v3227
      %v3753 = vunpack.c.l.b16 %v3230
      %v3754 = vunpack.c.l.b16 %v3233
      %v3755 = vpack.c.b16 %v3747, %v3747
      %v3756 = vpack.c.b16 %v3748, %v3748
      %v3757 = vpack.c.b16 %v3749, %v3749
      %v3758 = vpack.c.b16 %v3750, %v3750
      %v3759 = vpack.c.b16 %v3751, %v3751
      %v3760 = vpack.c.b16 %v3752, %v3752
      %v3761 = vpack.c.b16 %v3753, %v3753
      %v3762 = vpack.c.b16 %v3754, %v3754
      %v3764 = vshrl.u32 %v3715, 16
      %v3766 = vshll.u32 %v3715, 16
      %v3768 = vrot.slane %v3766, 1
      %v3769 = vor.u32 %v3764, %v3768
      %v3771 = vshll.u32 %v3755, 16
      %v3773 = vrot.slane %v3771, 1
      %v3774 = vsel %vm667, %v3769, %v3773
      %v3776 = vshrl.u32 %v3716, 16
      %v3778 = vshll.u32 %v3716, 16
      %v3780 = vrot.slane %v3778, 1
      %v3781 = vor.u32 %v3776, %v3780
      %v3783 = vshll.u32 %v3756, 16
      %v3785 = vrot.slane %v3783, 1
      %v3786 = vsel %vm667, %v3781, %v3785
      %v3788 = vshrl.u32 %v3717, 16
      %v3790 = vshll.u32 %v3717, 16
      %v3792 = vrot.slane %v3790, 1
      %v3793 = vor.u32 %v3788, %v3792
      %v3795 = vshll.u32 %v3757, 16
      %v3797 = vrot.slane %v3795, 1
      %v3798 = vsel %vm667, %v3793, %v3797
      %v3800 = vshrl.u32 %v3718, 16
      %v3802 = vshll.u32 %v3718, 16
      %v3804 = vrot.slane %v3802, 1
      %v3805 = vor.u32 %v3800, %v3804
      %v3807 = vshll.u32 %v3758, 16
      %v3809 = vrot.slane %v3807, 1
      %v3810 = vsel %vm667, %v3805, %v3809
      %v3812 = vshrl.u32 %v3719, 16
      %v3814 = vshll.u32 %v3719, 16
      %v3816 = vrot.slane %v3814, 1
      %v3817 = vor.u32 %v3812, %v3816
      %v3819 = vshll.u32 %v3759, 16
      %v3821 = vrot.slane %v3819, 1
      %v3822 = vsel %vm667, %v3817, %v3821
      %v3824 = vshrl.u32 %v3720, 16
      %v3826 = vshll.u32 %v3720, 16
      %v3828 = vrot.slane %v3826, 1
      %v3829 = vor.u32 %v3824, %v3828
      %v3831 = vshll.u32 %v3760, 16
      %v3833 = vrot.slane %v3831, 1
      %v3834 = vsel %vm667, %v3829, %v3833
      %v3836 = vshrl.u32 %v3721, 16
      %v3838 = vshll.u32 %v3721, 16
      %v3840 = vrot.slane %v3838, 1
      %v3841 = vor.u32 %v3836, %v3840
      %v3843 = vshll.u32 %v3761, 16
      %v3845 = vrot.slane %v3843, 1
      %v3846 = vsel %vm667, %v3841, %v3845
      %v3848 = vshrl.u32 %v3722, 16
      %v3850 = vshll.u32 %v3722, 16
      %v3852 = vrot.slane %v3850, 1
      %v3853 = vor.u32 %v3848, %v3852
      %v3855 = vshll.u32 %v3762, 16
      %v3857 = vrot.slane %v3855, 1
      %v3858 = vsel %vm667, %v3853, %v3857
      %3859 = vrot.lane.b32.xlu0 %v3774, 56
      %v3860 = vpop.permute.xlu0 %3859
      %3861 = vrot.lane.b32.xlu0 %v3786, 56
      %v3862 = vpop.permute.xlu0 %3861
      %3863 = vrot.lane.b32.xlu0 %v3798, 56
      %v3864 = vpop.permute.xlu0 %3863
      %3865 = vrot.lane.b32.xlu0 %v3810, 56
      %v3866 = vpop.permute.xlu0 %3865
      %3867 = vrot.lane.b32.xlu0 %v3822, 56
      %v3868 = vpop.permute.xlu0 %3867
      %3869 = vrot.lane.b32.xlu0 %v3834, 56
      %v3870 = vpop.permute.xlu0 %3869
      %3871 = vrot.lane.b32.xlu0 %v3846, 56
      %v3872 = vpop.permute.xlu0 %3871
      %3873 = vrot.lane.b32.xlu0 %v3858, 56
      %v3874 = vpop.permute.xlu0 %3873
      %v3875 = vrot.slane %v3715, 1
      %v3876 = vrot.slane %v3755, 1
      %v3877 = vsel %vm3410, %v3875, %v3876
      %v3878 = vrot.slane %v3716, 1
      %v3879 = vrot.slane %v3756, 1
      %v3880 = vsel %vm3410, %v3878, %v3879
      %v3881 = vrot.slane %v3717, 1
      %v3882 = vrot.slane %v3757, 1
      %v3883 = vsel %vm3410, %v3881, %v3882
      %v3884 = vrot.slane %v3718, 1
      %v3885 = vrot.slane %v3758, 1
      %v3886 = vsel %vm3410, %v3884, %v3885
      %v3887 = vrot.slane %v3719, 1
      %v3888 = vrot.slane %v3759, 1
      %v3889 = vsel %vm3410, %v3887, %v3888
      %v3890 = vrot.slane %v3720, 1
      %v3891 = vrot.slane %v3760, 1
      %v3892 = vsel %vm3410, %v3890, %v3891
      %v3893 = vrot.slane %v3721, 1
      %v3894 = vrot.slane %v3761, 1
      %v3895 = vsel %vm3410, %v3893, %v3894
      %v3896 = vrot.slane %v3722, 1
      %v3897 = vrot.slane %v3762, 1
      %v3898 = vsel %vm3410, %v3896, %v3897
      %3899 = vrot.lane.b32.xlu0 %v3877, 64
      %v3900 = vpop.permute.xlu0 %3899
      %3901 = vrot.lane.b32.xlu0 %v3880, 64
      %v3902 = vpop.permute.xlu0 %3901
      %3903 = vrot.lane.b32.xlu0 %v3883, 64
      %v3904 = vpop.permute.xlu0 %3903
      %3905 = vrot.lane.b32.xlu0 %v3886, 64
      %v3906 = vpop.permute.xlu0 %3905
      %3907 = vrot.lane.b32.xlu0 %v3889, 64
      %v3908 = vpop.permute.xlu0 %3907
      %3909 = vrot.lane.b32.xlu0 %v3892, 64
      %v3910 = vpop.permute.xlu0 %3909
      %3911 = vrot.lane.b32.xlu0 %v3895, 64
      %v3912 = vpop.permute.xlu0 %3911
      %3913 = vrot.lane.b32.xlu0 %v3898, 64
      %v3914 = vpop.permute.xlu0 %3913
      %v3916 = vsel %vm444, %v3266, %v3395
      %v3918 = vsel %vm444, %v3267, %v3397
      %v3920 = vsel %vm444, %v3268, %v3399
      %v3922 = vsel %vm444, %v3269, %v3401
      %v3924 = vsel %vm444, %v3270, %v3403
      %v3926 = vsel %vm444, %v3271, %v3405
      %v3928 = vsel %vm444, %v3272, %v3407
      %v3930 = vsel %vm444, %v3273, %v3409
      %v3932 = vsel %vm1272, %v3916, %v3436
      %v3934 = vsel %vm1272, %v3918, %v3438
      %v3936 = vsel %vm1272, %v3920, %v3440
      %v3938 = vsel %vm1272, %v3922, %v3442
      %v3940 = vsel %vm1272, %v3924, %v3444
      %v3942 = vsel %vm1272, %v3926, %v3446
      %v3944 = vsel %vm1272, %v3928, %v3448
      %v3946 = vsel %vm1272, %v3930, %v3450
      %v3948 = vsel %vm1315, %v3932, %v3492
      %v3950 = vsel %vm1315, %v3934, %v3494
      %v3952 = vsel %vm1315, %v3936, %v3496
      %v3954 = vsel %vm1315, %v3938, %v3498
      %v3956 = vsel %vm1315, %v3940, %v3500
      %v3958 = vsel %vm1315, %v3942, %v3502
      %v3960 = vsel %vm1315, %v3944, %v3504
      %v3962 = vsel %vm1315, %v3946, %v3506
      %v3964 = vsel %vm1372, %v3948, %v3628
      %v3966 = vsel %vm1372, %v3950, %v3630
      %v3968 = vsel %vm1372, %v3952, %v3632
      %v3970 = vsel %vm1372, %v3954, %v3634
      %v3972 = vsel %vm1372, %v3956, %v3636
      %v3974 = vsel %vm1372, %v3958, %v3638
      %v3976 = vsel %vm1372, %v3960, %v3640
      %v3978 = vsel %vm1372, %v3962, %v3642
      %v3980 = vsel %vm1514, %v3964, %v3668
      %v3982 = vsel %vm1514, %v3966, %v3670
      %v3984 = vsel %vm1514, %v3968, %v3672
      %v3986 = vsel %vm1514, %v3970, %v3674
      %v3988 = vsel %vm1514, %v3972, %v3676
      %v3990 = vsel %vm1514, %v3974, %v3678
      %v3992 = vsel %vm1514, %v3976, %v3680
      %v3994 = vsel %vm1514, %v3978, %v3682
      %vm3995 = vcmask 392192
      %v3997 = vsel %vm3995, %v3980, %v3724
      %v3999 = vsel %vm3995, %v3982, %v3726
      %v4001 = vsel %vm3995, %v3984, %v3728
      %v4003 = vsel %vm3995, %v3986, %v3730
      %v4005 = vsel %vm3995, %v3988, %v3732
      %v4007 = vsel %vm3995, %v3990, %v3734
      %v4009 = vsel %vm3995, %v3992, %v3736
      %v4011 = vsel %vm3995, %v3994, %v3738
      %vm4012 = vcmask 457728
      %v4014 = vsel %vm4012, %v3997, %v3860
      %v4016 = vsel %vm4012, %v3999, %v3862
      %v4018 = vsel %vm4012, %v4001, %v3864
      %v4020 = vsel %vm4012, %v4003, %v3866
      %v4022 = vsel %vm4012, %v4005, %v3868
      %v4024 = vsel %vm4012, %v4007, %v3870
      %v4026 = vsel %vm4012, %v4009, %v3872
      %v4028 = vsel %vm4012, %v4011, %v3874
      %vm4029 = vcmask 523264
      %v4031 = vsel %vm4029, %v4014, %v3900
      %v4033 = vsel %vm4029, %v4016, %v3902
      %v4035 = vsel %vm4029, %v4018, %v3904
      %v4037 = vsel %vm4029, %v4020, %v3906
      %v4039 = vsel %vm4029, %v4022, %v3908
      %v4041 = vsel %vm4029, %v4024, %v3910
      %v4043 = vsel %vm4029, %v4026, %v3912
      %v4045 = vsel %vm4029, %v4028, %v3914
      %v4046 = vld [vmem:[%s5] sm:$0xf]
      %v4047 = vld [vmem:[%s5 + $0x4] sm:$0xf]
      %v4048 = vld [vmem:[%s5 + $0x8] sm:$0xf]
      %v4049 = vld [vmem:[%s5 + $0xc] sm:$0xf]
      %v4050 = vld [vmem:[%s5 + $0x10] sm:$0xf]
      %v4051 = vld [vmem:[%s5 + $0x14] sm:$0xf]
      %v4052 = vld [vmem:[%s5 + $0x18] sm:$0xf]
      %v4053 = vld [vmem:[%s5 + $0x1c] sm:$0xf]
      %v4054 = vld [vmem:[%s5 + $0x20] sm:$0xf]
      %v4055 = vld [vmem:[%s6] sm:$0x1]
      %v4057 = vlaneseq
      %v4058 = vshrl.u32 %v4057, 7
      %v4059 = vsub.s32 0, %v4058
      %v4060 = vrot.slane %v4055, %v4059
      %v4071 = vunpack.c.l.b16 %v4046
      %v4072 = vunpack.c.l.b16 %v4047
      %v4073 = vunpack.c.l.b16 %v4048
      %v4074 = vunpack.c.l.b16 %v4049
      %v4075 = vunpack.c.l.b16 %v4050
      %v4076 = vunpack.c.l.b16 %v4051
      %v4077 = vunpack.c.l.b16 %v4052
      %v4078 = vunpack.c.l.b16 %v4053
      %v4079 = vunpack.c.l.b16 %v4054
      %v4080 = vpack.c.b16 %v4072, %v4071
      %v4081 = vpack.c.b16 %v4074, %v4073
      %v4082 = vpack.c.b16 %v4076, %v4075
      %v4083 = vpack.c.b16 %v4078, %v4077
      %v4084 = vpack.c.b16 %v4079, %v4079
      %vm4089 = vcmask 588800
      %v4090 = vsel %vm4089, %v4031, 0
      %v4092 = vsel %vm4089, %v4033, 0
      %v4094 = vsel %vm4089, %v4035, 0
      %v4096 = vsel %vm4089, %v4037, 0
      %v4098 = vsel %vm4089, %v4039, 0
      %v4100 = vsel %vm4089, %v4041, 0
      %v4102 = vsel %vm4089, %v4043, 0
      %v4104 = vsel %vm4089, %v4045, 0
      %v4107 = vsel %vm1589, %v4084, 0
      %4109 = vmatprep.subr.bf16.mxu0 0
      %4110 = vmatpush1.bf16.msra.mxu0 %v4080
      %4111 = vmatprep.subr.bf16.mxu0 0
      %4112 = vmatpush1.bf16.msra.mxu0 %v4081
      %4113 = vmatprep.subr.bf16.mxu0 0
      %4114 = vmatpush1.bf16.msra.mxu0 %v4082
      %4115 = vmatprep.subr.bf16.mxu0 0
      %4116 = vmatpush1.bf16.msra.mxu0 %v4083
      %4117 = vmatprep.subr.bf16.mxu0 0
      %4118 = vmatpush1.bf16.msra.mxu0 %v4107
      %4119 = vmatprep.subr.bf16.mxu0 0
      %4120 = vmatpush1.bf16.msra.mxu0 0
      %4121 = vmatprep.subr.bf16.mxu0 0
      %4122 = vmatpush1.bf16.msra.mxu0 0
      %4123 = vmatprep.subr.bf16.mxu0 0
      %4124 = vmatpush1.bf16.msra.mxu0 0
      %4125 = vmatprep.subr.bf16.mxu0 0
      %4126 = vmatpush1.bf16.msra.mxu0 0
      %4127 = vmatprep.subr.bf16.mxu0 0
      %4128 = vmatpush1.bf16.msra.mxu0 0
      %4129 = vmatprep.subr.bf16.mxu0 0
      %4130 = vmatpush1.bf16.msra.mxu0 0
      %4131 = vmatprep.subr.bf16.mxu0 0
      %4132 = vmatpush1.bf16.msra.mxu0 0
      %4133 = vmatprep.subr.bf16.mxu0 0
      %4134 = vmatpush1.bf16.msra.mxu0 0
      %4135 = vmatprep.subr.bf16.mxu0 0
      %4136 = vmatpush1.bf16.msra.mxu0 0
      %4137 = vmatprep.subr.bf16.mxu0 0
      %4138 = vmatpush1.bf16.msra.mxu0 0
      %4139 = vmatprep.subr.bf16.mxu0 0
      %4140 = vmatpush1.bf16.msra.mxu0 0
      %4141 = vmatprep.mubr.bf16.mxu0 0
      %4142 = vmatmul.mubr.bf16.gmra.mrb[0].mxu0 %v4090
      %v4143 = vpop.f32.mrb[0].mxu0
      %v4144 = vadd.f32 %v4060, %v4143
      %v4145 = vpop.f32.mrb[0].mxu0
      %v4146 = vpop.f32.mrb[0].mxu0
      %v4147 = vadd.f32 %v4060, %v4146
      %v4148 = vpop.f32.mrb[0].mxu0
      %4149 = vmatprep.mubr.bf16.mxu0 0
      %4150 = vmatmul.mubr.bf16.gmra.mrb[0].mxu0 %v4092
      %v4151 = vpop.f32.mrb[0].mxu0
      %v4152 = vadd.f32 %v4060, %v4151
      %v4153 = vpop.f32.mrb[0].mxu0
      %v4154 = vpop.f32.mrb[0].mxu0
      %v4155 = vadd.f32 %v4060, %v4154
      %v4156 = vpop.f32.mrb[0].mxu0
      %4157 = vmatprep.mubr.bf16.mxu0 0
      %4158 = vmatmul.mubr.bf16.gmra.mrb[0].mxu0 %v4094
      %v4159 = vpop.f32.mrb[0].mxu0
      %v4160 = vadd.f32 %v4060, %v4159
      %v4161 = vpop.f32.mrb[0].mxu0
      %v4162 = vpop.f32.mrb[0].mxu0
      %v4163 = vadd.f32 %v4060, %v4162
      %v4164 = vpop.f32.mrb[0].mxu0
      %4165 = vmatprep.mubr.bf16.mxu0 0
      %4166 = vmatmul.mubr.bf16.gmra.mrb[0].mxu0 %v4096
      %v4167 = vpop.f32.mrb[0].mxu0
      %v4168 = vadd.f32 %v4060, %v4167
      %v4169 = vpop.f32.mrb[0].mxu0
      %v4170 = vpop.f32.mrb[0].mxu0
      %v4171 = vadd.f32 %v4060, %v4170
      %v4172 = vpop.f32.mrb[0].mxu0
      %4173 = vmatprep.mubr.bf16.mxu0 0
      %4174 = vmatmul.mubr.bf16.gmra.mrb[0].mxu0 %v4098
      %v4175 = vpop.f32.mrb[0].mxu0
      %v4176 = vadd.f32 %v4060, %v4175
      %v4177 = vpop.f32.mrb[0].mxu0
      %v4178 = vpop.f32.mrb[0].mxu0
      %v4179 = vadd.f32 %v4060, %v4178
      %v4180 = vpop.f32.mrb[0].mxu0
      %4181 = vmatprep.mubr.bf16.mxu0 0
      %4182 = vmatmul.mubr.bf16.gmra.mrb[0].mxu0 %v4100
      %v4183 = vpop.f32.mrb[0].mxu0
      %v4184 = vadd.f32 %v4060, %v4183
      %v4185 = vpop.f32.mrb[0].mxu0
      %v4186 = vpop.f32.mrb[0].mxu0
      %v4187 = vadd.f32 %v4060, %v4186
      %v4188 = vpop.f32.mrb[0].mxu0
      %4189 = vmatprep.mubr.bf16.mxu0 0
      %4190 = vmatmul.mubr.bf16.gmra.mrb[0].mxu0 %v4102
      %v4191 = vpop.f32.mrb[0].mxu0
      %v4192 = vadd.f32 %v4060, %v4191
      %v4193 = vpop.f32.mrb[0].mxu0
      %v4194 = vpop.f32.mrb[0].mxu0
      %v4195 = vadd.f32 %v4060, %v4194
      %v4196 = vpop.f32.mrb[0].mxu0
      %4197 = vmatprep.mubr.bf16.mxu0 0
      %4198 = vmatmul.mubr.bf16.gmra.mrb[0].mxu0 %v4104
      %v4199 = vpop.f32.mrb[0].mxu0
      %v4200 = vadd.f32 %v4060, %v4199
      %v4201 = vpop.f32.mrb[0].mxu0
      %v4202 = vpop.f32.mrb[0].mxu0
      %v4203 = vadd.f32 %v4060, %v4202
      %v4204 = vpop.f32.mrb[0].mxu0
      %4205 = vdwg.mxu0
      %v4206 = vld [vmem:[#allocation4 + $0x10] sm:$0xff]
      %v4207 = vld [vmem:[#allocation4 + $0x18] sm:$0xff]
      %v4208 = vld [vmem:[#allocation4 + $0x20] sm:$0xff]
      %v4209 = vld [vmem:[#allocation4 + $0x28] sm:$0xff]
      %v4210 = vld [vmem:[#allocation4 + $0x30] sm:$0xff]
      %v4211 = vld [vmem:[#allocation4 + $0x38] sm:$0xff]
      %v4212 = vld [vmem:[#allocation4 + $0x40] sm:$0xff]
      %v4213 = vld [vmem:[#allocation4 + $0x48] sm:$0xff]
      %v4214 = vld [vmem:[#allocation4 + $0x50] sm:$0xff]
      %v4215 = vld [vmem:[#allocation4 + $0x58] sm:$0xff]
      %v4216 = vld [vmem:[#allocation4 + $0x60] sm:$0xff]
      %v4217 = vld [vmem:[#allocation4 + $0x68] sm:$0xff]
      %v4218 = vld [vmem:[#allocation4 + $0x70] sm:$0xff]
      %v4219 = vld [vmem:[#allocation4 + $0x78] sm:$0xff]
      %v4220 = vld [vmem:[#allocation4 + $0x80] sm:$0xff]
      %v4221 = vld [vmem:[#allocation4 + $0x88] sm:$0xff]
      %v4222 = vadd.f32 %v4206, %v2703
      %v4223 = vadd.f32 %v4207, %v2703
      %v4224 = vadd.f32 %v4208, %v2703
      %v4225 = vadd.f32 %v4209, %v2703
      %v4226 = vadd.f32 %v4210, %v2703
      %v4227 = vadd.f32 %v4211, %v2703
      %v4228 = vadd.f32 %v4212, %v2703
      %v4229 = vadd.f32 %v4213, %v2703
      %v4230 = vadd.f32 %v4214, %v2703
      %v4231 = vadd.f32 %v4215, %v2703
      %v4232 = vadd.f32 %v4216, %v2703
      %v4233 = vadd.f32 %v4217, %v2703
      %v4234 = vadd.f32 %v4218, %v2703
      %v4235 = vadd.f32 %v4219, %v2703
      %v4236 = vadd.f32 %v4220, %v2703
      %v4237 = vadd.f32 %v4221, %v2703
      %4254 = vrot.lane.b32.xlu0 %v4222, 120
      %v4255 = vpop.permute.xlu0 %4254
      %4256 = vrot.lane.b32.xlu0 %v4223, 120
      %v4257 = vpop.permute.xlu0 %4256
      %4258 = vrot.lane.b32.xlu0 %v4224, 120
      %v4259 = vpop.permute.xlu0 %4258
      %4260 = vrot.lane.b32.xlu0 %v4225, 120
      %v4261 = vpop.permute.xlu0 %4260
      %4262 = vrot.lane.b32.xlu0 %v4226, 120
      %v4263 = vpop.permute.xlu0 %4262
      %4264 = vrot.lane.b32.xlu0 %v4227, 120
      %v4265 = vpop.permute.xlu0 %4264
      %4266 = vrot.lane.b32.xlu0 %v4228, 120
      %v4267 = vpop.permute.xlu0 %4266
      %4268 = vrot.lane.b32.xlu0 %v4229, 120
      %v4269 = vpop.permute.xlu0 %4268
      %4270 = vrot.lane.b32.xlu0 %v4230, 120
      %v4271 = vpop.permute.xlu0 %4270
      %4272 = vrot.lane.b32.xlu0 %v4231, 120
      %v4273 = vpop.permute.xlu0 %4272
      %4274 = vrot.lane.b32.xlu0 %v4232, 120
      %v4275 = vpop.permute.xlu0 %4274
      %4276 = vrot.lane.b32.xlu0 %v4233, 120
      %v4277 = vpop.permute.xlu0 %4276
      %4278 = vrot.lane.b32.xlu0 %v4234, 120
      %v4279 = vpop.permute.xlu0 %4278
      %4280 = vrot.lane.b32.xlu0 %v4235, 120
      %v4281 = vpop.permute.xlu0 %4280
      %4282 = vrot.lane.b32.xlu0 %v4236, 120
      %v4283 = vpop.permute.xlu0 %4282
      %4284 = vrot.lane.b32.xlu0 %v4237, 120
      %v4285 = vpop.permute.xlu0 %4284
      %v4302 = vadd.f32 %v4144, %v4255
      %v4303 = vadd.f32 %v4147, %v4257
      %v4304 = vadd.f32 %v4152, %v4259
      %v4305 = vadd.f32 %v4155, %v4261
      %v4306 = vadd.f32 %v4160, %v4263
      %v4307 = vadd.f32 %v4163, %v4265
      %v4308 = vadd.f32 %v4168, %v4267
      %v4309 = vadd.f32 %v4171, %v4269
      %v4310 = vadd.f32 %v4176, %v4271
      %v4311 = vadd.f32 %v4179, %v4273
      %v4312 = vadd.f32 %v4184, %v4275
      %v4313 = vadd.f32 %v4187, %v4277
      %v4314 = vadd.f32 %v4192, %v4279
      %v4315 = vadd.f32 %v4195, %v4281
      %v4316 = vadd.f32 %v4200, %v4283
      %v4317 = vadd.f32 %v4203, %v4285
      %v4318 = vmax.f32 %v4302, 0.0
      %v4319 = vmax.f32 %v4303, 0.0
      %v4320 = vmax.f32 %v4304, 0.0
      %v4321 = vmax.f32 %v4305, 0.0
      %v4322 = vmax.f32 %v4306, 0.0
      %v4323 = vmax.f32 %v4307, 0.0
      %v4324 = vmax.f32 %v4308, 0.0
      %v4325 = vmax.f32 %v4309, 0.0
      %v4326 = vmax.f32 %v4310, 0.0
      %v4327 = vmax.f32 %v4311, 0.0
      %v4328 = vmax.f32 %v4312, 0.0
      %v4329 = vmax.f32 %v4313, 0.0
      %v4330 = vmax.f32 %v4314, 0.0
      %v4331 = vmax.f32 %v4315, 0.0
      %v4332 = vmax.f32 %v4316, 0.0
      %v4333 = vmax.f32 %v4317, 0.0
      %4334 = vst.msk [vmem:[%s441] sm:$0xff] %vm444, %v4318
      %4335 = vst.msk [vmem:[%s441 + $0x8] sm:$0xff] %vm444, %v4319
      %4336 = vst.msk [vmem:[%s441 + $0x10] sm:$0xff] %vm444, %v4320
      %4337 = vst.msk [vmem:[%s441 + $0x18] sm:$0xff] %vm444, %v4321
      %4338 = vst.msk [vmem:[%s441 + $0x20] sm:$0xff] %vm444, %v4322
      %4339 = vst.msk [vmem:[%s441 + $0x28] sm:$0xff] %vm444, %v4323
      %4340 = vst.msk [vmem:[%s441 + $0x30] sm:$0xff] %vm444, %v4324
      %4341 = vst.msk [vmem:[%s441 + $0x38] sm:$0xff] %vm444, %v4325
      %4342 = vst.msk [vmem:[%s441 + $0x40] sm:$0xff] %vm444, %v4326
      %4343 = vst.msk [vmem:[%s441 + $0x48] sm:$0xff] %vm444, %v4327
      %4344 = vst.msk [vmem:[%s441 + $0x50] sm:$0xff] %vm444, %v4328
      %4345 = vst.msk [vmem:[%s441 + $0x58] sm:$0xff] %vm444, %v4329
      %4346 = vst.msk [vmem:[%s441 + $0x60] sm:$0xff] %vm444, %v4330
      %4347 = vst.msk [vmem:[%s441 + $0x68] sm:$0xff] %vm444, %v4331
      %4348 = vst.msk [vmem:[%s441 + $0x70] sm:$0xff] %vm444, %v4332
      %4349 = vst.msk [vmem:[%s441 + $0x78] sm:$0xff] %vm444, %v4333
      %s4350 = smul.u32 8, %s23
      %p4351 = scmp.lt.s32.totalorder %s22, 1
      %s4352 = scalar_select %p4351, %s22, 1
      %p4353 = scmp.lt.s32.totalorder %s4350, 15
      %s4354 = scalar_select %p4353, %s4350, 15
      %s4355 = smul.addr %s4354, 2
      %s4356 = smul.addr %s4352, 32
      %s4357 = sadd.s32 %s4355, %s4356
      %s4358 = smul.addr %s4357, 8
      %s4359 = scalar_lea.vmem %s7, %s4358
      // Predicated region
      $region73: #{tpu_custom_call.1} parent=47 // pred_check
        %p4360 = pneg %p230
      $region74: #{tpu_custom_call.1} parent=47 // pred_check_branch
        %4362 = sbr.rel (%p4360) target = $region76
      $region75: #{tpu_custom_call.1} parent=47 // pred_region
        %s4363 = smul.u32 8, %s23
      $region76: #{tpu_custom_call.1} parent=47 // pred_fallthru
        _
    $region48: #{tpu_custom_call.1} parent=5 // pred_fallthru
      _
    %p4364 = scmp.le.s32.totalorder 2, %s13
    // Predicated region
    $region77: #{tpu_custom_call.1} parent=5 // pred_check
      %p4365 = pneg %p4364
    $region78: #{tpu_custom_call.1} parent=5 // pred_check_branch
      %4367 = sbr.rel (%p4365) target = $region80
    $region79: #{tpu_custom_call.1} parent=5 // pred_region
      %s4368 = ssub.s32 %s13, 2
      // Predicated region
      $region81: #{tpu_custom_call.1} parent=79 // pred_check
        %p4369 = pneg %p236
      $region82: #{tpu_custom_call.1} parent=79 // pred_check_branch
        %4371 = sbr.rel (%p4369) target = $region84
      $region83: #{tpu_custom_call.1} parent=79 // pred_region
        %s4372 = smul.u32 8, %s25
        %p4373 = scmp.lt.s32.totalorder %s24, 1
        %s4374 = scalar_select %p4373, %s24, 1
        %p4375 = scmp.lt.s32.totalorder %s4372, 15
        %s4376 = scalar_select %p4375, %s4372, 15
        %s4377 = smul.addr %s4376, 2
        %s4378 = smul.addr %s4374, 32
        %s4379 = sadd.s32 %s4377, %s4378
        %s4380 = smul.addr %s4379, 8
        %s4381 = scalar_lea.vmem %s7, %s4380
      $region84: #{tpu_custom_call.1} parent=79 // pred_fallthru
        _
    $region80: #{tpu_custom_call.1} parent=5 // pred_fallthru
      _
  $region6: #{tpu_custom_call.1} parent=0 // loop_footer
    %s17 = sadd.s32 1, %s13
  $region7: #{tpu_custom_call.1} parent=0 // loop_footer_branch
    %12 = sbr.rel target = $region3
  $region8: #{tpu_custom_call.1} parent=0 // loop_exit
    _

</llo_original>
